<compile_context>
chip_gen: v5e
topology: v5e:2x2
jax: 0.10.0
libtpu: 0.0.40
codegen_flags: <defaults>
</compile_context>

<pallas_src>
import functools

import jax
import jax.numpy as jnp
import numpy as np
from jax.experimental import pallas as pl
from jax.experimental.pallas import tpu as pltpu

K = 3  # temporal kernel size of the (1, 3) conv

_VMEM_LIMIT = 32 * 1024 * 1024  # explicit scoped-VMEM budget (safe on v5e/v6e/v7x)


# ----------------------------- Pallas kernels ------------------------------

def _timeblock_kernel(x_ref, w_ref, b_ref, o_ref, *, t_out, c_out):
    # x_ref: (bn_tile, T, C_in)   w_ref: (K*C_in, 3*C_out)   b_ref: (1, 3*C_out)
    # o_ref: (bn_tile, T_out, C_out)
    bn_tile, _, c_in = x_ref.shape
    x = x_ref[...]

    # In-kernel im2col: three shifted views of the (already loaded) block,
    # concatenated along the lane axis -> (bn_tile*T_out, K*C_in).
    cols = [x[:, k:k + t_out, :].reshape(bn_tile * t_out, c_in) for k in range(K)]
    patches = jnp.concatenate(cols, axis=1)

    # Single fused matmul for conv1|conv2|conv3 (192 output lanes).
    z = jnp.dot(patches, w_ref[...], preferred_element_type=jnp.float32)
    z = z + b_ref[...]

    c1 = z[:, :c_out]
    c2 = z[:, c_out:2 * c_out]
    c3 = z[:, 2 * c_out:]
    gated = jnp.maximum(c1 + jax.nn.sigmoid(c2) + c3, 0.0)  # relu(conv1+sig(conv2)+conv3)
    o_ref[...] = gated.reshape(bn_tile, t_out, c_out).astype(o_ref.dtype)


def _head_kernel(x_ref, wt_ref, b_ref, o_ref, acc_ref, *, f_total, f_tile):
    # x_ref: (N, f_tile) bf16   wt_ref: (ncls, f_tile) bf16   b_ref: (1, ncls) f32
    # o_ref: (N, ncls) f32      acc_ref: (N, ncls) f32 scratch (persists over grid)
    k = pl.program_id(0)

    @pl.when(k == 0)
    def _():
        acc_ref[...] = jnp.zeros_like(acc_ref)

    x = x_ref[...]
    wt = wt_ref[...]
    if f_total % f_tile != 0:  # static: only traced when a tail block exists
        col = jax.lax.broadcasted_iota(jnp.int32, (1, f_tile), 1) + k * f_tile
        valid = col < f_total
        x = jnp.where(valid, x, jnp.zeros_like(x))
        wt = jnp.where(valid, wt, jnp.zeros_like(wt))

    # (N, f_tile) x (ncls, f_tile) contracting the last dims -> (N, ncls), f32 acc.
    acc_ref[...] += jax.lax.dot_general(
        x, wt, (((1,), (1,)), ((), ())), preferred_element_type=jnp.float32)

    @pl.when(k == pl.num_programs(0) - 1)
    def _():
        logits = acc_ref[...] + b_ref[...]
        m = jnp.max(logits, axis=1, keepdims=True)
        z = logits - m
        lse = jnp.log(jnp.sum(jnp.exp(z), axis=1, keepdims=True))
        o_ref[...] = (z - lse).astype(o_ref.dtype)  # log_softmax(dim=1)


# ------------------------------- wrappers -----------------------------------

def time_block_pallas(X, w1, b1, w2, b2, w3, b3, *, bn_tile=16):
    """X: (B, N, T, C_in) -> (B, N, T-2, C_out)."""
    B, N, T, C_in = X.shape
    C_out = w1.shape[-1]
    T_out = T - (K - 1)
    BN = B * N
    bn_tile = min(bn_tile, BN)
    grid = pl.cdiv(BN, bn_tile)  # partial tail block handled by masked writeback

    x_bn = X.reshape(BN, T, C_in)  # free view (merges the two major dims)

    # Fuse the three conv weights / biases: columns = [conv1 | conv2 | conv3].
    w_all = jnp.concatenate([w1, w2, w3], axis=-1).reshape(K * C_in, 3 * C_out)
    b_all = jnp.concatenate([b1, b2, b3], axis=0).reshape(1, 3 * C_out)

    kernel = functools.partial(_timeblock_kernel, t_out=T_out, c_out=C_out)

    out = pl.pallas_call(
        kernel,
        out_shape=jax.ShapeDtypeStruct((BN, T_out, C_out), X.dtype),
        grid=(grid,),
        in_specs=[
            pl.BlockSpec((bn_tile, T, C_in), lambda i: (i, 0, 0)),
            pl.BlockSpec((K * C_in, 3 * C_out), lambda i: (0, 0)),
            pl.BlockSpec((1, 3 * C_out), lambda i: (0, 0)),
        ],
        out_specs=pl.BlockSpec((bn_tile, T_out, C_out), lambda i: (i, 0, 0)),
        compiler_params=pltpu.CompilerParams(
            dimension_semantics=("parallel",),
            vmem_limit_bytes=_VMEM_LIMIT),
    )(x_bn, w_all, b_all)

    return out.reshape(B, N, T_out, C_out)


def head_pallas(flat, w, b, *, f_tile=32768):
    """flat: (N, F), w: (F, ncls), b: (ncls,) -> log_softmax(flat @ w + b, dim=1)."""
    N, F = flat.shape
    ncls = w.shape[1]
    f_tile = min(f_tile, F)
    grid = pl.cdiv(F, f_tile)

    # bf16 inputs for the memory-bound matmul; accumulation stays f32 in-kernel.
    flat_bf = flat.astype(jnp.bfloat16)
    wt_bf = w.T.astype(jnp.bfloat16)         # (ncls, F): lane-dense VMEM blocks
    b2 = b.reshape(1, ncls).astype(jnp.float32)

    kernel = functools.partial(_head_kernel, f_total=F, f_tile=f_tile)

    return pl.pallas_call(
        kernel,
        out_shape=jax.ShapeDtypeStruct((N, ncls), jnp.float32),
        grid=(grid,),
        in_specs=[
            pl.BlockSpec((N, f_tile), lambda k: (0, k)),
            pl.BlockSpec((ncls, f_tile), lambda k: (0, k)),
            pl.BlockSpec((1, ncls), lambda k: (0, 0)),
        ],
        out_specs=pl.BlockSpec((N, ncls), lambda k: (0, 0)),
        scratch_shapes=[pltpu.VMEM((N, ncls), jnp.float32)],
        compiler_params=pltpu.CompilerParams(
            dimension_semantics=("arbitrary",),
            vmem_limit_bytes=_VMEM_LIMIT),
        cost_estimate=pl.CostEstimate(
            flops=2 * N * F * ncls,
            transcendentals=N * ncls,
            bytes_accessed=N * F * 2 + F * ncls * 2 + N * ncls * 4),
    )(flat_bf, wt_bf, b2)


def lc_block_forward(params, X, status="train"):
    out = time_block_pallas(
        X,
        params["w1"], params["b1"],
        params["w2"], params["b2"],
        params["w3"], params["b3"],
    )
    # matches torch: out.reshape((out.shape[1], -1))  (mixes batch across rows
    # when B > 1 -- faithful to the original module semantics).
    flat = out.reshape(out.shape[1], -1)
    if status == "train":
        return head_pallas(flat, params["fc_train_w"], params["fc_train_b"])
    if status == "eval":
        # TODO(synk): eval head Linear(635904, 3) is only shape-consistent with
        # the full dataset size; the same F-tiled head kernel applies there.
        return head_pallas(flat, params["fc_eval_w"], params["fc_eval_b"])
    raise ValueError("status must be 'train' or 'eval'")


# ------------------------------ reference -----------------------------------

def reference_forward(params, X):
    B, N, T, C = X.shape
    T_out = T - (K - 1)

    def conv(w, b):
        acc = jnp.zeros((B, N, T_out, w.shape[-1]), jnp.float32)
        for k in range(K):
            acc = acc + jnp.einsum("bntc,cd->bntd", X[:, :, k:k + T_out, :], w[k])
        return acc + b

    c1 = conv(params["w1"], params["b1"])
    c2 = conv(params["w2"], params["b2"])
    c3 = conv(params["w3"], params["b3"])
    out = jax.nn.relu(c1 + jax.nn.sigmoid(c2) + c3)
    flat = out.reshape(out.shape[1], -1)
    logits = flat @ params["fc_train_w"] + params["fc_train_b"]
    return jax.nn.log_softmax(logits, axis=1)


# --------------------------------- main --------------------------------------

if __name__ == "__main__":
    # Small shapes consistent with the module: fully_train = Linear(6144, 3)
    # requires B * (T-2) * C_out == 6144  ->  B=2, T=50 (T_out=48), C_out=64.
    B, N, T, C_in, C_out = 2, 16, 50, 4, 64
    NUM_CLASSES = 3
    F_TRAIN = B * (T - 2) * C_out          # 6144
    F_EVAL = 635904                        # from LCBlock.__init__

    key = jax.random.PRNGKey(0)
    ks = jax.random.split(key, 12)

    def unif(k, shape, fan_in):
        bound = 1.0 / np.sqrt(fan_in)
        return jax.random.uniform(k, shape, jnp.float32, -bound, bound)

    conv_fan = C_in * K
    params = {
        # conv weights stored as (K, C_in, C_out) (== torch (C_out, C_in, 1, K) transposed)
        "w1": unif(ks[0], (K, C_in, C_out), conv_fan),
        "b1": unif(ks[1], (C_out,), conv_fan),
        "w2": unif(ks[2], (K, C_in, C_out), conv_fan),
        "b2": unif(ks[3], (C_out,), conv_fan),
        "w3": unif(ks[4], (K, C_in, C_out), conv_fan),
        "b3": unif(ks[5], (C_out,), conv_fan),
        # linear stored transposed: (in_features, out_features)
        "fc_train_w": unif(ks[6], (F_TRAIN, NUM_CLASSES), F_TRAIN),
        "fc_train_b": unif(ks[7], (NUM_CLASSES,), F_TRAIN),
        "fc_eval_w": unif(ks[8], (F_EVAL, NUM_CLASSES), F_EVAL),
        "fc_eval_b": unif(ks[9], (NUM_CLASSES,), F_EVAL),
    }

    X = jax.random.normal(ks[10], (B, N, T, C_in), jnp.float32)

    fwd = jax.jit(lc_block_forward, static_argnames=("status",))
    y = jax.block_until_ready(fwd(params, X, status="train"))

    y_ref = jax.block_until_ready(reference_forward(params, X))
    assert y.shape == (N, NUM_CLASSES)
    # Head matmul runs in bf16 (f32 accumulation) -> slightly looser tolerance.
    if not np.allclose(np.asarray(y), np.asarray(y_ref), rtol=2e-2, atol=2e-2):
        raise AssertionError("Pallas output mismatch vs JAX reference")

    print("KERNEL_OK")
</pallas_src>

<mosaic_0001>
module attributes {stable_mosaic.version = 11 : i64} {
  func.func @_timeblock_kernel(%arg0: i32, %arg1: memref<16x50x4xf32, #tpu.memory_space<vmem>>, %arg2: memref<12x192xf32, #tpu.memory_space<vmem>>, %arg3: memref<1x192xf32, #tpu.memory_space<vmem>>, %arg4: memref<16x48x64xf32, #tpu.memory_space<vmem>>) attributes {dimension_semantics = [#tpu.dimension_semantics<parallel>], iteration_bounds = array<i64: 2>, scalar_prefetch = 0 : i64, scratch_operands = 0 : i64, tpu.core_type = #tpu.core_type<tc>, window_params = [{transform_indices = @transform_0, window_bounds = array<i64: 16, 50, 4>}, {pipeline_mode = #tpu.pipeline_mode<synchronous>, transform_indices = @transform_1, window_bounds = array<i64: 12, 192>}, {pipeline_mode = #tpu.pipeline_mode<synchronous>, transform_indices = @transform_2, window_bounds = array<i64: 1, 192>}, {transform_indices = @transform_3, window_bounds = array<i64: 16, 48, 64>}]} {
    %c0 = arith.constant 0 : index
    %c0_0 = arith.constant 0 : index
    %c0_1 = arith.constant 0 : index
    %0 = vector.load %arg1[%c0, %c0_0, %c0_1] : memref<16x50x4xf32, #tpu.memory_space<vmem>>, vector<16x50x4xf32>
    %1 = vector.extract_strided_slice %0 {offsets = [0, 0, 0], sizes = [16, 48, 4], strides = [1, 1, 1]} : vector<16x50x4xf32> to vector<16x48x4xf32>
    %2 = vector.shape_cast %1 : vector<16x48x4xf32> to vector<768x4xf32>
    %3 = vector.extract_strided_slice %0 {offsets = [0, 1, 0], sizes = [16, 48, 4], strides = [1, 1, 1]} : vector<16x50x4xf32> to vector<16x48x4xf32>
    %4 = vector.shape_cast %3 : vector<16x48x4xf32> to vector<768x4xf32>
    %5 = vector.extract_strided_slice %0 {offsets = [0, 2, 0], sizes = [16, 48, 4], strides = [1, 1, 1]} : vector<16x50x4xf32> to vector<16x48x4xf32>
    %6 = vector.shape_cast %5 : vector<16x48x4xf32> to vector<768x4xf32>
    %7 = tpu.concatenate %2, %4, %6 in 1 : vector<768x4xf32>, vector<768x4xf32>, vector<768x4xf32> -> vector<768x12xf32>
    %c0_2 = arith.constant 0 : index
    %c0_3 = arith.constant 0 : index
    %8 = vector.load %arg2[%c0_2, %c0_3] : memref<12x192xf32, #tpu.memory_space<vmem>>, vector<12x192xf32>
    %cst = arith.constant dense<0.000000e+00> : vector<768x192xf32>
    %9 = tpu.matmul %7, %8, %cst {dimension_numbers = #tpu.dot_dimension_numbers<[1], [0], [0], [1], [0, 0, 1, 1], [], []>} : vector<768x12xf32>, vector<12x192xf32>, vector<768x192xf32> -> vector<768x192xf32>
    %c0_4 = arith.constant 0 : index
    %c0_5 = arith.constant 0 : index
    %10 = vector.load %arg3[%c0_4, %c0_5] : memref<1x192xf32, #tpu.memory_space<vmem>>, vector<1x192xf32>
    %11 = vector.broadcast %10 : vector<1x192xf32> to vector<768x192xf32>
    %12 = arith.addf %9, %11 : vector<768x192xf32>
    %13 = vector.extract_strided_slice %12 {offsets = [0, 0], sizes = [768, 64], strides = [1, 1]} : vector<768x192xf32> to vector<768x64xf32>
    %14 = vector.extract_strided_slice %12 {offsets = [0, 64], sizes = [768, 64], strides = [1, 1]} : vector<768x192xf32> to vector<768x64xf32>
    %15 = vector.extract_strided_slice %12 {offsets = [0, 128], sizes = [768, 64], strides = [1, 1]} : vector<768x192xf32> to vector<768x64xf32>
    %16 = arith.negf %14 : vector<768x64xf32>
    %17 = math.exp %16 : vector<768x64xf32>
    %cst_6 = arith.constant 1.000000e+00 : f32
    %18 = vector.broadcast %cst_6 : f32 to vector<768x64xf32>
    %19 = arith.addf %18, %17 : vector<768x64xf32>
    %20 = arith.divf %18, %19 : vector<768x64xf32>
    %21 = arith.addf %13, %20 : vector<768x64xf32>
    %22 = arith.addf %21, %15 : vector<768x64xf32>
    %cst_7 = arith.constant 0.000000e+00 : f32
    %23 = vector.broadcast %cst_7 : f32 to vector<768x64xf32>
    %24 = arith.maximumf %22, %23 : vector<768x64xf32>
    %25 = vector.shape_cast %24 : vector<768x64xf32> to vector<16x48x64xf32>
    %c0_8 = arith.constant 0 : index
    %c0_9 = arith.constant 0 : index
    %c0_10 = arith.constant 0 : index
    %26 = vector.load %arg4[%c0_8, %c0_9, %c0_10] : memref<16x48x64xf32, #tpu.memory_space<vmem>>, vector<16x48x64xf32>
    tpu.vector_store %arg4[%c0_8, %c0_9, %c0_10], %25 {strides = array<i32>} : memref<16x48x64xf32, #tpu.memory_space<vmem>>, vector<16x48x64xf32>,
    return
  }
  func.func @transform_0(%arg0: i32) -> (i32, i32, i32) {
    %c0_i32 = arith.constant 0 : i32
    %c0_i32_0 = arith.constant 0 : i32
    %c0_i32_1 = arith.constant 0 : i32
    return %arg0, %c0_i32, %c0_i32_0 : i32, i32, i32
  }
  func.func @transform_1(%arg0: i32) -> (i32, i32) {
    %c0_i32 = arith.constant 0 : i32
    %c0_i32_0 = arith.constant 0 : i32
    %c0_i32_1 = arith.constant 0 : i32
    return %c0_i32, %c0_i32_0 : i32, i32
  }
  func.func @transform_2(%arg0: i32) -> (i32, i32) {
    %c0_i32 = arith.constant 0 : i32
    %c0_i32_0 = arith.constant 0 : i32
    %c0_i32_1 = arith.constant 0 : i32
    return %c0_i32, %c0_i32_0 : i32, i32
  }
  func.func @transform_3(%arg0: i32) -> (i32, i32, i32) {
    %c0_i32 = arith.constant 0 : i32
    %c0_i32_0 = arith.constant 0 : i32
    %c0_i32_1 = arith.constant 0 : i32
    return %arg0, %c0_i32, %c0_i32_0 : i32, i32, i32
  }
}

module attributes {stable_mosaic.version = 11 : i64} {
  func.func @_head_kernel(%arg0: i32, %arg1: memref<16x6144xbf16, #tpu.memory_space<vmem>>, %arg2: memref<3x6144xbf16, #tpu.memory_space<vmem>>, %arg3: memref<1x3xf32, #tpu.memory_space<vmem>>, %arg4: memref<16x3xf32, #tpu.memory_space<vmem>>, %arg5: memref<16x3xf32, #tpu.memory_space<vmem>>) attributes {dimension_semantics = [#tpu.dimension_semantics<arbitrary>], iteration_bounds = array<i64: 1>, scalar_prefetch = 0 : i64, scratch_operands = 1 : i64, tpu.core_type = #tpu.core_type<tc>, window_params = [{transform_indices = @transform_0, window_bounds = array<i64: 16, 6144>}, {transform_indices = @transform_1, window_bounds = array<i64: 3, 6144>}, {pipeline_mode = #tpu.pipeline_mode<synchronous>, transform_indices = @transform_2, window_bounds = array<i64: 1, 3>}, {pipeline_mode = #tpu.pipeline_mode<synchronous>, transform_indices = @transform_3, window_bounds = array<i64: 16, 3>}]} {
    %c0_i32 = arith.constant 0 : i32
    %0 = arith.cmpi eq, %arg0, %c0_i32 : i32
    %1 = arith.extui %0 : i1 to i32
    %c0_i32_0 = arith.constant 0 : i32
    %2 = arith.cmpi ne, %1, %c0_i32_0 : i32
    scf.if %2 {
      %cst_10 = arith.constant 0.000000e+00 : f32
      %12 = vector.broadcast %cst_10 : f32 to vector<16x3xf32>
      %c0_11 = arith.constant 0 : index
      %c0_12 = arith.constant 0 : index
      %13 = vector.load %arg5[%c0_11, %c0_12] : memref<16x3xf32, #tpu.memory_space<vmem>>, vector<16x3xf32>
      tpu.vector_store %arg5[%c0_11, %c0_12], %12 {strides = array<i32>} : memref<16x3xf32, #tpu.memory_space<vmem>>, vector<16x3xf32>,
    } else {
    }
    %c0 = arith.constant 0 : index
    %c0_1 = arith.constant 0 : index
    %3 = vector.load %arg1[%c0, %c0_1] : memref<16x6144xbf16, #tpu.memory_space<vmem>>, vector<16x6144xbf16>
    %c0_2 = arith.constant 0 : index
    %c0_3 = arith.constant 0 : index
    %4 = vector.load %arg2[%c0_2, %c0_3] : memref<3x6144xbf16, #tpu.memory_space<vmem>>, vector<3x6144xbf16>
    %c0_4 = arith.constant 0 : index
    %c0_5 = arith.constant 0 : index
    %5 = vector.load %arg5[%c0_4, %c0_5] : memref<16x3xf32, #tpu.memory_space<vmem>>, vector<16x3xf32>
    %cst = arith.constant dense<0.000000e+00> : vector<16x3xf32>
    %6 = tpu.matmul %3, %4, %cst {dimension_numbers = #tpu.dot_dimension_numbers<[1], [1], [0], [0], [0, 0, 1, 0], [], []>} : vector<16x6144xbf16>, vector<3x6144xbf16>, vector<16x3xf32> -> vector<16x3xf32>
    %7 = arith.addf %5, %6 : vector<16x3xf32>
    %c0_6 = arith.constant 0 : index
    %c0_7 = arith.constant 0 : index
    %8 = vector.load %arg5[%c0_6, %c0_7] : memref<16x3xf32, #tpu.memory_space<vmem>>, vector<16x3xf32>
    tpu.vector_store %arg5[%c0_6, %c0_7], %7 {strides = array<i32>} : memref<16x3xf32, #tpu.memory_space<vmem>>, vector<16x3xf32>,
    %c0_i32_8 = arith.constant 0 : i32
    %9 = arith.cmpi eq, %arg0, %c0_i32_8 : i32
    %10 = arith.extui %9 : i1 to i32
    %c0_i32_9 = arith.constant 0 : i32
    %11 = arith.cmpi ne, %10, %c0_i32_9 : i32
    scf.if %11 {
      %c0_10 = arith.constant 0 : index
      %c0_11 = arith.constant 0 : index
      %12 = vector.load %arg5[%c0_10, %c0_11] : memref<16x3xf32, #tpu.memory_space<vmem>>, vector<16x3xf32>
      %c0_12 = arith.constant 0 : index
      %c0_13 = arith.constant 0 : index
      %13 = vector.load %arg3[%c0_12, %c0_13] : memref<1x3xf32, #tpu.memory_space<vmem>>, vector<1x3xf32>
      %14 = vector.broadcast %13 : vector<1x3xf32> to vector<16x3xf32>
      %15 = arith.addf %12, %14 : vector<16x3xf32>
      %cst_14 = arith.constant dense<0xFF800000> : vector<16xf32>
      %16 = vector.multi_reduction <maximumf>, %15, %cst_14 [1] : vector<16x3xf32> to vector<16xf32>
      %17 = vector.shape_cast %16 : vector<16xf32> to vector<16x1xf32>
      %18 = vector.broadcast %17 : vector<16x1xf32> to vector<16x3xf32>
      %19 = arith.subf %15, %18 : vector<16x3xf32>
      %20 = math.exp %19 : vector<16x3xf32>
      %cst_15 = arith.constant dense<0.000000e+00> : vector<16xf32>
      %21 = vector.multi_reduction <add>, %20, %cst_15 [1] : vector<16x3xf32> to vector<16xf32>
      %22 = vector.shape_cast %21 : vector<16xf32> to vector<16x1xf32>
      %23 = math.log %22 : vector<16x1xf32>
      %24 = vector.broadcast %23 : vector<16x1xf32> to vector<16x3xf32>
      %25 = arith.subf %19, %24 : vector<16x3xf32>
      %c0_16 = arith.constant 0 : index
      %c0_17 = arith.constant 0 : index
      %26 = vector.load %arg4[%c0_16, %c0_17] : memref<16x3xf32, #tpu.memory_space<vmem>>, vector<16x3xf32>
      tpu.vector_store %arg4[%c0_16, %c0_17], %25 {strides = array<i32>} : memref<16x3xf32, #tpu.memory_space<vmem>>, vector<16x3xf32>,
    } else {
    }
    return
  }
  func.func @transform_0(%arg0: i32) -> (i32, i32) {
    %c0_i32 = arith.constant 0 : i32
    %c0_i32_0 = arith.constant 0 : i32
    return %c0_i32, %arg0 : i32, i32
  }
  func.func @transform_1(%arg0: i32) -> (i32, i32) {
    %c0_i32 = arith.constant 0 : i32
    %c0_i32_0 = arith.constant 0 : i32
    return %c0_i32, %arg0 : i32, i32
  }
  func.func @transform_2(%arg0: i32) -> (i32, i32) {
    %c0_i32 = arith.constant 0 : i32
    %c0_i32_0 = arith.constant 0 : i32
    %c0_i32_1 = arith.constant 0 : i32
    return %c0_i32, %c0_i32_0 : i32, i32
  }
  func.func @transform_3(%arg0: i32) -> (i32, i32) {
    %c0_i32 = arith.constant 0 : i32
    %c0_i32_0 = arith.constant 0 : i32
    %c0_i32_1 = arith.constant 0 : i32
    return %c0_i32, %c0_i32_0 : i32, i32
  }
}

</mosaic_0001>

<llo_original>
// kernel: lc_block_forward.3
$region0: #{lc_block_forward.3}
  #allocation0 [shape = 'u32[]', space=smem, size = 0x4, offset = 0x4, fixed_abs, tag = 'smem constant byte address 0x4 - core index']
  #allocation1 [shape = 'u32[72,128]{1,0:T(1,128)}', space=vmem, size = 0x9000, scoped, tag = 'internal scratch']
  #allocation2 [shape = 'f32[16,3]{1,0:T(8,128)}', space=vmem, size = 0x2000, scoped, tag = 'scratch operand']
  %s0 = inlined_call_operand.vmem [shape: bf16[16,6144], index: 0, kind: input, shape index: {}]
  %s1 = inlined_call_operand.vmem [shape: bf16[3,6144], index: 1, kind: input, shape index: {}]
  %s2 = inlined_call_operand.vmem [shape: f32[1,3], index: 2, kind: input, shape index: {}]
  %s3 = inlined_call_operand.vmem [shape: f32[16,3], index: 3, kind: output, shape index: {}]
  %s4 = sld [smem:[#allocation0]]
  $region30: #{lc_block_forward.3} parent=0
    _
  %s6 = ssub.s32 1, %s4
  %s7 = scalar_select 0, %s6, %s4
  // Predicated region
  $region2: #{lc_block_forward.3} parent=0 // pred_check
    _
  $region3: #{lc_block_forward.3} parent=0 // pred_check_branch
    %9 = sbr.rel (0) target = $region5
  $region4: #{lc_block_forward.3} parent=0 // pred_region
    _
  $region5: #{lc_block_forward.3} parent=0 // pred_fallthru
    _
  // Predicated region
  $region6: #{lc_block_forward.3} parent=0 // pred_check
    _
  $region7: #{lc_block_forward.3} parent=0 // pred_check_branch
    %11 = sbr.rel (0) target = $region9
  $region8: #{lc_block_forward.3} parent=0 // pred_region
    _
  $region9: #{lc_block_forward.3} parent=0 // pred_fallthru
    _
  // Predicated region
  $region10: #{lc_block_forward.3} parent=0 // pred_check
    _
  $region11: #{lc_block_forward.3} parent=0 // pred_check_branch
    %13 = sbr.rel (0) target = $region13
  $region12: #{lc_block_forward.3} parent=0 // pred_region
    _
  $region13: #{lc_block_forward.3} parent=0 // pred_fallthru
    _
  %p15 = scmp.eq.s32.totalorder 0, 0
  // Predicated region
  $region14: #{lc_block_forward.3} parent=0 // pred_check
    %p16 = pneg %p15
  $region15: #{lc_block_forward.3} parent=0 // pred_check_branch
    %18 = sbr.rel (%p16) target = $region17
  $region16: #{lc_block_forward.3} parent=0 // pred_region
    %vm19 = vcmask 23552
    %20 = vst.msk [vmem:[#allocation2] sm:$0xff] %vm19, 0.0
    %21 = vst.msk [vmem:[#allocation2 + $0x8] sm:$0xff] %vm19, 0.0
  $region17: #{lc_block_forward.3} parent=0 // pred_fallthru
    _
  %v22 = vld [vmem:[%s0] sm:$0xff]
  %v23 = vld [vmem:[%s0 + $0x8] sm:$0xff]
  %v24 = vld [vmem:[%s0 + $0x10] sm:$0xff]
  %v25 = vld [vmem:[%s0 + $0x18] sm:$0xff]
  %v26 = vld [vmem:[%s0 + $0x20] sm:$0xff]
  %v27 = vld [vmem:[%s0 + $0x28] sm:$0xff]
  %v28 = vld [vmem:[%s0 + $0x30] sm:$0xff]
  %v29 = vld [vmem:[%s0 + $0x38] sm:$0xff]
  %v30 = vld [vmem:[%s0 + $0x40] sm:$0xff]
  %v31 = vld [vmem:[%s0 + $0x48] sm:$0xff]
  %v32 = vld [vmem:[%s0 + $0x50] sm:$0xff]
  %v33 = vld [vmem:[%s0 + $0x58] sm:$0xff]
  %v34 = vld [vmem:[%s0 + $0x60] sm:$0xff]
  %v35 = vld [vmem:[%s0 + $0x68] sm:$0xff]
  %v36 = vld [vmem:[%s0 + $0x70] sm:$0xff]
  %v37 = vld [vmem:[%s0 + $0x78] sm:$0xff]
  %v38 = vld [vmem:[%s0 + $0x80] sm:$0xff]
  %v39 = vld [vmem:[%s0 + $0x88] sm:$0xff]
  %v40 = vld [vmem:[%s0 + $0x90] sm:$0xff]
  %v41 = vld [vmem:[%s0 + $0x98] sm:$0xff]
  %v42 = vld [vmem:[%s0 + $0xa0] sm:$0xff]
  %v43 = vld [vmem:[%s0 + $0xa8] sm:$0xff]
  %v44 = vld [vmem:[%s0 + $0xb0] sm:$0xff]
  %v45 = vld [vmem:[%s0 + $0xb8] sm:$0xff]
  %v46 = vld [vmem:[%s0 + $0xc0] sm:$0xff]
  %v47 = vld [vmem:[%s0 + $0xc8] sm:$0xff]
  %v48 = vld [vmem:[%s0 + $0xd0] sm:$0xff]
  %v49 = vld [vmem:[%s0 + $0xd8] sm:$0xff]
  %v50 = vld [vmem:[%s0 + $0xe0] sm:$0xff]
  %v51 = vld [vmem:[%s0 + $0xe8] sm:$0xff]
  %v52 = vld [vmem:[%s0 + $0xf0] sm:$0xff]
  %v53 = vld [vmem:[%s0 + $0xf8] sm:$0xff]
  %v54 = vld [vmem:[%s0 + $0x100] sm:$0xff]
  %v55 = vld [vmem:[%s0 + $0x108] sm:$0xff]
  %v56 = vld [vmem:[%s0 + $0x110] sm:$0xff]
  %v57 = vld [vmem:[%s0 + $0x118] sm:$0xff]
  %v58 = vld [vmem:[%s0 + $0x120] sm:$0xff]
  %v59 = vld [vmem:[%s0 + $0x128] sm:$0xff]
  %v60 = vld [vmem:[%s0 + $0x130] sm:$0xff]
  %v61 = vld [vmem:[%s0 + $0x138] sm:$0xff]
  %v62 = vld [vmem:[%s0 + $0x140] sm:$0xff]
  %v63 = vld [vmem:[%s0 + $0x148] sm:$0xff]
  %v64 = vld [vmem:[%s0 + $0x150] sm:$0xff]
  %v65 = vld [vmem:[%s0 + $0x158] sm:$0xff]
  %v66 = vld [vmem:[%s0 + $0x160] sm:$0xff]
  %v67 = vld [vmem:[%s0 + $0x168] sm:$0xff]
  %v68 = vld [vmem:[%s0 + $0x170] sm:$0xff]
  %v69 = vld [vmem:[%s0 + $0x178] sm:$0xff]
  %v70 = vld [vmem:[%s1] sm:$0xff]
  %v71 = vld [vmem:[%s1 + $0x8] sm:$0xff]
  %v72 = vld [vmem:[%s1 + $0x10] sm:$0xff]
  %v73 = vld [vmem:[%s1 + $0x18] sm:$0xff]
  %v74 = vld [vmem:[%s1 + $0x20] sm:$0xff]
  %v75 = vld [vmem:[%s1 + $0x28] sm:$0xff]
  %v76 = vld [vmem:[%s1 + $0x30] sm:$0xff]
  %v77 = vld [vmem:[%s1 + $0x38] sm:$0xff]
  %v78 = vld [vmem:[%s1 + $0x40] sm:$0xff]
  %v79 = vld [vmem:[%s1 + $0x48] sm:$0xff]
  %v80 = vld [vmem:[%s1 + $0x50] sm:$0xff]
  %v81 = vld [vmem:[%s1 + $0x58] sm:$0xff]
  %v82 = vld [vmem:[#allocation2] sm:$0xff]
  %v83 = vld [vmem:[#allocation2 + $0x8] sm:$0xff]
  %v132 = vunpack.c.l.b16 %v22
  %v133 = vunpack.c.h.b16 %v22
  %v134 = vunpack.c.l.b16 %v23
  %v135 = vunpack.c.h.b16 %v23
  %v136 = vunpack.c.l.b16 %v24
  %v137 = vunpack.c.h.b16 %v24
  %v138 = vunpack.c.l.b16 %v25
  %v139 = vunpack.c.h.b16 %v25
  %v140 = vunpack.c.l.b16 %v26
  %v141 = vunpack.c.h.b16 %v26
  %v142 = vunpack.c.l.b16 %v27
  %v143 = vunpack.c.h.b16 %v27
  %v144 = vunpack.c.l.b16 %v28
  %v145 = vunpack.c.h.b16 %v28
  %v146 = vunpack.c.l.b16 %v29
  %v147 = vunpack.c.h.b16 %v29
  %v148 = vunpack.c.l.b16 %v30
  %v149 = vunpack.c.h.b16 %v30
  %v150 = vunpack.c.l.b16 %v31
  %v151 = vunpack.c.h.b16 %v31
  %v152 = vunpack.c.l.b16 %v32
  %v153 = vunpack.c.h.b16 %v32
  %v154 = vunpack.c.l.b16 %v33
  %v155 = vunpack.c.h.b16 %v33
  %v156 = vunpack.c.l.b16 %v34
  %v157 = vunpack.c.h.b16 %v34
  %v158 = vunpack.c.l.b16 %v35
  %v159 = vunpack.c.h.b16 %v35
  %v160 = vunpack.c.l.b16 %v36
  %v161 = vunpack.c.h.b16 %v36
  %v162 = vunpack.c.l.b16 %v37
  %v163 = vunpack.c.h.b16 %v37
  %v164 = vunpack.c.l.b16 %v38
  %v165 = vunpack.c.h.b16 %v38
  %v166 = vunpack.c.l.b16 %v39
  %v167 = vunpack.c.h.b16 %v39
  %v168 = vunpack.c.l.b16 %v40
  %v169 = vunpack.c.h.b16 %v40
  %v170 = vunpack.c.l.b16 %v41
  %v171 = vunpack.c.h.b16 %v41
  %v172 = vunpack.c.l.b16 %v42
  %v173 = vunpack.c.h.b16 %v42
  %v174 = vunpack.c.l.b16 %v43
  %v175 = vunpack.c.h.b16 %v43
  %v176 = vunpack.c.l.b16 %v44
  %v177 = vunpack.c.h.b16 %v44
  %v178 = vunpack.c.l.b16 %v45
  %v179 = vunpack.c.h.b16 %v45
  %v180 = vunpack.c.l.b16 %v46
  %v181 = vunpack.c.h.b16 %v46
  %v182 = vunpack.c.l.b16 %v47
  %v183 = vunpack.c.h.b16 %v47
  %v184 = vunpack.c.l.b16 %v48
  %v185 = vunpack.c.h.b16 %v48
  %v186 = vunpack.c.l.b16 %v49
  %v187 = vunpack.c.h.b16 %v49
  %v188 = vunpack.c.l.b16 %v50
  %v189 = vunpack.c.h.b16 %v50
  %v190 = vunpack.c.l.b16 %v51
  %v191 = vunpack.c.h.b16 %v51
  %v192 = vunpack.c.l.b16 %v52
  %v193 = vunpack.c.h.b16 %v52
  %v194 = vunpack.c.l.b16 %v53
  %v195 = vunpack.c.h.b16 %v53
  %v196 = vunpack.c.l.b16 %v54
  %v197 = vunpack.c.h.b16 %v54
  %v198 = vunpack.c.l.b16 %v55
  %v199 = vunpack.c.h.b16 %v55
  %v200 = vunpack.c.l.b16 %v56
  %v201 = vunpack.c.h.b16 %v56
  %v202 = vunpack.c.l.b16 %v57
  %v203 = vunpack.c.h.b16 %v57
  %v204 = vunpack.c.l.b16 %v58
  %v205 = vunpack.c.h.b16 %v58
  %v206 = vunpack.c.l.b16 %v59
  %v207 = vunpack.c.h.b16 %v59
  %v208 = vunpack.c.l.b16 %v60
  %v209 = vunpack.c.h.b16 %v60
  %v210 = vunpack.c.l.b16 %v61
  %v211 = vunpack.c.h.b16 %v61
  %v212 = vunpack.c.l.b16 %v62
  %v213 = vunpack.c.h.b16 %v62
  %v214 = vunpack.c.l.b16 %v63
  %v215 = vunpack.c.h.b16 %v63
  %v216 = vunpack.c.l.b16 %v64
  %v217 = vunpack.c.h.b16 %v64
  %v218 = vunpack.c.l.b16 %v65
  %v219 = vunpack.c.h.b16 %v65
  %v220 = vunpack.c.l.b16 %v66
  %v221 = vunpack.c.h.b16 %v66
  %v222 = vunpack.c.l.b16 %v67
  %v223 = vunpack.c.h.b16 %v67
  %v224 = vunpack.c.l.b16 %v68
  %v225 = vunpack.c.h.b16 %v68
  %v226 = vunpack.c.l.b16 %v69
  %v227 = vunpack.c.h.b16 %v69
  %v228 = vpack.c.b16 %v180, %v132
  %v229 = vpack.c.b16 %v181, %v133
  %v230 = vpack.c.b16 %v182, %v134
  %v231 = vpack.c.b16 %v183, %v135
  %v232 = vpack.c.b16 %v184, %v136
  %v233 = vpack.c.b16 %v185, %v137
  %v234 = vpack.c.b16 %v186, %v138
  %v235 = vpack.c.b16 %v187, %v139
  %v236 = vpack.c.b16 %v188, %v140
  %v237 = vpack.c.b16 %v189, %v141
  %v238 = vpack.c.b16 %v190, %v142
  %v239 = vpack.c.b16 %v191, %v143
  %v240 = vpack.c.b16 %v192, %v144
  %v241 = vpack.c.b16 %v193, %v145
  %v242 = vpack.c.b16 %v194, %v146
  %v243 = vpack.c.b16 %v195, %v147
  %v244 = vpack.c.b16 %v196, %v148
  %v245 = vpack.c.b16 %v197, %v149
  %v246 = vpack.c.b16 %v198, %v150
  %v247 = vpack.c.b16 %v199, %v151
  %v248 = vpack.c.b16 %v200, %v152
  %v249 = vpack.c.b16 %v201, %v153
  %v250 = vpack.c.b16 %v202, %v154
  %v251 = vpack.c.b16 %v203, %v155
  %v252 = vpack.c.b16 %v204, %v156
  %v253 = vpack.c.b16 %v205, %v157
  %v254 = vpack.c.b16 %v206, %v158
  %v255 = vpack.c.b16 %v207, %v159
  %v256 = vpack.c.b16 %v208, %v160
  %v257 = vpack.c.b16 %v209, %v161
  %v258 = vpack.c.b16 %v210, %v162
  %v259 = vpack.c.b16 %v211, %v163
  %v260 = vpack.c.b16 %v212, %v164
  %v261 = vpack.c.b16 %v213, %v165
  %v262 = vpack.c.b16 %v214, %v166
  %v263 = vpack.c.b16 %v215, %v167
  %v264 = vpack.c.b16 %v216, %v168
  %v265 = vpack.c.b16 %v217, %v169
  %v266 = vpack.c.b16 %v218, %v170
  %v267 = vpack.c.b16 %v219, %v171
  %v268 = vpack.c.b16 %v220, %v172
  %v269 = vpack.c.b16 %v221, %v173
  %v270 = vpack.c.b16 %v222, %v174
  %v271 = vpack.c.b16 %v223, %v175
  %v272 = vpack.c.b16 %v224, %v176
  %v273 = vpack.c.b16 %v225, %v177
  %v274 = vpack.c.b16 %v226, %v178
  %v275 = vpack.c.b16 %v227, %v179
  %325 = vst [vmem:[#allocation1] ss:$4 sm:$0xff] %v70
  %s327 = scalar_lea.vmem [#allocation1], 32
  %328 = vst [vmem:[%s327] ss:$4 sm:$0xff] %v71
  %v329 = vld.sshfl [vmem:[#allocation1] sm:$0xff pattern:$0x73625140]
  %v330 = vld.sshfl [vmem:[#allocation1 + $0x8] sm:$0xff pattern:$0x73625140]
  %v331 = vld.sshfl [vmem:[#allocation1 + $0x10] sm:$0xff pattern:$0x73625140]
  %v332 = vld.sshfl [vmem:[#allocation1 + $0x18] sm:$0xff pattern:$0x73625140]
  %v333 = vld.sshfl [vmem:[#allocation1 + $0x20] sm:$0xff pattern:$0x73625140]
  %v334 = vld.sshfl [vmem:[#allocation1 + $0x28] sm:$0xff pattern:$0x73625140]
  %v335 = vld.sshfl [vmem:[#allocation1 + $0x30] sm:$0xff pattern:$0x73625140]
  %v336 = vld.sshfl [vmem:[#allocation1 + $0x38] sm:$0xff pattern:$0x73625140]
  %338 = vst [vmem:[#allocation1] ss:$4 sm:$0xff] %v72
  %340 = vst [vmem:[%s327] ss:$4 sm:$0xff] %v73
  %v341 = vld.sshfl [vmem:[#allocation1] sm:$0xff pattern:$0x73625140]
  %v342 = vld.sshfl [vmem:[#allocation1 + $0x8] sm:$0xff pattern:$0x73625140]
  %v343 = vld.sshfl [vmem:[#allocation1 + $0x10] sm:$0xff pattern:$0x73625140]
  %v344 = vld.sshfl [vmem:[#allocation1 + $0x18] sm:$0xff pattern:$0x73625140]
  %v345 = vld.sshfl [vmem:[#allocation1 + $0x20] sm:$0xff pattern:$0x73625140]
  %v346 = vld.sshfl [vmem:[#allocation1 + $0x28] sm:$0xff pattern:$0x73625140]
  %v347 = vld.sshfl [vmem:[#allocation1 + $0x30] sm:$0xff pattern:$0x73625140]
  %v348 = vld.sshfl [vmem:[#allocation1 + $0x38] sm:$0xff pattern:$0x73625140]
  %350 = vst [vmem:[#allocation1] ss:$4 sm:$0xff] %v74
  %352 = vst [vmem:[%s327] ss:$4 sm:$0xff] %v75
  %v353 = vld.sshfl [vmem:[#allocation1] sm:$0xff pattern:$0x73625140]
  %v354 = vld.sshfl [vmem:[#allocation1 + $0x8] sm:$0xff pattern:$0x73625140]
  %v355 = vld.sshfl [vmem:[#allocation1 + $0x10] sm:$0xff pattern:$0x73625140]
  %v356 = vld.sshfl [vmem:[#allocation1 + $0x18] sm:$0xff pattern:$0x73625140]
  %v357 = vld.sshfl [vmem:[#allocation1 + $0x20] sm:$0xff pattern:$0x73625140]
  %v358 = vld.sshfl [vmem:[#allocation1 + $0x28] sm:$0xff pattern:$0x73625140]
  %v359 = vld.sshfl [vmem:[#allocation1 + $0x30] sm:$0xff pattern:$0x73625140]
  %v360 = vld.sshfl [vmem:[#allocation1 + $0x38] sm:$0xff pattern:$0x73625140]
  %362 = vst [vmem:[#allocation1] ss:$4 sm:$0xff] %v76
  %364 = vst [vmem:[%s327] ss:$4 sm:$0xff] %v77
  %v365 = vld.sshfl [vmem:[#allocation1] sm:$0xff pattern:$0x73625140]
  %v366 = vld.sshfl [vmem:[#allocation1 + $0x8] sm:$0xff pattern:$0x73625140]
  %v367 = vld.sshfl [vmem:[#allocation1 + $0x10] sm:$0xff pattern:$0x73625140]
  %v368 = vld.sshfl [vmem:[#allocation1 + $0x18] sm:$0xff pattern:$0x73625140]
  %v369 = vld.sshfl [vmem:[#allocation1 + $0x20] sm:$0xff pattern:$0x73625140]
  %v370 = vld.sshfl [vmem:[#allocation1 + $0x28] sm:$0xff pattern:$0x73625140]
  %v371 = vld.sshfl [vmem:[#allocation1 + $0x30] sm:$0xff pattern:$0x73625140]
  %v372 = vld.sshfl [vmem:[#allocation1 + $0x38] sm:$0xff pattern:$0x73625140]
  %374 = vst [vmem:[#allocation1] ss:$4 sm:$0xff] %v78
  %376 = vst [vmem:[%s327] ss:$4 sm:$0xff] %v79
  %v377 = vld.sshfl [vmem:[#allocation1] sm:$0xff pattern:$0x73625140]
  %v378 = vld.sshfl [vmem:[#allocation1 + $0x8] sm:$0xff pattern:$0x73625140]
  %v379 = vld.sshfl [vmem:[#allocation1 + $0x10] sm:$0xff pattern:$0x73625140]
  %v380 = vld.sshfl [vmem:[#allocation1 + $0x18] sm:$0xff pattern:$0x73625140]
  %v381 = vld.sshfl [vmem:[#allocation1 + $0x20] sm:$0xff pattern:$0x73625140]
  %v382 = vld.sshfl [vmem:[#allocation1 + $0x28] sm:$0xff pattern:$0x73625140]
  %v383 = vld.sshfl [vmem:[#allocation1 + $0x30] sm:$0xff pattern:$0x73625140]
  %v384 = vld.sshfl [vmem:[#allocation1 + $0x38] sm:$0xff pattern:$0x73625140]
  %386 = vst [vmem:[#allocation1] ss:$4 sm:$0xff] %v80
  %388 = vst [vmem:[%s327] ss:$4 sm:$0xff] %v81
  %v389 = vld.sshfl [vmem:[#allocation1] sm:$0xff pattern:$0x73625140]
  %v390 = vld.sshfl [vmem:[#allocation1 + $0x8] sm:$0xff pattern:$0x73625140]
  %v391 = vld.sshfl [vmem:[#allocation1 + $0x10] sm:$0xff pattern:$0x73625140]
  %v392 = vld.sshfl [vmem:[#allocation1 + $0x18] sm:$0xff pattern:$0x73625140]
  %v393 = vld.sshfl [vmem:[#allocation1 + $0x20] sm:$0xff pattern:$0x73625140]
  %v394 = vld.sshfl [vmem:[#allocation1 + $0x28] sm:$0xff pattern:$0x73625140]
  %v395 = vld.sshfl [vmem:[#allocation1 + $0x30] sm:$0xff pattern:$0x73625140]
  %v396 = vld.sshfl [vmem:[#allocation1 + $0x38] sm:$0xff pattern:$0x73625140]
  %445 = vmatpush.bf16.xpose.msra.mxu0 0
  %446 = vmatpush.bf16.xpose.msra.mxu0 0
  %447 = vmatpush.bf16.xpose.msra.mxu0 0
  %448 = vmatpush.bf16.xpose.msra.mxu0 0
  %449 = vmatpush.bf16.xpose.msra.mxu0 0
  %450 = vmatpush.bf16.xpose.msra.mxu0 0
  %451 = vmatpush.bf16.xpose.msra.mxu0 0
  %452 = vmatpush.bf16.xpose.msra.mxu0 %v329
  %453 = vmatmul.bf16.gmra.mxu0 %v228
  %v454 = vpop.f32.mrf.mxu0
  %v455 = vadd.f32 0.0, %v454
  %v456 = vpop.f32.mrf.mxu0
  %v457 = vadd.f32 0.0, %v456
  %458 = vdwg.mxu0
  %459 = vmatpush.bf16.xpose.msra.mxu0 0
  %460 = vmatpush.bf16.xpose.msra.mxu0 0
  %461 = vmatpush.bf16.xpose.msra.mxu0 0
  %462 = vmatpush.bf16.xpose.msra.mxu0 0
  %463 = vmatpush.bf16.xpose.msra.mxu0 0
  %464 = vmatpush.bf16.xpose.msra.mxu0 0
  %465 = vmatpush.bf16.xpose.msra.mxu0 0
  %466 = vmatpush.bf16.xpose.msra.mxu0 %v330
  %467 = vmatmul.bf16.gmra.mxu0 %v229
  %v468 = vpop.f32.mrf.mxu0
  %v469 = vadd.f32 %v455, %v468
  %v470 = vpop.f32.mrf.mxu0
  %v471 = vadd.f32 %v457, %v470
  %472 = vdwg.mxu0
  %473 = vmatpush.bf16.xpose.msra.mxu0 0
  %474 = vmatpush.bf16.xpose.msra.mxu0 0
  %475 = vmatpush.bf16.xpose.msra.mxu0 0
  %476 = vmatpush.bf16.xpose.msra.mxu0 0
  %477 = vmatpush.bf16.xpose.msra.mxu0 0
  %478 = vmatpush.bf16.xpose.msra.mxu0 0
  %479 = vmatpush.bf16.xpose.msra.mxu0 0
  %480 = vmatpush.bf16.xpose.msra.mxu0 %v331
  %481 = vmatmul.bf16.gmra.mxu0 %v230
  %v482 = vpop.f32.mrf.mxu0
  %v483 = vadd.f32 %v469, %v482
  %v484 = vpop.f32.mrf.mxu0
  %v485 = vadd.f32 %v471, %v484
  %486 = vdwg.mxu0
  %487 = vmatpush.bf16.xpose.msra.mxu0 0
  %488 = vmatpush.bf16.xpose.msra.mxu0 0
  %489 = vmatpush.bf16.xpose.msra.mxu0 0
  %490 = vmatpush.bf16.xpose.msra.mxu0 0
  %491 = vmatpush.bf16.xpose.msra.mxu0 0
  %492 = vmatpush.bf16.xpose.msra.mxu0 0
  %493 = vmatpush.bf16.xpose.msra.mxu0 0
  %494 = vmatpush.bf16.xpose.msra.mxu0 %v332
  %495 = vmatmul.bf16.gmra.mxu0 %v231
  %v496 = vpop.f32.mrf.mxu0
  %v497 = vadd.f32 %v483, %v496
  %v498 = vpop.f32.mrf.mxu0
  %v499 = vadd.f32 %v485, %v498
  %500 = vdwg.mxu0
  %501 = vmatpush.bf16.xpose.msra.mxu0 0
  %502 = vmatpush.bf16.xpose.msra.mxu0 0
  %503 = vmatpush.bf16.xpose.msra.mxu0 0
  %504 = vmatpush.bf16.xpose.msra.mxu0 0
  %505 = vmatpush.bf16.xpose.msra.mxu0 0
  %506 = vmatpush.bf16.xpose.msra.mxu0 0
  %507 = vmatpush.bf16.xpose.msra.mxu0 0
  %508 = vmatpush.bf16.xpose.msra.mxu0 %v333
  %509 = vmatmul.bf16.gmra.mxu0 %v232
  %v510 = vpop.f32.mrf.mxu0
  %v511 = vadd.f32 %v497, %v510
  %v512 = vpop.f32.mrf.mxu0
  %v513 = vadd.f32 %v499, %v512
  %514 = vdwg.mxu0
  %515 = vmatpush.bf16.xpose.msra.mxu0 0
  %516 = vmatpush.bf16.xpose.msra.mxu0 0
  %517 = vmatpush.bf16.xpose.msra.mxu0 0
  %518 = vmatpush.bf16.xpose.msra.mxu0 0
  %519 = vmatpush.bf16.xpose.msra.mxu0 0
  %520 = vmatpush.bf16.xpose.msra.mxu0 0
  %521 = vmatpush.bf16.xpose.msra.mxu0 0
  %522 = vmatpush.bf16.xpose.msra.mxu0 %v334
  %523 = vmatmul.bf16.gmra.mxu0 %v233
  %v524 = vpop.f32.mrf.mxu0
  %v525 = vadd.f32 %v511, %v524
  %v526 = vpop.f32.mrf.mxu0
  %v527 = vadd.f32 %v513, %v526
  %528 = vdwg.mxu0
  %529 = vmatpush.bf16.xpose.msra.mxu0 0
  %530 = vmatpush.bf16.xpose.msra.mxu0 0
  %531 = vmatpush.bf16.xpose.msra.mxu0 0
  %532 = vmatpush.bf16.xpose.msra.mxu0 0
  %533 = vmatpush.bf16.xpose.msra.mxu0 0
  %534 = vmatpush.bf16.xpose.msra.mxu0 0
  %535 = vmatpush.bf16.xpose.msra.mxu0 0
  %536 = vmatpush.bf16.xpose.msra.mxu0 %v335
  %537 = vmatmul.bf16.gmra.mxu0 %v234
  %v538 = vpop.f32.mrf.mxu0
  %v539 = vadd.f32 %v525, %v538
  %v540 = vpop.f32.mrf.mxu0
  %v541 = vadd.f32 %v527, %v540
  %542 = vdwg.mxu0
  %543 = vmatpush.bf16.xpose.msra.mxu0 0
  %544 = vmatpush.bf16.xpose.msra.mxu0 0
  %545 = vmatpush.bf16.xpose.msra.mxu0 0
  %546 = vmatpush.bf16.xpose.msra.mxu0 0
  %547 = vmatpush.bf16.xpose.msra.mxu0 0
  %548 = vmatpush.bf16.xpose.msra.mxu0 0
  %549 = vmatpush.bf16.xpose.msra.mxu0 0
  %550 = vmatpush.bf16.xpose.msra.mxu0 %v336
  %551 = vmatmul.bf16.gmra.mxu0 %v235
  %v552 = vpop.f32.mrf.mxu0
  %v553 = vadd.f32 %v539, %v552
  %v554 = vpop.f32.mrf.mxu0
  %v555 = vadd.f32 %v541, %v554
  %556 = vdwg.mxu0
  %557 = vmatpush.bf16.xpose.msra.mxu0 0
  %558 = vmatpush.bf16.xpose.msra.mxu0 0
  %559 = vmatpush.bf16.xpose.msra.mxu0 0
  %560 = vmatpush.bf16.xpose.msra.mxu0 0
  %561 = vmatpush.bf16.xpose.msra.mxu0 0
  %562 = vmatpush.bf16.xpose.msra.mxu0 0
  %563 = vmatpush.bf16.xpose.msra.mxu0 0
  %564 = vmatpush.bf16.xpose.msra.mxu0 %v341
  %565 = vmatmul.bf16.gmra.mxu0 %v236
  %v566 = vpop.f32.mrf.mxu0
  %v567 = vadd.f32 %v553, %v566
  %v568 = vpop.f32.mrf.mxu0
  %v569 = vadd.f32 %v555, %v568
  %570 = vdwg.mxu0
  %571 = vmatpush.bf16.xpose.msra.mxu0 0
  %572 = vmatpush.bf16.xpose.msra.mxu0 0
  %573 = vmatpush.bf16.xpose.msra.mxu0 0
  %574 = vmatpush.bf16.xpose.msra.mxu0 0
  %575 = vmatpush.bf16.xpose.msra.mxu0 0
  %576 = vmatpush.bf16.xpose.msra.mxu0 0
  %577 = vmatpush.bf16.xpose.msra.mxu0 0
  %578 = vmatpush.bf16.xpose.msra.mxu0 %v342
  %579 = vmatmul.bf16.gmra.mxu0 %v237
  %v580 = vpop.f32.mrf.mxu0
  %v581 = vadd.f32 %v567, %v580
  %v582 = vpop.f32.mrf.mxu0
  %v583 = vadd.f32 %v569, %v582
  %584 = vdwg.mxu0
  %585 = vmatpush.bf16.xpose.msra.mxu0 0
  %586 = vmatpush.bf16.xpose.msra.mxu0 0
  %587 = vmatpush.bf16.xpose.msra.mxu0 0
  %588 = vmatpush.bf16.xpose.msra.mxu0 0
  %589 = vmatpush.bf16.xpose.msra.mxu0 0
  %590 = vmatpush.bf16.xpose.msra.mxu0 0
  %591 = vmatpush.bf16.xpose.msra.mxu0 0
  %592 = vmatpush.bf16.xpose.msra.mxu0 %v343
  %593 = vmatmul.bf16.gmra.mxu0 %v238
  %v594 = vpop.f32.mrf.mxu0
  %v595 = vadd.f32 %v581, %v594
  %v596 = vpop.f32.mrf.mxu0
  %v597 = vadd.f32 %v583, %v596
  %598 = vdwg.mxu0
  %599 = vmatpush.bf16.xpose.msra.mxu0 0
  %600 = vmatpush.bf16.xpose.msra.mxu0 0
  %601 = vmatpush.bf16.xpose.msra.mxu0 0
  %602 = vmatpush.bf16.xpose.msra.mxu0 0
  %603 = vmatpush.bf16.xpose.msra.mxu0 0
  %604 = vmatpush.bf16.xpose.msra.mxu0 0
  %605 = vmatpush.bf16.xpose.msra.mxu0 0
  %606 = vmatpush.bf16.xpose.msra.mxu0 %v344
  %607 = vmatmul.bf16.gmra.mxu0 %v239
  %v608 = vpop.f32.mrf.mxu0
  %v609 = vadd.f32 %v595, %v608
  %v610 = vpop.f32.mrf.mxu0
  %v611 = vadd.f32 %v597, %v610
  %612 = vdwg.mxu0
  %613 = vmatpush.bf16.xpose.msra.mxu0 0
  %614 = vmatpush.bf16.xpose.msra.mxu0 0
  %615 = vmatpush.bf16.xpose.msra.mxu0 0
  %616 = vmatpush.bf16.xpose.msra.mxu0 0
  %617 = vmatpush.bf16.xpose.msra.mxu0 0
  %618 = vmatpush.bf16.xpose.msra.mxu0 0
  %619 = vmatpush.bf16.xpose.msra.mxu0 0
  %620 = vmatpush.bf16.xpose.msra.mxu0 %v345
  %621 = vmatmul.bf16.gmra.mxu0 %v240
  %v622 = vpop.f32.mrf.mxu0
  %v623 = vadd.f32 %v609, %v622
  %v624 = vpop.f32.mrf.mxu0
  %v625 = vadd.f32 %v611, %v624
  %626 = vdwg.mxu0
  %627 = vmatpush.bf16.xpose.msra.mxu0 0
  %628 = vmatpush.bf16.xpose.msra.mxu0 0
  %629 = vmatpush.bf16.xpose.msra.mxu0 0
  %630 = vmatpush.bf16.xpose.msra.mxu0 0
  %631 = vmatpush.bf16.xpose.msra.mxu0 0
  %632 = vmatpush.bf16.xpose.msra.mxu0 0
  %633 = vmatpush.bf16.xpose.msra.mxu0 0
  %634 = vmatpush.bf16.xpose.msra.mxu0 %v346
  %635 = vmatmul.bf16.gmra.mxu0 %v241
  %v636 = vpop.f32.mrf.mxu0
  %v637 = vadd.f32 %v623, %v636
  %v638 = vpop.f32.mrf.mxu0
  %v639 = vadd.f32 %v625, %v638
  %640 = vdwg.mxu0
  %641 = vmatpush.bf16.xpose.msra.mxu0 0
  %642 = vmatpush.bf16.xpose.msra.mxu0 0
  %643 = vmatpush.bf16.xpose.msra.mxu0 0
  %644 = vmatpush.bf16.xpose.msra.mxu0 0
  %645 = vmatpush.bf16.xpose.msra.mxu0 0
  %646 = vmatpush.bf16.xpose.msra.mxu0 0
  %647 = vmatpush.bf16.xpose.msra.mxu0 0
  %648 = vmatpush.bf16.xpose.msra.mxu0 %v347
  %649 = vmatmul.bf16.gmra.mxu0 %v242
  %v650 = vpop.f32.mrf.mxu0
  %v651 = vadd.f32 %v637, %v650
  %v652 = vpop.f32.mrf.mxu0
  %v653 = vadd.f32 %v639, %v652
  %654 = vdwg.mxu0
  %655 = vmatpush.bf16.xpose.msra.mxu0 0
  %656 = vmatpush.bf16.xpose.msra.mxu0 0
  %657 = vmatpush.bf16.xpose.msra.mxu0 0
  %658 = vmatpush.bf16.xpose.msra.mxu0 0
  %659 = vmatpush.bf16.xpose.msra.mxu0 0
  %660 = vmatpush.bf16.xpose.msra.mxu0 0
  %661 = vmatpush.bf16.xpose.msra.mxu0 0
  %662 = vmatpush.bf16.xpose.msra.mxu0 %v348
  %663 = vmatmul.bf16.gmra.mxu0 %v243
  %v664 = vpop.f32.mrf.mxu0
  %v665 = vadd.f32 %v651, %v664
  %v666 = vpop.f32.mrf.mxu0
  %v667 = vadd.f32 %v653, %v666
  %668 = vdwg.mxu0
  %669 = vmatpush.bf16.xpose.msra.mxu0 0
  %670 = vmatpush.bf16.xpose.msra.mxu0 0
  %671 = vmatpush.bf16.xpose.msra.mxu0 0
  %672 = vmatpush.bf16.xpose.msra.mxu0 0
  %673 = vmatpush.bf16.xpose.msra.mxu0 0
  %674 = vmatpush.bf16.xpose.msra.mxu0 0
  %675 = vmatpush.bf16.xpose.msra.mxu0 0
  %676 = vmatpush.bf16.xpose.msra.mxu0 %v353
  %677 = vmatmul.bf16.gmra.mxu0 %v244
  %v678 = vpop.f32.mrf.mxu0
  %v679 = vadd.f32 %v665, %v678
  %v680 = vpop.f32.mrf.mxu0
  %v681 = vadd.f32 %v667, %v680
  %682 = vdwg.mxu0
  %683 = vmatpush.bf16.xpose.msra.mxu0 0
  %684 = vmatpush.bf16.xpose.msra.mxu0 0
  %685 = vmatpush.bf16.xpose.msra.mxu0 0
  %686 = vmatpush.bf16.xpose.msra.mxu0 0
  %687 = vmatpush.bf16.xpose.msra.mxu0 0
  %688 = vmatpush.bf16.xpose.msra.mxu0 0
  %689 = vmatpush.bf16.xpose.msra.mxu0 0
  %690 = vmatpush.bf16.xpose.msra.mxu0 %v354
  %691 = vmatmul.bf16.gmra.mxu0 %v245
  %v692 = vpop.f32.mrf.mxu0
  %v693 = vadd.f32 %v679, %v692
  %v694 = vpop.f32.mrf.mxu0
  %v695 = vadd.f32 %v681, %v694
  %696 = vdwg.mxu0
  %697 = vmatpush.bf16.xpose.msra.mxu0 0
  %698 = vmatpush.bf16.xpose.msra.mxu0 0
  %699 = vmatpush.bf16.xpose.msra.mxu0 0
  %700 = vmatpush.bf16.xpose.msra.mxu0 0
  %701 = vmatpush.bf16.xpose.msra.mxu0 0
  %702 = vmatpush.bf16.xpose.msra.mxu0 0
  %703 = vmatpush.bf16.xpose.msra.mxu0 0
  %704 = vmatpush.bf16.xpose.msra.mxu0 %v355
  %705 = vmatmul.bf16.gmra.mxu0 %v246
  %v706 = vpop.f32.mrf.mxu0
  %v707 = vadd.f32 %v693, %v706
  %v708 = vpop.f32.mrf.mxu0
  %v709 = vadd.f32 %v695, %v708
  %710 = vdwg.mxu0
  %711 = vmatpush.bf16.xpose.msra.mxu0 0
  %712 = vmatpush.bf16.xpose.msra.mxu0 0
  %713 = vmatpush.bf16.xpose.msra.mxu0 0
  %714 = vmatpush.bf16.xpose.msra.mxu0 0
  %715 = vmatpush.bf16.xpose.msra.mxu0 0
  %716 = vmatpush.bf16.xpose.msra.mxu0 0
  %717 = vmatpush.bf16.xpose.msra.mxu0 0
  %718 = vmatpush.bf16.xpose.msra.mxu0 %v356
  %719 = vmatmul.bf16.gmra.mxu0 %v247
  %v720 = vpop.f32.mrf.mxu0
  %v721 = vadd.f32 %v707, %v720
  %v722 = vpop.f32.mrf.mxu0
  %v723 = vadd.f32 %v709, %v722
  %724 = vdwg.mxu0
  %725 = vmatpush.bf16.xpose.msra.mxu0 0
  %726 = vmatpush.bf16.xpose.msra.mxu0 0
  %727 = vmatpush.bf16.xpose.msra.mxu0 0
  %728 = vmatpush.bf16.xpose.msra.mxu0 0
  %729 = vmatpush.bf16.xpose.msra.mxu0 0
  %730 = vmatpush.bf16.xpose.msra.mxu0 0
  %731 = vmatpush.bf16.xpose.msra.mxu0 0
  %732 = vmatpush.bf16.xpose.msra.mxu0 %v357
  %733 = vmatmul.bf16.gmra.mxu0 %v248
  %v734 = vpop.f32.mrf.mxu0
  %v735 = vadd.f32 %v721, %v734
  %v736 = vpop.f32.mrf.mxu0
  %v737 = vadd.f32 %v723, %v736
  %738 = vdwg.mxu0
  %739 = vmatpush.bf16.xpose.msra.mxu0 0
  %740 = vmatpush.bf16.xpose.msra.mxu0 0
  %741 = vmatpush.bf16.xpose.msra.mxu0 0
  %742 = vmatpush.bf16.xpose.msra.mxu0 0
  %743 = vmatpush.bf16.xpose.msra.mxu0 0
  %744 = vmatpush.bf16.xpose.msra.mxu0 0
  %745 = vmatpush.bf16.xpose.msra.mxu0 0
  %746 = vmatpush.bf16.xpose.msra.mxu0 %v358
  %747 = vmatmul.bf16.gmra.mxu0 %v249
  %v748 = vpop.f32.mrf.mxu0
  %v749 = vadd.f32 %v735, %v748
  %v750 = vpop.f32.mrf.mxu0
  %v751 = vadd.f32 %v737, %v750
  %752 = vdwg.mxu0
  %753 = vmatpush.bf16.xpose.msra.mxu0 0
  %754 = vmatpush.bf16.xpose.msra.mxu0 0
  %755 = vmatpush.bf16.xpose.msra.mxu0 0
  %756 = vmatpush.bf16.xpose.msra.mxu0 0
  %757 = vmatpush.bf16.xpose.msra.mxu0 0
  %758 = vmatpush.bf16.xpose.msra.mxu0 0
  %759 = vmatpush.bf16.xpose.msra.mxu0 0
  %760 = vmatpush.bf16.xpose.msra.mxu0 %v359
  %761 = vmatmul.bf16.gmra.mxu0 %v250
  %v762 = vpop.f32.mrf.mxu0
  %v763 = vadd.f32 %v749, %v762
  %v764 = vpop.f32.mrf.mxu0
  %v765 = vadd.f32 %v751, %v764
  %766 = vdwg.mxu0
  %767 = vmatpush.bf16.xpose.msra.mxu0 0
  %768 = vmatpush.bf16.xpose.msra.mxu0 0
  %769 = vmatpush.bf16.xpose.msra.mxu0 0
  %770 = vmatpush.bf16.xpose.msra.mxu0 0
  %771 = vmatpush.bf16.xpose.msra.mxu0 0
  %772 = vmatpush.bf16.xpose.msra.mxu0 0
  %773 = vmatpush.bf16.xpose.msra.mxu0 0
  %774 = vmatpush.bf16.xpose.msra.mxu0 %v360
  %775 = vmatmul.bf16.gmra.mxu0 %v251
  %v776 = vpop.f32.mrf.mxu0
  %v777 = vadd.f32 %v763, %v776
  %v778 = vpop.f32.mrf.mxu0
  %v779 = vadd.f32 %v765, %v778
  %780 = vdwg.mxu0
  %781 = vmatpush.bf16.xpose.msra.mxu0 0
  %782 = vmatpush.bf16.xpose.msra.mxu0 0
  %783 = vmatpush.bf16.xpose.msra.mxu0 0
  %784 = vmatpush.bf16.xpose.msra.mxu0 0
  %785 = vmatpush.bf16.xpose.msra.mxu0 0
  %786 = vmatpush.bf16.xpose.msra.mxu0 0
  %787 = vmatpush.bf16.xpose.msra.mxu0 0
  %788 = vmatpush.bf16.xpose.msra.mxu0 %v365
  %789 = vmatmul.bf16.gmra.mxu0 %v252
  %v790 = vpop.f32.mrf.mxu0
  %v791 = vadd.f32 %v777, %v790
  %v792 = vpop.f32.mrf.mxu0
  %v793 = vadd.f32 %v779, %v792
  %794 = vdwg.mxu0
  %795 = vmatpush.bf16.xpose.msra.mxu0 0
  %796 = vmatpush.bf16.xpose.msra.mxu0 0
  %797 = vmatpush.bf16.xpose.msra.mxu0 0
  %798 = vmatpush.bf16.xpose.msra.mxu0 0
  %799 = vmatpush.bf16.xpose.msra.mxu0 0
  %800 = vmatpush.bf16.xpose.msra.mxu0 0
  %801 = vmatpush.bf16.xpose.msra.mxu0 0
  %802 = vmatpush.bf16.xpose.msra.mxu0 %v366
  %803 = vmatmul.bf16.gmra.mxu0 %v253
  %v804 = vpop.f32.mrf.mxu0
  %v805 = vadd.f32 %v791, %v804
  %v806 = vpop.f32.mrf.mxu0
  %v807 = vadd.f32 %v793, %v806
  %808 = vdwg.mxu0
  %809 = vmatpush.bf16.xpose.msra.mxu0 0
  %810 = vmatpush.bf16.xpose.msra.mxu0 0
  %811 = vmatpush.bf16.xpose.msra.mxu0 0
  %812 = vmatpush.bf16.xpose.msra.mxu0 0
  %813 = vmatpush.bf16.xpose.msra.mxu0 0
  %814 = vmatpush.bf16.xpose.msra.mxu0 0
  %815 = vmatpush.bf16.xpose.msra.mxu0 0
  %816 = vmatpush.bf16.xpose.msra.mxu0 %v367
  %817 = vmatmul.bf16.gmra.mxu0 %v254
  %v818 = vpop.f32.mrf.mxu0
  %v819 = vadd.f32 %v805, %v818
  %v820 = vpop.f32.mrf.mxu0
  %v821 = vadd.f32 %v807, %v820
  %822 = vdwg.mxu0
  %823 = vmatpush.bf16.xpose.msra.mxu0 0
  %824 = vmatpush.bf16.xpose.msra.mxu0 0
  %825 = vmatpush.bf16.xpose.msra.mxu0 0
  %826 = vmatpush.bf16.xpose.msra.mxu0 0
  %827 = vmatpush.bf16.xpose.msra.mxu0 0
  %828 = vmatpush.bf16.xpose.msra.mxu0 0
  %829 = vmatpush.bf16.xpose.msra.mxu0 0
  %830 = vmatpush.bf16.xpose.msra.mxu0 %v368
  %831 = vmatmul.bf16.gmra.mxu0 %v255
  %v832 = vpop.f32.mrf.mxu0
  %v833 = vadd.f32 %v819, %v832
  %v834 = vpop.f32.mrf.mxu0
  %v835 = vadd.f32 %v821, %v834
  %836 = vdwg.mxu0
  %837 = vmatpush.bf16.xpose.msra.mxu0 0
  %838 = vmatpush.bf16.xpose.msra.mxu0 0
  %839 = vmatpush.bf16.xpose.msra.mxu0 0
  %840 = vmatpush.bf16.xpose.msra.mxu0 0
  %841 = vmatpush.bf16.xpose.msra.mxu0 0
  %842 = vmatpush.bf16.xpose.msra.mxu0 0
  %843 = vmatpush.bf16.xpose.msra.mxu0 0
  %844 = vmatpush.bf16.xpose.msra.mxu0 %v369
  %845 = vmatmul.bf16.gmra.mxu0 %v256
  %v846 = vpop.f32.mrf.mxu0
  %v847 = vadd.f32 %v833, %v846
  %v848 = vpop.f32.mrf.mxu0
  %v849 = vadd.f32 %v835, %v848
  %850 = vdwg.mxu0
  %851 = vmatpush.bf16.xpose.msra.mxu0 0
  %852 = vmatpush.bf16.xpose.msra.mxu0 0
  %853 = vmatpush.bf16.xpose.msra.mxu0 0
  %854 = vmatpush.bf16.xpose.msra.mxu0 0
  %855 = vmatpush.bf16.xpose.msra.mxu0 0
  %856 = vmatpush.bf16.xpose.msra.mxu0 0
  %857 = vmatpush.bf16.xpose.msra.mxu0 0
  %858 = vmatpush.bf16.xpose.msra.mxu0 %v370
  %859 = vmatmul.bf16.gmra.mxu0 %v257
  %v860 = vpop.f32.mrf.mxu0
  %v861 = vadd.f32 %v847, %v860
  %v862 = vpop.f32.mrf.mxu0
  %v863 = vadd.f32 %v849, %v862
  %864 = vdwg.mxu0
  %865 = vmatpush.bf16.xpose.msra.mxu0 0
  %866 = vmatpush.bf16.xpose.msra.mxu0 0
  %867 = vmatpush.bf16.xpose.msra.mxu0 0
  %868 = vmatpush.bf16.xpose.msra.mxu0 0
  %869 = vmatpush.bf16.xpose.msra.mxu0 0
  %870 = vmatpush.bf16.xpose.msra.mxu0 0
  %871 = vmatpush.bf16.xpose.msra.mxu0 0
  %872 = vmatpush.bf16.xpose.msra.mxu0 %v371
  %873 = vmatmul.bf16.gmra.mxu0 %v258
  %v874 = vpop.f32.mrf.mxu0
  %v875 = vadd.f32 %v861, %v874
  %v876 = vpop.f32.mrf.mxu0
  %v877 = vadd.f32 %v863, %v876
  %878 = vdwg.mxu0
  %879 = vmatpush.bf16.xpose.msra.mxu0 0
  %880 = vmatpush.bf16.xpose.msra.mxu0 0
  %881 = vmatpush.bf16.xpose.msra.mxu0 0
  %882 = vmatpush.bf16.xpose.msra.mxu0 0
  %883 = vmatpush.bf16.xpose.msra.mxu0 0
  %884 = vmatpush.bf16.xpose.msra.mxu0 0
  %885 = vmatpush.bf16.xpose.msra.mxu0 0
  %886 = vmatpush.bf16.xpose.msra.mxu0 %v372
  %887 = vmatmul.bf16.gmra.mxu0 %v259
  %v888 = vpop.f32.mrf.mxu0
  %v889 = vadd.f32 %v875, %v888
  %v890 = vpop.f32.mrf.mxu0
  %v891 = vadd.f32 %v877, %v890
  %892 = vdwg.mxu0
  %893 = vmatpush.bf16.xpose.msra.mxu0 0
  %894 = vmatpush.bf16.xpose.msra.mxu0 0
  %895 = vmatpush.bf16.xpose.msra.mxu0 0
  %896 = vmatpush.bf16.xpose.msra.mxu0 0
  %897 = vmatpush.bf16.xpose.msra.mxu0 0
  %898 = vmatpush.bf16.xpose.msra.mxu0 0
  %899 = vmatpush.bf16.xpose.msra.mxu0 0
  %900 = vmatpush.bf16.xpose.msra.mxu0 %v377
  %901 = vmatmul.bf16.gmra.mxu0 %v260
  %v902 = vpop.f32.mrf.mxu0
  %v903 = vadd.f32 %v889, %v902
  %v904 = vpop.f32.mrf.mxu0
  %v905 = vadd.f32 %v891, %v904
  %906 = vdwg.mxu0
  %907 = vmatpush.bf16.xpose.msra.mxu0 0
  %908 = vmatpush.bf16.xpose.msra.mxu0 0
  %909 = vmatpush.bf16.xpose.msra.mxu0 0
  %910 = vmatpush.bf16.xpose.msra.mxu0 0
  %911 = vmatpush.bf16.xpose.msra.mxu0 0
  %912 = vmatpush.bf16.xpose.msra.mxu0 0
  %913 = vmatpush.bf16.xpose.msra.mxu0 0
  %914 = vmatpush.bf16.xpose.msra.mxu0 %v378
  %915 = vmatmul.bf16.gmra.mxu0 %v261
  %v916 = vpop.f32.mrf.mxu0
  %v917 = vadd.f32 %v903, %v916
  %v918 = vpop.f32.mrf.mxu0
  %v919 = vadd.f32 %v905, %v918
  %920 = vdwg.mxu0
  %921 = vmatpush.bf16.xpose.msra.mxu0 0
  %922 = vmatpush.bf16.xpose.msra.mxu0 0
  %923 = vmatpush.bf16.xpose.msra.mxu0 0
  %924 = vmatpush.bf16.xpose.msra.mxu0 0
  %925 = vmatpush.bf16.xpose.msra.mxu0 0
  %926 = vmatpush.bf16.xpose.msra.mxu0 0
  %927 = vmatpush.bf16.xpose.msra.mxu0 0
  %928 = vmatpush.bf16.xpose.msra.mxu0 %v379
  %929 = vmatmul.bf16.gmra.mxu0 %v262
  %v930 = vpop.f32.mrf.mxu0
  %v931 = vadd.f32 %v917, %v930
  %v932 = vpop.f32.mrf.mxu0
  %v933 = vadd.f32 %v919, %v932
  %934 = vdwg.mxu0
  %935 = vmatpush.bf16.xpose.msra.mxu0 0
  %936 = vmatpush.bf16.xpose.msra.mxu0 0
  %937 = vmatpush.bf16.xpose.msra.mxu0 0
  %938 = vmatpush.bf16.xpose.msra.mxu0 0
  %939 = vmatpush.bf16.xpose.msra.mxu0 0
  %940 = vmatpush.bf16.xpose.msra.mxu0 0
  %941 = vmatpush.bf16.xpose.msra.mxu0 0
  %942 = vmatpush.bf16.xpose.msra.mxu0 %v380
  %943 = vmatmul.bf16.gmra.mxu0 %v263
  %v944 = vpop.f32.mrf.mxu0
  %v945 = vadd.f32 %v931, %v944
  %v946 = vpop.f32.mrf.mxu0
  %v947 = vadd.f32 %v933, %v946
  %948 = vdwg.mxu0
  %949 = vmatpush.bf16.xpose.msra.mxu0 0
  %950 = vmatpush.bf16.xpose.msra.mxu0 0
  %951 = vmatpush.bf16.xpose.msra.mxu0 0
  %952 = vmatpush.bf16.xpose.msra.mxu0 0
  %953 = vmatpush.bf16.xpose.msra.mxu0 0
  %954 = vmatpush.bf16.xpose.msra.mxu0 0
  %955 = vmatpush.bf16.xpose.msra.mxu0 0
  %956 = vmatpush.bf16.xpose.msra.mxu0 %v381
  %957 = vmatmul.bf16.gmra.mxu0 %v264
  %v958 = vpop.f32.mrf.mxu0
  %v959 = vadd.f32 %v945, %v958
  %v960 = vpop.f32.mrf.mxu0
  %v961 = vadd.f32 %v947, %v960
  %962 = vdwg.mxu0
  %963 = vmatpush.bf16.xpose.msra.mxu0 0
  %964 = vmatpush.bf16.xpose.msra.mxu0 0
  %965 = vmatpush.bf16.xpose.msra.mxu0 0
  %966 = vmatpush.bf16.xpose.msra.mxu0 0
  %967 = vmatpush.bf16.xpose.msra.mxu0 0
  %968 = vmatpush.bf16.xpose.msra.mxu0 0
  %969 = vmatpush.bf16.xpose.msra.mxu0 0
  %970 = vmatpush.bf16.xpose.msra.mxu0 %v382
  %971 = vmatmul.bf16.gmra.mxu0 %v265
  %v972 = vpop.f32.mrf.mxu0
  %v973 = vadd.f32 %v959, %v972
  %v974 = vpop.f32.mrf.mxu0
  %v975 = vadd.f32 %v961, %v974
  %976 = vdwg.mxu0
  %977 = vmatpush.bf16.xpose.msra.mxu0 0
  %978 = vmatpush.bf16.xpose.msra.mxu0 0
  %979 = vmatpush.bf16.xpose.msra.mxu0 0
  %980 = vmatpush.bf16.xpose.msra.mxu0 0
  %981 = vmatpush.bf16.xpose.msra.mxu0 0
  %982 = vmatpush.bf16.xpose.msra.mxu0 0
  %983 = vmatpush.bf16.xpose.msra.mxu0 0
  %984 = vmatpush.bf16.xpose.msra.mxu0 %v383
  %985 = vmatmul.bf16.gmra.mxu0 %v266
  %v986 = vpop.f32.mrf.mxu0
  %v987 = vadd.f32 %v973, %v986
  %v988 = vpop.f32.mrf.mxu0
  %v989 = vadd.f32 %v975, %v988
  %990 = vdwg.mxu0
  %991 = vmatpush.bf16.xpose.msra.mxu0 0
  %992 = vmatpush.bf16.xpose.msra.mxu0 0
  %993 = vmatpush.bf16.xpose.msra.mxu0 0
  %994 = vmatpush.bf16.xpose.msra.mxu0 0
  %995 = vmatpush.bf16.xpose.msra.mxu0 0
  %996 = vmatpush.bf16.xpose.msra.mxu0 0
  %997 = vmatpush.bf16.xpose.msra.mxu0 0
  %998 = vmatpush.bf16.xpose.msra.mxu0 %v384
  %999 = vmatmul.bf16.gmra.mxu0 %v267
  %v1000 = vpop.f32.mrf.mxu0
  %v1001 = vadd.f32 %v987, %v1000
  %v1002 = vpop.f32.mrf.mxu0
  %v1003 = vadd.f32 %v989, %v1002
  %1004 = vdwg.mxu0
  %1005 = vmatpush.bf16.xpose.msra.mxu0 0
  %1006 = vmatpush.bf16.xpose.msra.mxu0 0
  %1007 = vmatpush.bf16.xpose.msra.mxu0 0
  %1008 = vmatpush.bf16.xpose.msra.mxu0 0
  %1009 = vmatpush.bf16.xpose.msra.mxu0 0
  %1010 = vmatpush.bf16.xpose.msra.mxu0 0
  %1011 = vmatpush.bf16.xpose.msra.mxu0 0
  %1012 = vmatpush.bf16.xpose.msra.mxu0 %v389
  %1013 = vmatmul.bf16.gmra.mxu0 %v268
  %v1014 = vpop.f32.mrf.mxu0
  %v1015 = vadd.f32 %v1001, %v1014
  %v1016 = vpop.f32.mrf.mxu0
  %v1017 = vadd.f32 %v1003, %v1016
  %1018 = vdwg.mxu0
  %1019 = vmatpush.bf16.xpose.msra.mxu0 0
  %1020 = vmatpush.bf16.xpose.msra.mxu0 0
  %1021 = vmatpush.bf16.xpose.msra.mxu0 0
  %1022 = vmatpush.bf16.xpose.msra.mxu0 0
  %1023 = vmatpush.bf16.xpose.msra.mxu0 0
  %1024 = vmatpush.bf16.xpose.msra.mxu0 0
  %1025 = vmatpush.bf16.xpose.msra.mxu0 0
  %1026 = vmatpush.bf16.xpose.msra.mxu0 %v390
  %1027 = vmatmul.bf16.gmra.mxu0 %v269
  %v1028 = vpop.f32.mrf.mxu0
  %v1029 = vadd.f32 %v1015, %v1028
  %v1030 = vpop.f32.mrf.mxu0
  %v1031 = vadd.f32 %v1017, %v1030
  %1032 = vdwg.mxu0
  %1033 = vmatpush.bf16.xpose.msra.mxu0 0
  %1034 = vmatpush.bf16.xpose.msra.mxu0 0
  %1035 = vmatpush.bf16.xpose.msra.mxu0 0
  %1036 = vmatpush.bf16.xpose.msra.mxu0 0
  %1037 = vmatpush.bf16.xpose.msra.mxu0 0
  %1038 = vmatpush.bf16.xpose.msra.mxu0 0
  %1039 = vmatpush.bf16.xpose.msra.mxu0 0
  %1040 = vmatpush.bf16.xpose.msra.mxu0 %v391
  %1041 = vmatmul.bf16.gmra.mxu0 %v270
  %v1042 = vpop.f32.mrf.mxu0
  %v1043 = vadd.f32 %v1029, %v1042
  %v1044 = vpop.f32.mrf.mxu0
  %v1045 = vadd.f32 %v1031, %v1044
  %1046 = vdwg.mxu0
  %1047 = vmatpush.bf16.xpose.msra.mxu0 0
  %1048 = vmatpush.bf16.xpose.msra.mxu0 0
  %1049 = vmatpush.bf16.xpose.msra.mxu0 0
  %1050 = vmatpush.bf16.xpose.msra.mxu0 0
  %1051 = vmatpush.bf16.xpose.msra.mxu0 0
  %1052 = vmatpush.bf16.xpose.msra.mxu0 0
  %1053 = vmatpush.bf16.xpose.msra.mxu0 0
  %1054 = vmatpush.bf16.xpose.msra.mxu0 %v392
  %1055 = vmatmul.bf16.gmra.mxu0 %v271
  %v1056 = vpop.f32.mrf.mxu0
  %v1057 = vadd.f32 %v1043, %v1056
  %v1058 = vpop.f32.mrf.mxu0
  %v1059 = vadd.f32 %v1045, %v1058
  %1060 = vdwg.mxu0
  %1061 = vmatpush.bf16.xpose.msra.mxu0 0
  %1062 = vmatpush.bf16.xpose.msra.mxu0 0
  %1063 = vmatpush.bf16.xpose.msra.mxu0 0
  %1064 = vmatpush.bf16.xpose.msra.mxu0 0
  %1065 = vmatpush.bf16.xpose.msra.mxu0 0
  %1066 = vmatpush.bf16.xpose.msra.mxu0 0
  %1067 = vmatpush.bf16.xpose.msra.mxu0 0
  %1068 = vmatpush.bf16.xpose.msra.mxu0 %v393
  %1069 = vmatmul.bf16.gmra.mxu0 %v272
  %v1070 = vpop.f32.mrf.mxu0
  %v1071 = vadd.f32 %v1057, %v1070
  %v1072 = vpop.f32.mrf.mxu0
  %v1073 = vadd.f32 %v1059, %v1072
  %1074 = vdwg.mxu0
  %1075 = vmatpush.bf16.xpose.msra.mxu0 0
  %1076 = vmatpush.bf16.xpose.msra.mxu0 0
  %1077 = vmatpush.bf16.xpose.msra.mxu0 0
  %1078 = vmatpush.bf16.xpose.msra.mxu0 0
  %1079 = vmatpush.bf16.xpose.msra.mxu0 0
  %1080 = vmatpush.bf16.xpose.msra.mxu0 0
  %1081 = vmatpush.bf16.xpose.msra.mxu0 0
  %1082 = vmatpush.bf16.xpose.msra.mxu0 %v394
  %1083 = vmatmul.bf16.gmra.mxu0 %v273
  %v1084 = vpop.f32.mrf.mxu0
  %v1085 = vadd.f32 %v1071, %v1084
  %v1086 = vpop.f32.mrf.mxu0
  %v1087 = vadd.f32 %v1073, %v1086
  %1088 = vdwg.mxu0
  %1089 = vmatpush.bf16.xpose.msra.mxu0 0
  %1090 = vmatpush.bf16.xpose.msra.mxu0 0
  %1091 = vmatpush.bf16.xpose.msra.mxu0 0
  %1092 = vmatpush.bf16.xpose.msra.mxu0 0
  %1093 = vmatpush.bf16.xpose.msra.mxu0 0
  %1094 = vmatpush.bf16.xpose.msra.mxu0 0
  %1095 = vmatpush.bf16.xpose.msra.mxu0 0
  %1096 = vmatpush.bf16.xpose.msra.mxu0 %v395
  %1097 = vmatmul.bf16.gmra.mxu0 %v274
  %v1098 = vpop.f32.mrf.mxu0
  %v1099 = vadd.f32 %v1085, %v1098
  %v1100 = vpop.f32.mrf.mxu0
  %v1101 = vadd.f32 %v1087, %v1100
  %1102 = vdwg.mxu0
  %1103 = vmatpush.bf16.xpose.msra.mxu0 0
  %1104 = vmatpush.bf16.xpose.msra.mxu0 0
  %1105 = vmatpush.bf16.xpose.msra.mxu0 0
  %1106 = vmatpush.bf16.xpose.msra.mxu0 0
  %1107 = vmatpush.bf16.xpose.msra.mxu0 0
  %1108 = vmatpush.bf16.xpose.msra.mxu0 0
  %1109 = vmatpush.bf16.xpose.msra.mxu0 0
  %1110 = vmatpush.bf16.xpose.msra.mxu0 %v396
  %1111 = vmatmul.bf16.gmra.mxu0 %v275
  %v1112 = vpop.f32.mrf.mxu0
  %v1113 = vadd.f32 %v1099, %v1112
  %v1114 = vpop.f32.mrf.mxu0
  %v1115 = vadd.f32 %v1101, %v1114
  %1116 = vdwg.mxu0
  %v1117 = vadd.f32 %v82, %v1113
  %v1118 = vadd.f32 %v83, %v1115
  %vm1119 = vcmask 23552
  %1120 = vst.msk [vmem:[#allocation2] sm:$0xff] %vm1119, %v1117
  %1121 = vst.msk [vmem:[#allocation2 + $0x8] sm:$0xff] %vm1119, %v1118
  // Predicated region
  $region18: #{lc_block_forward.3} parent=0 // pred_check
    %p1122 = pneg %p15
  $region19: #{lc_block_forward.3} parent=0 // pred_check_branch
    %1124 = sbr.rel (%p1122) target = $region21
  $region20: #{lc_block_forward.3} parent=0 // pred_region
    %v1125 = vld [vmem:[#allocation2] sm:$0xff]
    %v1126 = vld [vmem:[#allocation2 + $0x8] sm:$0xff]
    %v1127 = vld [vmem:[%s2] sm:$0x1]
    %v1129 = vperm.slane %v1127, 0
    %v1131 = vadd.f32 %v1125, %v1129
    %v1132 = vadd.f32 %v1126, %v1129
    %v1133 = vsel %vm1119, %v1131, -inf
    %1134 = vmax.xlane.f32.xlu0 %v1133
    %v1135 = vpop.xlane.xlu0 %1134
    %v1136 = vsel %vm1119, %v1132, -inf
    %1137 = vmax.xlane.f32.xlu0 %v1136
    %v1138 = vpop.xlane.xlu0 %1137
    %v1139 = vsub.f32 %v1131, %v1135
    %v1140 = vsub.f32 %v1132, %v1138
    %v1141 = vmul.f32 %v1139, 1.442695
    %v1142 = vpow.pop %v1141
    %v1143 = vmul.f32 %v1140, 1.442695
    %v1144 = vpow.pop %v1143
    %v1145 = vsel %vm1119, %v1142, 0.0
    %1146 = vadd.xlane.f32.xlu0 %v1145
    %v1147 = vpop.xlane.xlu0 %1146
    %v1148 = vsel %vm1119, %v1144, 0.0
    %1149 = vadd.xlane.f32.xlu0 %v1148
    %v1150 = vpop.xlane.xlu0 %1149
    %v1151 = vlog2.pop %v1147
    %v1152 = vmul.f32 %v1151, 0.6931472
    %v1153 = vlog2.pop %v1150
    %v1154 = vmul.f32 %v1153, 0.6931472
    %v1155 = vsub.f32 %v1139, %v1152
    %v1156 = vsub.f32 %v1140, %v1154
    %1157 = vst.msk [vmem:[%s3] sm:$0xff] %vm1119, %v1155
    %1158 = vst.msk [vmem:[%s3 + $0x8] sm:$0xff] %vm1119, %v1156
  $region21: #{lc_block_forward.3} parent=0 // pred_fallthru
    _
  // Predicated region
  $region22: #{lc_block_forward.3} parent=0 // pred_check
    _
  $region23: #{lc_block_forward.3} parent=0 // pred_check_branch
    %1160 = sbr.rel (0) target = $region25
  $region24: #{lc_block_forward.3} parent=0 // pred_region
    _
  $region25: #{lc_block_forward.3} parent=0 // pred_fallthru
    _
  // Predicated region
  $region26: #{lc_block_forward.3} parent=0 // pred_check
    _
  $region27: #{lc_block_forward.3} parent=0 // pred_check_branch
    %1162 = sbr.rel (0) target = $region29
  $region28: #{lc_block_forward.3} parent=0 // pred_region
    _
  $region29: #{lc_block_forward.3} parent=0 // pred_fallthru
    _

// kernel: lc_block_forward.2
$region0: #{lc_block_forward.2}
  #allocation0 [shape = 'u32[]', space=smem, size = 0x4, offset = 0x4, fixed_abs, tag = 'smem constant byte address 0x4 - core index']
  #allocation1 [shape = 'u32[72,128]{1,0:T(1,128)}', space=vmem, size = 0x9000, scoped, tag = 'internal scratch']
  %s0 = inlined_call_operand.vmem [shape: f32[32,50,4], index: 0, kind: input, shape index: {}]
  %s1 = inlined_call_operand.vmem [shape: f32[12,192], index: 1, kind: input, shape index: {}]
  %s2 = inlined_call_operand.vmem [shape: f32[1,192], index: 2, kind: input, shape index: {}]
  %s3 = inlined_call_operand.vmem [shape: f32[32,48,64], index: 3, kind: output, shape index: {}]
  %s4 = sld [smem:[#allocation0]]
  $region45: #{lc_block_forward.2} parent=0
    _
  %s6 = ssub.s32 1, %s4
  %s7 = scalar_select 0, %s6, %s4
  loop: start=0, step=1, limit=4
  $region2: #{lc_block_forward.2} parent=0 // loop_pre_header
    _
  $region3: #{lc_block_forward.2} parent=0 // loop_header
    %s9 = sphi 0, %s13
    %p10 = scmp.ge.s32.totalorder %s9, 4
    %s19 = sphi 0, %s21
    %s22 = sphi 0, %s19
    %s23 = sphi 0, %s22
    %s39 = sphi 0, %s23
    %s43 = sphi 0, %s43
    %s45 = sphi 0, %s43
    %s46 = sphi 0, %s45
    %s60 = sphi 0, %s46
    %s64 = sphi 0, %s64
    %s66 = sphi 0, %s64
    %s67 = sphi 0, %s66
    %s81 = sphi 0, %s67
    %s87 = sphi 0, %s89
    %s90 = sphi 0, %s87
    %s91 = sphi 0, %s90
    %s107 = sphi 0, %s91
  $region4: #{lc_block_forward.2} parent=0 // loop_header_branch
    %12 = sbr.rel (%p10) target = $region8
  $region5: #{lc_block_forward.2} parent=0 // loop_body
    %s14 = ssub.s32 %s9, 1
    %s15 = ssub.s32 %s9, 2
    %s16 = sadd.s32 %s9, 1
    %s17 = ssub.s32 %s9, %s16
    %p18 = scmp.eq.s32.totalorder %s17, 0
    %s20 = sadd.s32 %s19, 1
    %s21 = scalar_select %p18, %s19, %s20
    %p24 = pneg %p18
    %p25 = scmp.eq.s32.totalorder %s9, 1
    %p26 = por %p24, %p25
    %p27 = scmp.ne.s32.totalorder %s19, %s22
    %p28 = scmp.eq.s32.totalorder %s9, 0
    %p29 = por %p27, %p28
    %p30 = scmp.ne.s32.totalorder %s19, %s22
    %p31 = scmp.eq.s32.totalorder %s14, 1
    %p32 = por %p30, %p31
    %p33 = scmp.ne.s32.totalorder %s22, %s23
    %p34 = scmp.eq.s32.totalorder %s14, 0
    %p35 = por %p33, %p34
    %p36 = scmp.ne.s32.totalorder %s22, %s23
    %p37 = scmp.eq.s32.totalorder %s15, 1
    %p38 = por %p36, %p37
    %p40 = scmp.ne.s32.totalorder %s23, %s39
    %p41 = scmp.eq.s32.totalorder %s15, 0
    %p42 = por %p40, %p41
    %s44 = sadd.s32 %s43, 1
    %p47 = scmp.eq.s32.totalorder %s9, 1
    %p48 = scmp.ne.s32.totalorder %s43, %s45
    %p49 = scmp.eq.s32.totalorder %s9, 0
    %p50 = por %p48, %p49
    %p51 = scmp.ne.s32.totalorder %s43, %s45
    %p52 = scmp.eq.s32.totalorder %s14, 1
    %p53 = por %p51, %p52
    %p54 = scmp.ne.s32.totalorder %s45, %s46
    %p55 = scmp.eq.s32.totalorder %s14, 0
    %p56 = por %p54, %p55
    %p57 = scmp.ne.s32.totalorder %s45, %s46
    %p58 = scmp.eq.s32.totalorder %s15, 1
    %p59 = por %p57, %p58
    %p61 = scmp.ne.s32.totalorder %s46, %s60
    %p62 = scmp.eq.s32.totalorder %s15, 0
    %p63 = por %p61, %p62
    %s65 = sadd.s32 %s64, 1
    %p68 = scmp.eq.s32.totalorder %s9, 1
    %p69 = scmp.ne.s32.totalorder %s64, %s66
    %p70 = scmp.eq.s32.totalorder %s9, 0
    %p71 = por %p69, %p70
    %p72 = scmp.ne.s32.totalorder %s64, %s66
    %p73 = scmp.eq.s32.totalorder %s14, 1
    %p74 = por %p72, %p73
    %p75 = scmp.ne.s32.totalorder %s66, %s67
    %p76 = scmp.eq.s32.totalorder %s14, 0
    %p77 = por %p75, %p76
    %p78 = scmp.ne.s32.totalorder %s66, %s67
    %p79 = scmp.eq.s32.totalorder %s15, 1
    %p80 = por %p78, %p79
    %p82 = scmp.ne.s32.totalorder %s67, %s81
    %p83 = scmp.eq.s32.totalorder %s15, 0
    %p84 = por %p82, %p83
    %s85 = ssub.s32 %s9, %s16
    %p86 = scmp.eq.s32.totalorder %s85, 0
    %s88 = sadd.s32 %s87, 1
    %s89 = scalar_select %p86, %s87, %s88
    %p92 = pneg %p86
    %p93 = scmp.eq.s32.totalorder %s9, 1
    %p94 = por %p92, %p93
    %p95 = scmp.ne.s32.totalorder %s87, %s90
    %p96 = scmp.eq.s32.totalorder %s9, 0
    %p97 = por %p95, %p96
    %p98 = scmp.ne.s32.totalorder %s87, %s90
    %p99 = scmp.eq.s32.totalorder %s14, 1
    %p100 = por %p98, %p99
    %p101 = scmp.ne.s32.totalorder %s90, %s91
    %p102 = scmp.eq.s32.totalorder %s14, 0
    %p103 = por %p101, %p102
    %p104 = scmp.ne.s32.totalorder %s90, %s91
    %p105 = scmp.eq.s32.totalorder %s15, 1
    %p106 = por %p104, %p105
    %p108 = scmp.ne.s32.totalorder %s91, %s107
    %p109 = scmp.eq.s32.totalorder %s15, 0
    %p110 = por %p108, %p109
    %p111 = scmp.le.s32.totalorder 1, %s9
    %p112 = scmp.lt.s32.totalorder %s9, 3
    %p113 = pnand %p111, %p112
    %p114 = pneg %p113
    // Predicated region
    $region9: #{lc_block_forward.2} parent=5 // pred_check
      _
    $region10: #{lc_block_forward.2} parent=5 // pred_check_branch
      %116 = sbr.rel (%p113) target = $region12
    $region11: #{lc_block_forward.2} parent=5 // pred_region
      %s117 = ssub.s32 %s9, 1
      // Predicated region
      $region13: #{lc_block_forward.2} parent=11 // pred_check
        %p118 = pneg %p56
      $region14: #{lc_block_forward.2} parent=11 // pred_check_branch
        %120 = sbr.rel (%p118) target = $region16
      $region15: #{lc_block_forward.2} parent=11 // pred_region
        _
      $region16: #{lc_block_forward.2} parent=11 // pred_fallthru
        _
      // Predicated region
      $region17: #{lc_block_forward.2} parent=11 // pred_check
        %p121 = pneg %p77
      $region18: #{lc_block_forward.2} parent=11 // pred_check_branch
        %123 = sbr.rel (%p121) target = $region20
      $region19: #{lc_block_forward.2} parent=11 // pred_region
        _
      $region20: #{lc_block_forward.2} parent=11 // pred_fallthru
        _
    $region12: #{lc_block_forward.2} parent=5 // pred_fallthru
      _
    %p124 = scmp.lt.s32.totalorder %s9, 2
    // Predicated region
    $region21: #{lc_block_forward.2} parent=5 // pred_check
      %p125 = pneg %p124
    $region22: #{lc_block_forward.2} parent=5 // pred_check_branch
      %127 = sbr.rel (%p125) target = $region24
    $region23: #{lc_block_forward.2} parent=5 // pred_region
      // Predicated region
      $region25: #{lc_block_forward.2} parent=23 // pred_check
        %p128 = pneg %p29
      $region26: #{lc_block_forward.2} parent=23 // pred_check_branch
        %130 = sbr.rel (%p128) target = $region28
      $region27: #{lc_block_forward.2} parent=23 // pred_region
        %s131 = smul.u32 16, %s9
        %p132 = scmp.lt.s32.totalorder %s131, 31
        %s133 = scalar_select %p132, %s131, 31
        %s134 = smul.addr %s133, 7
        %s135 = smul.addr %s134, 8
        %s136 = scalar_lea.vmem %s0, %s135
        %s137 = smul.u32 16, %s9
      $region28: #{lc_block_forward.2} parent=23 // pred_fallthru
        _
    $region24: #{lc_block_forward.2} parent=5 // pred_fallthru
      _
    %p138 = scmp.le.s32.totalorder 1, %s9
    %p139 = scmp.lt.s32.totalorder %s9, 3
    %p140 = pnand %p138, %p139
    %p141 = pneg %p140
    // Predicated region
    $region29: #{lc_block_forward.2} parent=5 // pred_check
      _
    $region30: #{lc_block_forward.2} parent=5 // pred_check_branch
      %143 = sbr.rel (%p140) target = $region32
    $region31: #{lc_block_forward.2} parent=5 // pred_region
      %s144 = ssub.s32 %s9, 1
      %s145 = smul.u32 16, %s14
      %p146 = scmp.lt.s32.totalorder %s145, 31
      %s147 = scalar_select %p146, %s145, 31
      %s148 = smul.addr %s147, 7
      %s149 = smul.addr %s148, 8
      %s150 = scalar_lea.vmem %s0, %s149
      %p151 = pneg %p35
      %p152 = pneg %p32
      %p153 = pneg %p56
      %p154 = pneg %p53
      %p155 = pneg %p77
      %p156 = pneg %p74
      %p157 = pneg %p103
      %p158 = pneg %p100
      %s159 = smul.u32 16, %s14
      %p160 = scmp.lt.s32.totalorder %s159, 31
      %s161 = scalar_select %p160, %s159, 31
      %s162 = smul.addr %s161, 6
      %s163 = smul.addr %s162, 8
      %s164 = scalar_lea.vmem %s3, %s163
      %s165 = smul.u32 16, %s14
      %p166 = scmp.lt.s32.totalorder %s165, 31
      %s167 = scalar_select %p166, %s165, 31
      %s168 = smul.addr %s167, 7
      %s169 = smul.addr %s168, 8
      %s170 = scalar_lea.vmem %s0, %s169
      %s171 = smul.u32 16, %s14
      %s172 = smul.u32 16, %s14
      %p173 = scmp.lt.s32.totalorder %s172, 31
      %s174 = scalar_select %p173, %s172, 31
      %s175 = smul.addr %s174, 6
      %s176 = smul.addr %s175, 8
      %s177 = scalar_lea.vmem %s3, %s176
      %s178 = smul.u32 16, %s14
      %v179 = vld [vmem:[%s170] sm:$0xff]
      %v180 = vld [vmem:[%s170 + $0x8] sm:$0xff]
      %v181 = vld [vmem:[%s170 + $0x10] sm:$0xff]
      %v182 = vld [vmem:[%s170 + $0x18] sm:$0xff]
      %v183 = vld [vmem:[%s170 + $0x20] sm:$0xff]
      %v184 = vld [vmem:[%s170 + $0x28] sm:$0xff]
      %v185 = vld [vmem:[%s170 + $0x30] sm:$0x3]
      %v186 = vld [vmem:[%s170 + $0x38] sm:$0xff]
      %v187 = vld [vmem:[%s170 + $0x40] sm:$0xff]
      %v188 = vld [vmem:[%s170 + $0x48] sm:$0xff]
      %v189 = vld [vmem:[%s170 + $0x50] sm:$0xff]
      %v190 = vld [vmem:[%s170 + $0x58] sm:$0xff]
      %v191 = vld [vmem:[%s170 + $0x60] sm:$0xff]
      %v192 = vld [vmem:[%s170 + $0x68] sm:$0x3]
      %v193 = vld [vmem:[%s170 + $0x70] sm:$0xff]
      %v194 = vld [vmem:[%s170 + $0x78] sm:$0xff]
      %v195 = vld [vmem:[%s170 + $0x80] sm:$0xff]
      %v196 = vld [vmem:[%s170 + $0x88] sm:$0xff]
      %v197 = vld [vmem:[%s170 + $0x90] sm:$0xff]
      %v198 = vld [vmem:[%s170 + $0x98] sm:$0xff]
      %v199 = vld [vmem:[%s170 + $0xa0] sm:$0x3]
      %v200 = vld [vmem:[%s170 + $0xa8] sm:$0xff]
      %v201 = vld [vmem:[%s170 + $0xb0] sm:$0xff]
      %v202 = vld [vmem:[%s170 + $0xb8] sm:$0xff]
      %v203 = vld [vmem:[%s170 + $0xc0] sm:$0xff]
      %v204 = vld [vmem:[%s170 + $0xc8] sm:$0xff]
      %v205 = vld [vmem:[%s170 + $0xd0] sm:$0xff]
      %v206 = vld [vmem:[%s170 + $0xd8] sm:$0x3]
      %v207 = vld [vmem:[%s170 + $0xe0] sm:$0xff]
      %v208 = vld [vmem:[%s170 + $0xe8] sm:$0xff]
      %v209 = vld [vmem:[%s170 + $0xf0] sm:$0xff]
      %v210 = vld [vmem:[%s170 + $0xf8] sm:$0xff]
      %v211 = vld [vmem:[%s170 + $0x100] sm:$0xff]
      %v212 = vld [vmem:[%s170 + $0x108] sm:$0xff]
      %v213 = vld [vmem:[%s170 + $0x110] sm:$0x3]
      %v214 = vld [vmem:[%s170 + $0x118] sm:$0xff]
      %v215 = vld [vmem:[%s170 + $0x120] sm:$0xff]
      %v216 = vld [vmem:[%s170 + $0x128] sm:$0xff]
      %v217 = vld [vmem:[%s170 + $0x130] sm:$0xff]
      %v218 = vld [vmem:[%s170 + $0x138] sm:$0xff]
      %v219 = vld [vmem:[%s170 + $0x140] sm:$0xff]
      %v220 = vld [vmem:[%s170 + $0x148] sm:$0x3]
      %v221 = vld [vmem:[%s170 + $0x150] sm:$0xff]
      %v222 = vld [vmem:[%s170 + $0x158] sm:$0xff]
      %v223 = vld [vmem:[%s170 + $0x160] sm:$0xff]
      %v224 = vld [vmem:[%s170 + $0x168] sm:$0xff]
      %v225 = vld [vmem:[%s170 + $0x170] sm:$0xff]
      %v226 = vld [vmem:[%s170 + $0x178] sm:$0xff]
      %v227 = vld [vmem:[%s170 + $0x180] sm:$0x3]
      %v228 = vld [vmem:[%s170 + $0x188] sm:$0xff]
      %v229 = vld [vmem:[%s170 + $0x190] sm:$0xff]
      %v230 = vld [vmem:[%s170 + $0x198] sm:$0xff]
      %v231 = vld [vmem:[%s170 + $0x1a0] sm:$0xff]
      %v232 = vld [vmem:[%s170 + $0x1a8] sm:$0xff]
      %v233 = vld [vmem:[%s170 + $0x1b0] sm:$0xff]
      %v234 = vld [vmem:[%s170 + $0x1b8] sm:$0x3]
      %v235 = vld [vmem:[%s170 + $0x1c0] sm:$0xff]
      %v236 = vld [vmem:[%s170 + $0x1c8] sm:$0xff]
      %v237 = vld [vmem:[%s170 + $0x1d0] sm:$0xff]
      %v238 = vld [vmem:[%s170 + $0x1d8] sm:$0xff]
      %v239 = vld [vmem:[%s170 + $0x1e0] sm:$0xff]
      %v240 = vld [vmem:[%s170 + $0x1e8] sm:$0xff]
      %v241 = vld [vmem:[%s170 + $0x1f0] sm:$0x3]
      %v242 = vld [vmem:[%s170 + $0x1f8] sm:$0xff]
      %v243 = vld [vmem:[%s170 + $0x200] sm:$0xff]
      %v244 = vld [vmem:[%s170 + $0x208] sm:$0xff]
      %v245 = vld [vmem:[%s170 + $0x210] sm:$0xff]
      %v246 = vld [vmem:[%s170 + $0x218] sm:$0xff]
      %v247 = vld [vmem:[%s170 + $0x220] sm:$0xff]
      %v248 = vld [vmem:[%s170 + $0x228] sm:$0x3]
      %v249 = vld [vmem:[%s170 + $0x230] sm:$0xff]
      %v250 = vld [vmem:[%s170 + $0x238] sm:$0xff]
      %v251 = vld [vmem:[%s170 + $0x240] sm:$0xff]
      %v252 = vld [vmem:[%s170 + $0x248] sm:$0xff]
      %v253 = vld [vmem:[%s170 + $0x250] sm:$0xff]
      %v254 = vld [vmem:[%s170 + $0x258] sm:$0xff]
      %v255 = vld [vmem:[%s170 + $0x260] sm:$0x3]
      %v256 = vld [vmem:[%s170 + $0x268] sm:$0xff]
      %v257 = vld [vmem:[%s170 + $0x270] sm:$0xff]
      %v258 = vld [vmem:[%s170 + $0x278] sm:$0xff]
      %v259 = vld [vmem:[%s170 + $0x280] sm:$0xff]
      %v260 = vld [vmem:[%s170 + $0x288] sm:$0xff]
      %v261 = vld [vmem:[%s170 + $0x290] sm:$0xff]
      %v262 = vld [vmem:[%s170 + $0x298] sm:$0x3]
      %v263 = vld [vmem:[%s170 + $0x2a0] sm:$0xff]
      %v264 = vld [vmem:[%s170 + $0x2a8] sm:$0xff]
      %v265 = vld [vmem:[%s170 + $0x2b0] sm:$0xff]
      %v266 = vld [vmem:[%s170 + $0x2b8] sm:$0xff]
      %v267 = vld [vmem:[%s170 + $0x2c0] sm:$0xff]
      %v268 = vld [vmem:[%s170 + $0x2c8] sm:$0xff]
      %v269 = vld [vmem:[%s170 + $0x2d0] sm:$0x3]
      %v270 = vld [vmem:[%s170 + $0x2d8] sm:$0xff]
      %v271 = vld [vmem:[%s170 + $0x2e0] sm:$0xff]
      %v272 = vld [vmem:[%s170 + $0x2e8] sm:$0xff]
      %v273 = vld [vmem:[%s170 + $0x2f0] sm:$0xff]
      %v274 = vld [vmem:[%s170 + $0x2f8] sm:$0xff]
      %v275 = vld [vmem:[%s170 + $0x300] sm:$0xff]
      %v276 = vld [vmem:[%s170 + $0x308] sm:$0x3]
      %v277 = vld [vmem:[%s170 + $0x310] sm:$0xff]
      %v278 = vld [vmem:[%s170 + $0x318] sm:$0xff]
      %v279 = vld [vmem:[%s170 + $0x320] sm:$0xff]
      %v280 = vld [vmem:[%s170 + $0x328] sm:$0xff]
      %v281 = vld [vmem:[%s170 + $0x330] sm:$0xff]
      %v282 = vld [vmem:[%s170 + $0x338] sm:$0xff]
      %v283 = vld [vmem:[%s170 + $0x340] sm:$0x3]
      %v284 = vld [vmem:[%s170 + $0x348] sm:$0xff]
      %v285 = vld [vmem:[%s170 + $0x350] sm:$0xff]
      %v286 = vld [vmem:[%s170 + $0x358] sm:$0xff]
      %v287 = vld [vmem:[%s170 + $0x360] sm:$0xff]
      %v288 = vld [vmem:[%s170 + $0x368] sm:$0xff]
      %v289 = vld [vmem:[%s170 + $0x370] sm:$0xff]
      %v290 = vld [vmem:[%s170 + $0x378] sm:$0x3]
      %vm403 = vcmask 1046528
      %v404 = vrot.slane %v179, 1
      %v405 = vrot.slane %v180, 1
      %v406 = vsel %vm403, %v404, %v405
      %v407 = vrot.slane %v181, 1
      %v408 = vsel %vm403, %v405, %v407
      %v409 = vrot.slane %v182, 1
      %v410 = vsel %vm403, %v407, %v409
      %v411 = vrot.slane %v183, 1
      %v412 = vsel %vm403, %v409, %v411
      %v413 = vrot.slane %v184, 1
      %v414 = vsel %vm403, %v411, %v413
      %v415 = vrot.slane %v185, 1
      %v416 = vsel %vm403, %v413, %v415
      %v417 = vrot.slane %v186, 1
      %v418 = vrot.slane %v187, 1
      %v419 = vsel %vm403, %v417, %v418
      %v420 = vrot.slane %v188, 1
      %v421 = vsel %vm403, %v418, %v420
      %v422 = vrot.slane %v189, 1
      %v423 = vsel %vm403, %v420, %v422
      %v424 = vrot.slane %v190, 1
      %v425 = vsel %vm403, %v422, %v424
      %v426 = vrot.slane %v191, 1
      %v427 = vsel %vm403, %v424, %v426
      %v428 = vrot.slane %v192, 1
      %v429 = vsel %vm403, %v426, %v428
      %v430 = vrot.slane %v193, 1
      %v431 = vrot.slane %v194, 1
      %v432 = vsel %vm403, %v430, %v431
      %v433 = vrot.slane %v195, 1
      %v434 = vsel %vm403, %v431, %v433
      %v435 = vrot.slane %v196, 1
      %v436 = vsel %vm403, %v433, %v435
      %v437 = vrot.slane %v197, 1
      %v438 = vsel %vm403, %v435, %v437
      %v439 = vrot.slane %v198, 1
      %v440 = vsel %vm403, %v437, %v439
      %v441 = vrot.slane %v199, 1
      %v442 = vsel %vm403, %v439, %v441
      %v443 = vrot.slane %v200, 1
      %v444 = vrot.slane %v201, 1
      %v445 = vsel %vm403, %v443, %v444
      %v446 = vrot.slane %v202, 1
      %v447 = vsel %vm403, %v444, %v446
      %v448 = vrot.slane %v203, 1
      %v449 = vsel %vm403, %v446, %v448
      %v450 = vrot.slane %v204, 1
      %v451 = vsel %vm403, %v448, %v450
      %v452 = vrot.slane %v205, 1
      %v453 = vsel %vm403, %v450, %v452
      %v454 = vrot.slane %v206, 1
      %v455 = vsel %vm403, %v452, %v454
      %v456 = vrot.slane %v207, 1
      %v457 = vrot.slane %v208, 1
      %v458 = vsel %vm403, %v456, %v457
      %v459 = vrot.slane %v209, 1
      %v460 = vsel %vm403, %v457, %v459
      %v461 = vrot.slane %v210, 1
      %v462 = vsel %vm403, %v459, %v461
      %v463 = vrot.slane %v211, 1
      %v464 = vsel %vm403, %v461, %v463
      %v465 = vrot.slane %v212, 1
      %v466 = vsel %vm403, %v463, %v465
      %v467 = vrot.slane %v213, 1
      %v468 = vsel %vm403, %v465, %v467
      %v469 = vrot.slane %v214, 1
      %v470 = vrot.slane %v215, 1
      %v471 = vsel %vm403, %v469, %v470
      %v472 = vrot.slane %v216, 1
      %v473 = vsel %vm403, %v470, %v472
      %v474 = vrot.slane %v217, 1
      %v475 = vsel %vm403, %v472, %v474
      %v476 = vrot.slane %v218, 1
      %v477 = vsel %vm403, %v474, %v476
      %v478 = vrot.slane %v219, 1
      %v479 = vsel %vm403, %v476, %v478
      %v480 = vrot.slane %v220, 1
      %v481 = vsel %vm403, %v478, %v480
      %v482 = vrot.slane %v221, 1
      %v483 = vrot.slane %v222, 1
      %v484 = vsel %vm403, %v482, %v483
      %v485 = vrot.slane %v223, 1
      %v486 = vsel %vm403, %v483, %v485
      %v487 = vrot.slane %v224, 1
      %v488 = vsel %vm403, %v485, %v487
      %v489 = vrot.slane %v225, 1
      %v490 = vsel %vm403, %v487, %v489
      %v491 = vrot.slane %v226, 1
      %v492 = vsel %vm403, %v489, %v491
      %v493 = vrot.slane %v227, 1
      %v494 = vsel %vm403, %v491, %v493
      %v495 = vrot.slane %v228, 1
      %v496 = vrot.slane %v229, 1
      %v497 = vsel %vm403, %v495, %v496
      %v498 = vrot.slane %v230, 1
      %v499 = vsel %vm403, %v496, %v498
      %v500 = vrot.slane %v231, 1
      %v501 = vsel %vm403, %v498, %v500
      %v502 = vrot.slane %v232, 1
      %v503 = vsel %vm403, %v500, %v502
      %v504 = vrot.slane %v233, 1
      %v505 = vsel %vm403, %v502, %v504
      %v506 = vrot.slane %v234, 1
      %v507 = vsel %vm403, %v504, %v506
      %v508 = vrot.slane %v235, 1
      %v509 = vrot.slane %v236, 1
      %v510 = vsel %vm403, %v508, %v509
      %v511 = vrot.slane %v237, 1
      %v512 = vsel %vm403, %v509, %v511
      %v513 = vrot.slane %v238, 1
      %v514 = vsel %vm403, %v511, %v513
      %v515 = vrot.slane %v239, 1
      %v516 = vsel %vm403, %v513, %v515
      %v517 = vrot.slane %v240, 1
      %v518 = vsel %vm403, %v515, %v517
      %v519 = vrot.slane %v241, 1
      %v520 = vsel %vm403, %v517, %v519
      %v521 = vrot.slane %v242, 1
      %v522 = vrot.slane %v243, 1
      %v523 = vsel %vm403, %v521, %v522
      %v524 = vrot.slane %v244, 1
      %v525 = vsel %vm403, %v522, %v524
      %v526 = vrot.slane %v245, 1
      %v527 = vsel %vm403, %v524, %v526
      %v528 = vrot.slane %v246, 1
      %v529 = vsel %vm403, %v526, %v528
      %v530 = vrot.slane %v247, 1
      %v531 = vsel %vm403, %v528, %v530
      %v532 = vrot.slane %v248, 1
      %v533 = vsel %vm403, %v530, %v532
      %v534 = vrot.slane %v249, 1
      %v535 = vrot.slane %v250, 1
      %v536 = vsel %vm403, %v534, %v535
      %v537 = vrot.slane %v251, 1
      %v538 = vsel %vm403, %v535, %v537
      %v539 = vrot.slane %v252, 1
      %v540 = vsel %vm403, %v537, %v539
      %v541 = vrot.slane %v253, 1
      %v542 = vsel %vm403, %v539, %v541
      %v543 = vrot.slane %v254, 1
      %v544 = vsel %vm403, %v541, %v543
      %v545 = vrot.slane %v255, 1
      %v546 = vsel %vm403, %v543, %v545
      %v547 = vrot.slane %v256, 1
      %v548 = vrot.slane %v257, 1
      %v549 = vsel %vm403, %v547, %v548
      %v550 = vrot.slane %v258, 1
      %v551 = vsel %vm403, %v548, %v550
      %v552 = vrot.slane %v259, 1
      %v553 = vsel %vm403, %v550, %v552
      %v554 = vrot.slane %v260, 1
      %v555 = vsel %vm403, %v552, %v554
      %v556 = vrot.slane %v261, 1
      %v557 = vsel %vm403, %v554, %v556
      %v558 = vrot.slane %v262, 1
      %v559 = vsel %vm403, %v556, %v558
      %v560 = vrot.slane %v263, 1
      %v561 = vrot.slane %v264, 1
      %v562 = vsel %vm403, %v560, %v561
      %v563 = vrot.slane %v265, 1
      %v564 = vsel %vm403, %v561, %v563
      %v565 = vrot.slane %v266, 1
      %v566 = vsel %vm403, %v563, %v565
      %v567 = vrot.slane %v267, 1
      %v568 = vsel %vm403, %v565, %v567
      %v569 = vrot.slane %v268, 1
      %v570 = vsel %vm403, %v567, %v569
      %v571 = vrot.slane %v269, 1
      %v572 = vsel %vm403, %v569, %v571
      %v573 = vrot.slane %v270, 1
      %v574 = vrot.slane %v271, 1
      %v575 = vsel %vm403, %v573, %v574
      %v576 = vrot.slane %v272, 1
      %v577 = vsel %vm403, %v574, %v576
      %v578 = vrot.slane %v273, 1
      %v579 = vsel %vm403, %v576, %v578
      %v580 = vrot.slane %v274, 1
      %v581 = vsel %vm403, %v578, %v580
      %v582 = vrot.slane %v275, 1
      %v583 = vsel %vm403, %v580, %v582
      %v584 = vrot.slane %v276, 1
      %v585 = vsel %vm403, %v582, %v584
      %v586 = vrot.slane %v277, 1
      %v587 = vrot.slane %v278, 1
      %v588 = vsel %vm403, %v586, %v587
      %v589 = vrot.slane %v279, 1
      %v590 = vsel %vm403, %v587, %v589
      %v591 = vrot.slane %v280, 1
      %v592 = vsel %vm403, %v589, %v591
      %v593 = vrot.slane %v281, 1
      %v594 = vsel %vm403, %v591, %v593
      %v595 = vrot.slane %v282, 1
      %v596 = vsel %vm403, %v593, %v595
      %v597 = vrot.slane %v283, 1
      %v598 = vsel %vm403, %v595, %v597
      %v599 = vrot.slane %v284, 1
      %v600 = vrot.slane %v285, 1
      %v601 = vsel %vm403, %v599, %v600
      %v602 = vrot.slane %v286, 1
      %v603 = vsel %vm403, %v600, %v602
      %v604 = vrot.slane %v287, 1
      %v605 = vsel %vm403, %v602, %v604
      %v606 = vrot.slane %v288, 1
      %v607 = vsel %vm403, %v604, %v606
      %v608 = vrot.slane %v289, 1
      %v609 = vsel %vm403, %v606, %v608
      %v610 = vrot.slane %v290, 1
      %v611 = vsel %vm403, %v608, %v610
      %vm612 = vcmask 1045504
      %v613 = vrot.slane %v179, 2
      %v614 = vrot.slane %v180, 2
      %v615 = vsel %vm612, %v613, %v614
      %v616 = vrot.slane %v181, 2
      %v617 = vsel %vm612, %v614, %v616
      %v618 = vrot.slane %v182, 2
      %v619 = vsel %vm612, %v616, %v618
      %v620 = vrot.slane %v183, 2
      %v621 = vsel %vm612, %v618, %v620
      %v622 = vrot.slane %v184, 2
      %v623 = vsel %vm612, %v620, %v622
      %v624 = vrot.slane %v185, 2
      %v625 = vsel %vm612, %v622, %v624
      %v626 = vrot.slane %v186, 2
      %v627 = vrot.slane %v187, 2
      %v628 = vsel %vm612, %v626, %v627
      %v629 = vrot.slane %v188, 2
      %v630 = vsel %vm612, %v627, %v629
      %v631 = vrot.slane %v189, 2
      %v632 = vsel %vm612, %v629, %v631
      %v633 = vrot.slane %v190, 2
      %v634 = vsel %vm612, %v631, %v633
      %v635 = vrot.slane %v191, 2
      %v636 = vsel %vm612, %v633, %v635
      %v637 = vrot.slane %v192, 2
      %v638 = vsel %vm612, %v635, %v637
      %v639 = vrot.slane %v193, 2
      %v640 = vrot.slane %v194, 2
      %v641 = vsel %vm612, %v639, %v640
      %v642 = vrot.slane %v195, 2
      %v643 = vsel %vm612, %v640, %v642
      %v644 = vrot.slane %v196, 2
      %v645 = vsel %vm612, %v642, %v644
      %v646 = vrot.slane %v197, 2
      %v647 = vsel %vm612, %v644, %v646
      %v648 = vrot.slane %v198, 2
      %v649 = vsel %vm612, %v646, %v648
      %v650 = vrot.slane %v199, 2
      %v651 = vsel %vm612, %v648, %v650
      %v652 = vrot.slane %v200, 2
      %v653 = vrot.slane %v201, 2
      %v654 = vsel %vm612, %v652, %v653
      %v655 = vrot.slane %v202, 2
      %v656 = vsel %vm612, %v653, %v655
      %v657 = vrot.slane %v203, 2
      %v658 = vsel %vm612, %v655, %v657
      %v659 = vrot.slane %v204, 2
      %v660 = vsel %vm612, %v657, %v659
      %v661 = vrot.slane %v205, 2
      %v662 = vsel %vm612, %v659, %v661
      %v663 = vrot.slane %v206, 2
      %v664 = vsel %vm612, %v661, %v663
      %v665 = vrot.slane %v207, 2
      %v666 = vrot.slane %v208, 2
      %v667 = vsel %vm612, %v665, %v666
      %v668 = vrot.slane %v209, 2
      %v669 = vsel %vm612, %v666, %v668
      %v670 = vrot.slane %v210, 2
      %v671 = vsel %vm612, %v668, %v670
      %v672 = vrot.slane %v211, 2
      %v673 = vsel %vm612, %v670, %v672
      %v674 = vrot.slane %v212, 2
      %v675 = vsel %vm612, %v672, %v674
      %v676 = vrot.slane %v213, 2
      %v677 = vsel %vm612, %v674, %v676
      %v678 = vrot.slane %v214, 2
      %v679 = vrot.slane %v215, 2
      %v680 = vsel %vm612, %v678, %v679
      %v681 = vrot.slane %v216, 2
      %v682 = vsel %vm612, %v679, %v681
      %v683 = vrot.slane %v217, 2
      %v684 = vsel %vm612, %v681, %v683
      %v685 = vrot.slane %v218, 2
      %v686 = vsel %vm612, %v683, %v685
      %v687 = vrot.slane %v219, 2
      %v688 = vsel %vm612, %v685, %v687
      %v689 = vrot.slane %v220, 2
      %v690 = vsel %vm612, %v687, %v689
      %v691 = vrot.slane %v221, 2
      %v692 = vrot.slane %v222, 2
      %v693 = vsel %vm612, %v691, %v692
      %v694 = vrot.slane %v223, 2
      %v695 = vsel %vm612, %v692, %v694
      %v696 = vrot.slane %v224, 2
      %v697 = vsel %vm612, %v694, %v696
      %v698 = vrot.slane %v225, 2
      %v699 = vsel %vm612, %v696, %v698
      %v700 = vrot.slane %v226, 2
      %v701 = vsel %vm612, %v698, %v700
      %v702 = vrot.slane %v227, 2
      %v703 = vsel %vm612, %v700, %v702
      %v704 = vrot.slane %v228, 2
      %v705 = vrot.slane %v229, 2
      %v706 = vsel %vm612, %v704, %v705
      %v707 = vrot.slane %v230, 2
      %v708 = vsel %vm612, %v705, %v707
      %v709 = vrot.slane %v231, 2
      %v710 = vsel %vm612, %v707, %v709
      %v711 = vrot.slane %v232, 2
      %v712 = vsel %vm612, %v709, %v711
      %v713 = vrot.slane %v233, 2
      %v714 = vsel %vm612, %v711, %v713
      %v715 = vrot.slane %v234, 2
      %v716 = vsel %vm612, %v713, %v715
      %v717 = vrot.slane %v235, 2
      %v718 = vrot.slane %v236, 2
      %v719 = vsel %vm612, %v717, %v718
      %v720 = vrot.slane %v237, 2
      %v721 = vsel %vm612, %v718, %v720
      %v722 = vrot.slane %v238, 2
      %v723 = vsel %vm612, %v720, %v722
      %v724 = vrot.slane %v239, 2
      %v725 = vsel %vm612, %v722, %v724
      %v726 = vrot.slane %v240, 2
      %v727 = vsel %vm612, %v724, %v726
      %v728 = vrot.slane %v241, 2
      %v729 = vsel %vm612, %v726, %v728
      %v730 = vrot.slane %v242, 2
      %v731 = vrot.slane %v243, 2
      %v732 = vsel %vm612, %v730, %v731
      %v733 = vrot.slane %v244, 2
      %v734 = vsel %vm612, %v731, %v733
      %v735 = vrot.slane %v245, 2
      %v736 = vsel %vm612, %v733, %v735
      %v737 = vrot.slane %v246, 2
      %v738 = vsel %vm612, %v735, %v737
      %v739 = vrot.slane %v247, 2
      %v740 = vsel %vm612, %v737, %v739
      %v741 = vrot.slane %v248, 2
      %v742 = vsel %vm612, %v739, %v741
      %v743 = vrot.slane %v249, 2
      %v744 = vrot.slane %v250, 2
      %v745 = vsel %vm612, %v743, %v744
      %v746 = vrot.slane %v251, 2
      %v747 = vsel %vm612, %v744, %v746
      %v748 = vrot.slane %v252, 2
      %v749 = vsel %vm612, %v746, %v748
      %v750 = vrot.slane %v253, 2
      %v751 = vsel %vm612, %v748, %v750
      %v752 = vrot.slane %v254, 2
      %v753 = vsel %vm612, %v750, %v752
      %v754 = vrot.slane %v255, 2
      %v755 = vsel %vm612, %v752, %v754
      %v756 = vrot.slane %v256, 2
      %v757 = vrot.slane %v257, 2
      %v758 = vsel %vm612, %v756, %v757
      %v759 = vrot.slane %v258, 2
      %v760 = vsel %vm612, %v757, %v759
      %v761 = vrot.slane %v259, 2
      %v762 = vsel %vm612, %v759, %v761
      %v763 = vrot.slane %v260, 2
      %v764 = vsel %vm612, %v761, %v763
      %v765 = vrot.slane %v261, 2
      %v766 = vsel %vm612, %v763, %v765
      %v767 = vrot.slane %v262, 2
      %v768 = vsel %vm612, %v765, %v767
      %v769 = vrot.slane %v263, 2
      %v770 = vrot.slane %v264, 2
      %v771 = vsel %vm612, %v769, %v770
      %v772 = vrot.slane %v265, 2
      %v773 = vsel %vm612, %v770, %v772
      %v774 = vrot.slane %v266, 2
      %v775 = vsel %vm612, %v772, %v774
      %v776 = vrot.slane %v267, 2
      %v777 = vsel %vm612, %v774, %v776
      %v778 = vrot.slane %v268, 2
      %v779 = vsel %vm612, %v776, %v778
      %v780 = vrot.slane %v269, 2
      %v781 = vsel %vm612, %v778, %v780
      %v782 = vrot.slane %v270, 2
      %v783 = vrot.slane %v271, 2
      %v784 = vsel %vm612, %v782, %v783
      %v785 = vrot.slane %v272, 2
      %v786 = vsel %vm612, %v783, %v785
      %v787 = vrot.slane %v273, 2
      %v788 = vsel %vm612, %v785, %v787
      %v789 = vrot.slane %v274, 2
      %v790 = vsel %vm612, %v787, %v789
      %v791 = vrot.slane %v275, 2
      %v792 = vsel %vm612, %v789, %v791
      %v793 = vrot.slane %v276, 2
      %v794 = vsel %vm612, %v791, %v793
      %v795 = vrot.slane %v277, 2
      %v796 = vrot.slane %v278, 2
      %v797 = vsel %vm612, %v795, %v796
      %v798 = vrot.slane %v279, 2
      %v799 = vsel %vm612, %v796, %v798
      %v800 = vrot.slane %v280, 2
      %v801 = vsel %vm612, %v798, %v800
      %v802 = vrot.slane %v281, 2
      %v803 = vsel %vm612, %v800, %v802
      %v804 = vrot.slane %v282, 2
      %v805 = vsel %vm612, %v802, %v804
      %v806 = vrot.slane %v283, 2
      %v807 = vsel %vm612, %v804, %v806
      %v808 = vrot.slane %v284, 2
      %v809 = vrot.slane %v285, 2
      %v810 = vsel %vm612, %v808, %v809
      %v811 = vrot.slane %v286, 2
      %v812 = vsel %vm612, %v809, %v811
      %v813 = vrot.slane %v287, 2
      %v814 = vsel %vm612, %v811, %v813
      %v815 = vrot.slane %v288, 2
      %v816 = vsel %vm612, %v813, %v815
      %v817 = vrot.slane %v289, 2
      %v818 = vsel %vm612, %v815, %v817
      %v819 = vrot.slane %v290, 2
      %v820 = vsel %vm612, %v817, %v819
      %821 = vrot.lane.b32.xlu0 %v406, 4
      %v822 = vpop.permute.xlu0 %821
      %823 = vrot.lane.b32.xlu0 %v408, 4
      %v824 = vpop.permute.xlu0 %823
      %825 = vrot.lane.b32.xlu0 %v410, 4
      %v826 = vpop.permute.xlu0 %825
      %827 = vrot.lane.b32.xlu0 %v412, 4
      %v828 = vpop.permute.xlu0 %827
      %829 = vrot.lane.b32.xlu0 %v414, 4
      %v830 = vpop.permute.xlu0 %829
      %831 = vrot.lane.b32.xlu0 %v416, 4
      %v832 = vpop.permute.xlu0 %831
      %833 = vrot.lane.b32.xlu0 %v419, 4
      %v834 = vpop.permute.xlu0 %833
      %835 = vrot.lane.b32.xlu0 %v421, 4
      %v836 = vpop.permute.xlu0 %835
      %837 = vrot.lane.b32.xlu0 %v423, 4
      %v838 = vpop.permute.xlu0 %837
      %839 = vrot.lane.b32.xlu0 %v425, 4
      %v840 = vpop.permute.xlu0 %839
      %841 = vrot.lane.b32.xlu0 %v427, 4
      %v842 = vpop.permute.xlu0 %841
      %843 = vrot.lane.b32.xlu0 %v429, 4
      %v844 = vpop.permute.xlu0 %843
      %845 = vrot.lane.b32.xlu0 %v432, 4
      %v846 = vpop.permute.xlu0 %845
      %847 = vrot.lane.b32.xlu0 %v434, 4
      %v848 = vpop.permute.xlu0 %847
      %849 = vrot.lane.b32.xlu0 %v436, 4
      %v850 = vpop.permute.xlu0 %849
      %851 = vrot.lane.b32.xlu0 %v438, 4
      %v852 = vpop.permute.xlu0 %851
      %853 = vrot.lane.b32.xlu0 %v440, 4
      %v854 = vpop.permute.xlu0 %853
      %855 = vrot.lane.b32.xlu0 %v442, 4
      %v856 = vpop.permute.xlu0 %855
      %857 = vrot.lane.b32.xlu0 %v445, 4
      %v858 = vpop.permute.xlu0 %857
      %859 = vrot.lane.b32.xlu0 %v447, 4
      %v860 = vpop.permute.xlu0 %859
      %861 = vrot.lane.b32.xlu0 %v449, 4
      %v862 = vpop.permute.xlu0 %861
      %863 = vrot.lane.b32.xlu0 %v451, 4
      %v864 = vpop.permute.xlu0 %863
      %865 = vrot.lane.b32.xlu0 %v453, 4
      %v866 = vpop.permute.xlu0 %865
      %867 = vrot.lane.b32.xlu0 %v455, 4
      %v868 = vpop.permute.xlu0 %867
      %869 = vrot.lane.b32.xlu0 %v458, 4
      %v870 = vpop.permute.xlu0 %869
      %871 = vrot.lane.b32.xlu0 %v460, 4
      %v872 = vpop.permute.xlu0 %871
      %873 = vrot.lane.b32.xlu0 %v462, 4
      %v874 = vpop.permute.xlu0 %873
      %875 = vrot.lane.b32.xlu0 %v464, 4
      %v876 = vpop.permute.xlu0 %875
      %877 = vrot.lane.b32.xlu0 %v466, 4
      %v878 = vpop.permute.xlu0 %877
      %879 = vrot.lane.b32.xlu0 %v468, 4
      %v880 = vpop.permute.xlu0 %879
      %881 = vrot.lane.b32.xlu0 %v471, 4
      %v882 = vpop.permute.xlu0 %881
      %883 = vrot.lane.b32.xlu0 %v473, 4
      %v884 = vpop.permute.xlu0 %883
      %885 = vrot.lane.b32.xlu0 %v475, 4
      %v886 = vpop.permute.xlu0 %885
      %887 = vrot.lane.b32.xlu0 %v477, 4
      %v888 = vpop.permute.xlu0 %887
      %889 = vrot.lane.b32.xlu0 %v479, 4
      %v890 = vpop.permute.xlu0 %889
      %891 = vrot.lane.b32.xlu0 %v481, 4
      %v892 = vpop.permute.xlu0 %891
      %893 = vrot.lane.b32.xlu0 %v484, 4
      %v894 = vpop.permute.xlu0 %893
      %895 = vrot.lane.b32.xlu0 %v486, 4
      %v896 = vpop.permute.xlu0 %895
      %897 = vrot.lane.b32.xlu0 %v488, 4
      %v898 = vpop.permute.xlu0 %897
      %899 = vrot.lane.b32.xlu0 %v490, 4
      %v900 = vpop.permute.xlu0 %899
      %901 = vrot.lane.b32.xlu0 %v492, 4
      %v902 = vpop.permute.xlu0 %901
      %903 = vrot.lane.b32.xlu0 %v494, 4
      %v904 = vpop.permute.xlu0 %903
      %905 = vrot.lane.b32.xlu0 %v497, 4
      %v906 = vpop.permute.xlu0 %905
      %907 = vrot.lane.b32.xlu0 %v499, 4
      %v908 = vpop.permute.xlu0 %907
      %909 = vrot.lane.b32.xlu0 %v501, 4
      %v910 = vpop.permute.xlu0 %909
      %911 = vrot.lane.b32.xlu0 %v503, 4
      %v912 = vpop.permute.xlu0 %911
      %913 = vrot.lane.b32.xlu0 %v505, 4
      %v914 = vpop.permute.xlu0 %913
      %915 = vrot.lane.b32.xlu0 %v507, 4
      %v916 = vpop.permute.xlu0 %915
      %917 = vrot.lane.b32.xlu0 %v510, 4
      %v918 = vpop.permute.xlu0 %917
      %919 = vrot.lane.b32.xlu0 %v512, 4
      %v920 = vpop.permute.xlu0 %919
      %921 = vrot.lane.b32.xlu0 %v514, 4
      %v922 = vpop.permute.xlu0 %921
      %923 = vrot.lane.b32.xlu0 %v516, 4
      %v924 = vpop.permute.xlu0 %923
      %925 = vrot.lane.b32.xlu0 %v518, 4
      %v926 = vpop.permute.xlu0 %925
      %927 = vrot.lane.b32.xlu0 %v520, 4
      %v928 = vpop.permute.xlu0 %927
      %929 = vrot.lane.b32.xlu0 %v523, 4
      %v930 = vpop.permute.xlu0 %929
      %931 = vrot.lane.b32.xlu0 %v525, 4
      %v932 = vpop.permute.xlu0 %931
      %933 = vrot.lane.b32.xlu0 %v527, 4
      %v934 = vpop.permute.xlu0 %933
      %935 = vrot.lane.b32.xlu0 %v529, 4
      %v936 = vpop.permute.xlu0 %935
      %937 = vrot.lane.b32.xlu0 %v531, 4
      %v938 = vpop.permute.xlu0 %937
      %939 = vrot.lane.b32.xlu0 %v533, 4
      %v940 = vpop.permute.xlu0 %939
      %941 = vrot.lane.b32.xlu0 %v536, 4
      %v942 = vpop.permute.xlu0 %941
      %943 = vrot.lane.b32.xlu0 %v538, 4
      %v944 = vpop.permute.xlu0 %943
      %945 = vrot.lane.b32.xlu0 %v540, 4
      %v946 = vpop.permute.xlu0 %945
      %947 = vrot.lane.b32.xlu0 %v542, 4
      %v948 = vpop.permute.xlu0 %947
      %949 = vrot.lane.b32.xlu0 %v544, 4
      %v950 = vpop.permute.xlu0 %949
      %951 = vrot.lane.b32.xlu0 %v546, 4
      %v952 = vpop.permute.xlu0 %951
      %953 = vrot.lane.b32.xlu0 %v549, 4
      %v954 = vpop.permute.xlu0 %953
      %955 = vrot.lane.b32.xlu0 %v551, 4
      %v956 = vpop.permute.xlu0 %955
      %957 = vrot.lane.b32.xlu0 %v553, 4
      %v958 = vpop.permute.xlu0 %957
      %959 = vrot.lane.b32.xlu0 %v555, 4
      %v960 = vpop.permute.xlu0 %959
      %961 = vrot.lane.b32.xlu0 %v557, 4
      %v962 = vpop.permute.xlu0 %961
      %963 = vrot.lane.b32.xlu0 %v559, 4
      %v964 = vpop.permute.xlu0 %963
      %965 = vrot.lane.b32.xlu0 %v562, 4
      %v966 = vpop.permute.xlu0 %965
      %967 = vrot.lane.b32.xlu0 %v564, 4
      %v968 = vpop.permute.xlu0 %967
      %969 = vrot.lane.b32.xlu0 %v566, 4
      %v970 = vpop.permute.xlu0 %969
      %971 = vrot.lane.b32.xlu0 %v568, 4
      %v972 = vpop.permute.xlu0 %971
      %973 = vrot.lane.b32.xlu0 %v570, 4
      %v974 = vpop.permute.xlu0 %973
      %975 = vrot.lane.b32.xlu0 %v572, 4
      %v976 = vpop.permute.xlu0 %975
      %977 = vrot.lane.b32.xlu0 %v575, 4
      %v978 = vpop.permute.xlu0 %977
      %979 = vrot.lane.b32.xlu0 %v577, 4
      %v980 = vpop.permute.xlu0 %979
      %981 = vrot.lane.b32.xlu0 %v579, 4
      %v982 = vpop.permute.xlu0 %981
      %983 = vrot.lane.b32.xlu0 %v581, 4
      %v984 = vpop.permute.xlu0 %983
      %985 = vrot.lane.b32.xlu0 %v583, 4
      %v986 = vpop.permute.xlu0 %985
      %987 = vrot.lane.b32.xlu0 %v585, 4
      %v988 = vpop.permute.xlu0 %987
      %989 = vrot.lane.b32.xlu0 %v588, 4
      %v990 = vpop.permute.xlu0 %989
      %991 = vrot.lane.b32.xlu0 %v590, 4
      %v992 = vpop.permute.xlu0 %991
      %993 = vrot.lane.b32.xlu0 %v592, 4
      %v994 = vpop.permute.xlu0 %993
      %995 = vrot.lane.b32.xlu0 %v594, 4
      %v996 = vpop.permute.xlu0 %995
      %997 = vrot.lane.b32.xlu0 %v596, 4
      %v998 = vpop.permute.xlu0 %997
      %999 = vrot.lane.b32.xlu0 %v598, 4
      %v1000 = vpop.permute.xlu0 %999
      %1001 = vrot.lane.b32.xlu0 %v601, 4
      %v1002 = vpop.permute.xlu0 %1001
      %1003 = vrot.lane.b32.xlu0 %v603, 4
      %v1004 = vpop.permute.xlu0 %1003
      %1005 = vrot.lane.b32.xlu0 %v605, 4
      %v1006 = vpop.permute.xlu0 %1005
      %1007 = vrot.lane.b32.xlu0 %v607, 4
      %v1008 = vpop.permute.xlu0 %1007
      %1009 = vrot.lane.b32.xlu0 %v609, 4
      %v1010 = vpop.permute.xlu0 %1009
      %1011 = vrot.lane.b32.xlu0 %v611, 4
      %v1012 = vpop.permute.xlu0 %1011
      %1109 = vrot.lane.b32.xlu0 %v615, 8
      %v1110 = vpop.permute.xlu0 %1109
      %1111 = vrot.lane.b32.xlu0 %v617, 8
      %v1112 = vpop.permute.xlu0 %1111
      %1113 = vrot.lane.b32.xlu0 %v619, 8
      %v1114 = vpop.permute.xlu0 %1113
      %1115 = vrot.lane.b32.xlu0 %v621, 8
      %v1116 = vpop.permute.xlu0 %1115
      %1117 = vrot.lane.b32.xlu0 %v623, 8
      %v1118 = vpop.permute.xlu0 %1117
      %1119 = vrot.lane.b32.xlu0 %v625, 8
      %v1120 = vpop.permute.xlu0 %1119
      %1121 = vrot.lane.b32.xlu0 %v628, 8
      %v1122 = vpop.permute.xlu0 %1121
      %1123 = vrot.lane.b32.xlu0 %v630, 8
      %v1124 = vpop.permute.xlu0 %1123
      %1125 = vrot.lane.b32.xlu0 %v632, 8
      %v1126 = vpop.permute.xlu0 %1125
      %1127 = vrot.lane.b32.xlu0 %v634, 8
      %v1128 = vpop.permute.xlu0 %1127
      %1129 = vrot.lane.b32.xlu0 %v636, 8
      %v1130 = vpop.permute.xlu0 %1129
      %1131 = vrot.lane.b32.xlu0 %v638, 8
      %v1132 = vpop.permute.xlu0 %1131
      %1133 = vrot.lane.b32.xlu0 %v641, 8
      %v1134 = vpop.permute.xlu0 %1133
      %1135 = vrot.lane.b32.xlu0 %v643, 8
      %v1136 = vpop.permute.xlu0 %1135
      %1137 = vrot.lane.b32.xlu0 %v645, 8
      %v1138 = vpop.permute.xlu0 %1137
      %1139 = vrot.lane.b32.xlu0 %v647, 8
      %v1140 = vpop.permute.xlu0 %1139
      %1141 = vrot.lane.b32.xlu0 %v649, 8
      %v1142 = vpop.permute.xlu0 %1141
      %1143 = vrot.lane.b32.xlu0 %v651, 8
      %v1144 = vpop.permute.xlu0 %1143
      %1145 = vrot.lane.b32.xlu0 %v654, 8
      %v1146 = vpop.permute.xlu0 %1145
      %1147 = vrot.lane.b32.xlu0 %v656, 8
      %v1148 = vpop.permute.xlu0 %1147
      %1149 = vrot.lane.b32.xlu0 %v658, 8
      %v1150 = vpop.permute.xlu0 %1149
      %1151 = vrot.lane.b32.xlu0 %v660, 8
      %v1152 = vpop.permute.xlu0 %1151
      %1153 = vrot.lane.b32.xlu0 %v662, 8
      %v1154 = vpop.permute.xlu0 %1153
      %1155 = vrot.lane.b32.xlu0 %v664, 8
      %v1156 = vpop.permute.xlu0 %1155
      %1157 = vrot.lane.b32.xlu0 %v667, 8
      %v1158 = vpop.permute.xlu0 %1157
      %1159 = vrot.lane.b32.xlu0 %v669, 8
      %v1160 = vpop.permute.xlu0 %1159
      %1161 = vrot.lane.b32.xlu0 %v671, 8
      %v1162 = vpop.permute.xlu0 %1161
      %1163 = vrot.lane.b32.xlu0 %v673, 8
      %v1164 = vpop.permute.xlu0 %1163
      %1165 = vrot.lane.b32.xlu0 %v675, 8
      %v1166 = vpop.permute.xlu0 %1165
      %1167 = vrot.lane.b32.xlu0 %v677, 8
      %v1168 = vpop.permute.xlu0 %1167
      %1169 = vrot.lane.b32.xlu0 %v680, 8
      %v1170 = vpop.permute.xlu0 %1169
      %1171 = vrot.lane.b32.xlu0 %v682, 8
      %v1172 = vpop.permute.xlu0 %1171
      %1173 = vrot.lane.b32.xlu0 %v684, 8
      %v1174 = vpop.permute.xlu0 %1173
      %1175 = vrot.lane.b32.xlu0 %v686, 8
      %v1176 = vpop.permute.xlu0 %1175
      %1177 = vrot.lane.b32.xlu0 %v688, 8
      %v1178 = vpop.permute.xlu0 %1177
      %1179 = vrot.lane.b32.xlu0 %v690, 8
      %v1180 = vpop.permute.xlu0 %1179
      %1181 = vrot.lane.b32.xlu0 %v693, 8
      %v1182 = vpop.permute.xlu0 %1181
      %1183 = vrot.lane.b32.xlu0 %v695, 8
      %v1184 = vpop.permute.xlu0 %1183
      %1185 = vrot.lane.b32.xlu0 %v697, 8
      %v1186 = vpop.permute.xlu0 %1185
      %1187 = vrot.lane.b32.xlu0 %v699, 8
      %v1188 = vpop.permute.xlu0 %1187
      %1189 = vrot.lane.b32.xlu0 %v701, 8
      %v1190 = vpop.permute.xlu0 %1189
      %1191 = vrot.lane.b32.xlu0 %v703, 8
      %v1192 = vpop.permute.xlu0 %1191
      %1193 = vrot.lane.b32.xlu0 %v706, 8
      %v1194 = vpop.permute.xlu0 %1193
      %1195 = vrot.lane.b32.xlu0 %v708, 8
      %v1196 = vpop.permute.xlu0 %1195
      %1197 = vrot.lane.b32.xlu0 %v710, 8
      %v1198 = vpop.permute.xlu0 %1197
      %1199 = vrot.lane.b32.xlu0 %v712, 8
      %v1200 = vpop.permute.xlu0 %1199
      %1201 = vrot.lane.b32.xlu0 %v714, 8
      %v1202 = vpop.permute.xlu0 %1201
      %1203 = vrot.lane.b32.xlu0 %v716, 8
      %v1204 = vpop.permute.xlu0 %1203
      %1205 = vrot.lane.b32.xlu0 %v719, 8
      %v1206 = vpop.permute.xlu0 %1205
      %1207 = vrot.lane.b32.xlu0 %v721, 8
      %v1208 = vpop.permute.xlu0 %1207
      %1209 = vrot.lane.b32.xlu0 %v723, 8
      %v1210 = vpop.permute.xlu0 %1209
      %1211 = vrot.lane.b32.xlu0 %v725, 8
      %v1212 = vpop.permute.xlu0 %1211
      %1213 = vrot.lane.b32.xlu0 %v727, 8
      %v1214 = vpop.permute.xlu0 %1213
      %1215 = vrot.lane.b32.xlu0 %v729, 8
      %v1216 = vpop.permute.xlu0 %1215
      %1217 = vrot.lane.b32.xlu0 %v732, 8
      %v1218 = vpop.permute.xlu0 %1217
      %1219 = vrot.lane.b32.xlu0 %v734, 8
      %v1220 = vpop.permute.xlu0 %1219
      %1221 = vrot.lane.b32.xlu0 %v736, 8
      %v1222 = vpop.permute.xlu0 %1221
      %1223 = vrot.lane.b32.xlu0 %v738, 8
      %v1224 = vpop.permute.xlu0 %1223
      %1225 = vrot.lane.b32.xlu0 %v740, 8
      %v1226 = vpop.permute.xlu0 %1225
      %1227 = vrot.lane.b32.xlu0 %v742, 8
      %v1228 = vpop.permute.xlu0 %1227
      %1229 = vrot.lane.b32.xlu0 %v745, 8
      %v1230 = vpop.permute.xlu0 %1229
      %1231 = vrot.lane.b32.xlu0 %v747, 8
      %v1232 = vpop.permute.xlu0 %1231
      %1233 = vrot.lane.b32.xlu0 %v749, 8
      %v1234 = vpop.permute.xlu0 %1233
      %1235 = vrot.lane.b32.xlu0 %v751, 8
      %v1236 = vpop.permute.xlu0 %1235
      %1237 = vrot.lane.b32.xlu0 %v753, 8
      %v1238 = vpop.permute.xlu0 %1237
      %1239 = vrot.lane.b32.xlu0 %v755, 8
      %v1240 = vpop.permute.xlu0 %1239
      %1241 = vrot.lane.b32.xlu0 %v758, 8
      %v1242 = vpop.permute.xlu0 %1241
      %1243 = vrot.lane.b32.xlu0 %v760, 8
      %v1244 = vpop.permute.xlu0 %1243
      %1245 = vrot.lane.b32.xlu0 %v762, 8
      %v1246 = vpop.permute.xlu0 %1245
      %1247 = vrot.lane.b32.xlu0 %v764, 8
      %v1248 = vpop.permute.xlu0 %1247
      %1249 = vrot.lane.b32.xlu0 %v766, 8
      %v1250 = vpop.permute.xlu0 %1249
      %1251 = vrot.lane.b32.xlu0 %v768, 8
      %v1252 = vpop.permute.xlu0 %1251
      %1253 = vrot.lane.b32.xlu0 %v771, 8
      %v1254 = vpop.permute.xlu0 %1253
      %1255 = vrot.lane.b32.xlu0 %v773, 8
      %v1256 = vpop.permute.xlu0 %1255
      %1257 = vrot.lane.b32.xlu0 %v775, 8
      %v1258 = vpop.permute.xlu0 %1257
      %1259 = vrot.lane.b32.xlu0 %v777, 8
      %v1260 = vpop.permute.xlu0 %1259
      %1261 = vrot.lane.b32.xlu0 %v779, 8
      %v1262 = vpop.permute.xlu0 %1261
      %1263 = vrot.lane.b32.xlu0 %v781, 8
      %v1264 = vpop.permute.xlu0 %1263
      %1265 = vrot.lane.b32.xlu0 %v784, 8
      %v1266 = vpop.permute.xlu0 %1265
      %1267 = vrot.lane.b32.xlu0 %v786, 8
      %v1268 = vpop.permute.xlu0 %1267
      %1269 = vrot.lane.b32.xlu0 %v788, 8
      %v1270 = vpop.permute.xlu0 %1269
      %1271 = vrot.lane.b32.xlu0 %v790, 8
      %v1272 = vpop.permute.xlu0 %1271
      %1273 = vrot.lane.b32.xlu0 %v792, 8
      %v1274 = vpop.permute.xlu0 %1273
      %1275 = vrot.lane.b32.xlu0 %v794, 8
      %v1276 = vpop.permute.xlu0 %1275
      %1277 = vrot.lane.b32.xlu0 %v797, 8
      %v1278 = vpop.permute.xlu0 %1277
      %1279 = vrot.lane.b32.xlu0 %v799, 8
      %v1280 = vpop.permute.xlu0 %1279
      %1281 = vrot.lane.b32.xlu0 %v801, 8
      %v1282 = vpop.permute.xlu0 %1281
      %1283 = vrot.lane.b32.xlu0 %v803, 8
      %v1284 = vpop.permute.xlu0 %1283
      %1285 = vrot.lane.b32.xlu0 %v805, 8
      %v1286 = vpop.permute.xlu0 %1285
      %1287 = vrot.lane.b32.xlu0 %v807, 8
      %v1288 = vpop.permute.xlu0 %1287
      %1289 = vrot.lane.b32.xlu0 %v810, 8
      %v1290 = vpop.permute.xlu0 %1289
      %1291 = vrot.lane.b32.xlu0 %v812, 8
      %v1292 = vpop.permute.xlu0 %1291
      %1293 = vrot.lane.b32.xlu0 %v814, 8
      %v1294 = vpop.permute.xlu0 %1293
      %1295 = vrot.lane.b32.xlu0 %v816, 8
      %v1296 = vpop.permute.xlu0 %1295
      %1297 = vrot.lane.b32.xlu0 %v818, 8
      %v1298 = vpop.permute.xlu0 %1297
      %1299 = vrot.lane.b32.xlu0 %v820, 8
      %v1300 = vpop.permute.xlu0 %1299
      %vm1397 = vcmask 31744
      %v1398 = vsel %vm1397, %v179, %v822
      %v1399 = vsel %vm1397, %v180, %v824
      %v1400 = vsel %vm1397, %v181, %v826
      %v1401 = vsel %vm1397, %v182, %v828
      %v1402 = vsel %vm1397, %v183, %v830
      %v1403 = vsel %vm1397, %v184, %v832
      %v1404 = vsel %vm1397, %v186, %v834
      %v1405 = vsel %vm1397, %v187, %v836
      %v1406 = vsel %vm1397, %v188, %v838
      %v1407 = vsel %vm1397, %v189, %v840
      %v1408 = vsel %vm1397, %v190, %v842
      %v1409 = vsel %vm1397, %v191, %v844
      %v1410 = vsel %vm1397, %v193, %v846
      %v1411 = vsel %vm1397, %v194, %v848
      %v1412 = vsel %vm1397, %v195, %v850
      %v1413 = vsel %vm1397, %v196, %v852
      %v1414 = vsel %vm1397, %v197, %v854
      %v1415 = vsel %vm1397, %v198, %v856
      %v1416 = vsel %vm1397, %v200, %v858
      %v1417 = vsel %vm1397, %v201, %v860
      %v1418 = vsel %vm1397, %v202, %v862
      %v1419 = vsel %vm1397, %v203, %v864
      %v1420 = vsel %vm1397, %v204, %v866
      %v1421 = vsel %vm1397, %v205, %v868
      %v1422 = vsel %vm1397, %v207, %v870
      %v1423 = vsel %vm1397, %v208, %v872
      %v1424 = vsel %vm1397, %v209, %v874
      %v1425 = vsel %vm1397, %v210, %v876
      %v1426 = vsel %vm1397, %v211, %v878
      %v1427 = vsel %vm1397, %v212, %v880
      %v1428 = vsel %vm1397, %v214, %v882
      %v1429 = vsel %vm1397, %v215, %v884
      %v1430 = vsel %vm1397, %v216, %v886
      %v1431 = vsel %vm1397, %v217, %v888
      %v1432 = vsel %vm1397, %v218, %v890
      %v1433 = vsel %vm1397, %v219, %v892
      %v1434 = vsel %vm1397, %v221, %v894
      %v1435 = vsel %vm1397, %v222, %v896
      %v1436 = vsel %vm1397, %v223, %v898
      %v1437 = vsel %vm1397, %v224, %v900
      %v1438 = vsel %vm1397, %v225, %v902
      %v1439 = vsel %vm1397, %v226, %v904
      %v1440 = vsel %vm1397, %v228, %v906
      %v1441 = vsel %vm1397, %v229, %v908
      %v1442 = vsel %vm1397, %v230, %v910
      %v1443 = vsel %vm1397, %v231, %v912
      %v1444 = vsel %vm1397, %v232, %v914
      %v1445 = vsel %vm1397, %v233, %v916
      %v1446 = vsel %vm1397, %v235, %v918
      %v1447 = vsel %vm1397, %v236, %v920
      %v1448 = vsel %vm1397, %v237, %v922
      %v1449 = vsel %vm1397, %v238, %v924
      %v1450 = vsel %vm1397, %v239, %v926
      %v1451 = vsel %vm1397, %v240, %v928
      %v1452 = vsel %vm1397, %v242, %v930
      %v1453 = vsel %vm1397, %v243, %v932
      %v1454 = vsel %vm1397, %v244, %v934
      %v1455 = vsel %vm1397, %v245, %v936
      %v1456 = vsel %vm1397, %v246, %v938
      %v1457 = vsel %vm1397, %v247, %v940
      %v1458 = vsel %vm1397, %v249, %v942
      %v1459 = vsel %vm1397, %v250, %v944
      %v1460 = vsel %vm1397, %v251, %v946
      %v1461 = vsel %vm1397, %v252, %v948
      %v1462 = vsel %vm1397, %v253, %v950
      %v1463 = vsel %vm1397, %v254, %v952
      %v1464 = vsel %vm1397, %v256, %v954
      %v1465 = vsel %vm1397, %v257, %v956
      %v1466 = vsel %vm1397, %v258, %v958
      %v1467 = vsel %vm1397, %v259, %v960
      %v1468 = vsel %vm1397, %v260, %v962
      %v1469 = vsel %vm1397, %v261, %v964
      %v1470 = vsel %vm1397, %v263, %v966
      %v1471 = vsel %vm1397, %v264, %v968
      %v1472 = vsel %vm1397, %v265, %v970
      %v1473 = vsel %vm1397, %v266, %v972
      %v1474 = vsel %vm1397, %v267, %v974
      %v1475 = vsel %vm1397, %v268, %v976
      %v1476 = vsel %vm1397, %v270, %v978
      %v1477 = vsel %vm1397, %v271, %v980
      %v1478 = vsel %vm1397, %v272, %v982
      %v1479 = vsel %vm1397, %v273, %v984
      %v1480 = vsel %vm1397, %v274, %v986
      %v1481 = vsel %vm1397, %v275, %v988
      %v1482 = vsel %vm1397, %v277, %v990
      %v1483 = vsel %vm1397, %v278, %v992
      %v1484 = vsel %vm1397, %v279, %v994
      %v1485 = vsel %vm1397, %v280, %v996
      %v1486 = vsel %vm1397, %v281, %v998
      %v1487 = vsel %vm1397, %v282, %v1000
      %v1488 = vsel %vm1397, %v284, %v1002
      %v1489 = vsel %vm1397, %v285, %v1004
      %v1490 = vsel %vm1397, %v286, %v1006
      %v1491 = vsel %vm1397, %v287, %v1008
      %v1492 = vsel %vm1397, %v288, %v1010
      %v1493 = vsel %vm1397, %v289, %v1012
      %vm1494 = vcmask 64512
      %v1495 = vsel %vm1494, %v1398, %v1110
      %v1496 = vsel %vm1494, %v1399, %v1112
      %v1497 = vsel %vm1494, %v1400, %v1114
      %v1498 = vsel %vm1494, %v1401, %v1116
      %v1499 = vsel %vm1494, %v1402, %v1118
      %v1500 = vsel %vm1494, %v1403, %v1120
      %v1501 = vsel %vm1494, %v1404, %v1122
      %v1502 = vsel %vm1494, %v1405, %v1124
      %v1503 = vsel %vm1494, %v1406, %v1126
      %v1504 = vsel %vm1494, %v1407, %v1128
      %v1505 = vsel %vm1494, %v1408, %v1130
      %v1506 = vsel %vm1494, %v1409, %v1132
      %v1507 = vsel %vm1494, %v1410, %v1134
      %v1508 = vsel %vm1494, %v1411, %v1136
      %v1509 = vsel %vm1494, %v1412, %v1138
      %v1510 = vsel %vm1494, %v1413, %v1140
      %v1511 = vsel %vm1494, %v1414, %v1142
      %v1512 = vsel %vm1494, %v1415, %v1144
      %v1513 = vsel %vm1494, %v1416, %v1146
      %v1514 = vsel %vm1494, %v1417, %v1148
      %v1515 = vsel %vm1494, %v1418, %v1150
      %v1516 = vsel %vm1494, %v1419, %v1152
      %v1517 = vsel %vm1494, %v1420, %v1154
      %v1518 = vsel %vm1494, %v1421, %v1156
      %v1519 = vsel %vm1494, %v1422, %v1158
      %v1520 = vsel %vm1494, %v1423, %v1160
      %v1521 = vsel %vm1494, %v1424, %v1162
      %v1522 = vsel %vm1494, %v1425, %v1164
      %v1523 = vsel %vm1494, %v1426, %v1166
      %v1524 = vsel %vm1494, %v1427, %v1168
      %v1525 = vsel %vm1494, %v1428, %v1170
      %v1526 = vsel %vm1494, %v1429, %v1172
      %v1527 = vsel %vm1494, %v1430, %v1174
      %v1528 = vsel %vm1494, %v1431, %v1176
      %v1529 = vsel %vm1494, %v1432, %v1178
      %v1530 = vsel %vm1494, %v1433, %v1180
      %v1531 = vsel %vm1494, %v1434, %v1182
      %v1532 = vsel %vm1494, %v1435, %v1184
      %v1533 = vsel %vm1494, %v1436, %v1186
      %v1534 = vsel %vm1494, %v1437, %v1188
      %v1535 = vsel %vm1494, %v1438, %v1190
      %v1536 = vsel %vm1494, %v1439, %v1192
      %v1537 = vsel %vm1494, %v1440, %v1194
      %v1538 = vsel %vm1494, %v1441, %v1196
      %v1539 = vsel %vm1494, %v1442, %v1198
      %v1540 = vsel %vm1494, %v1443, %v1200
      %v1541 = vsel %vm1494, %v1444, %v1202
      %v1542 = vsel %vm1494, %v1445, %v1204
      %v1543 = vsel %vm1494, %v1446, %v1206
      %v1544 = vsel %vm1494, %v1447, %v1208
      %v1545 = vsel %vm1494, %v1448, %v1210
      %v1546 = vsel %vm1494, %v1449, %v1212
      %v1547 = vsel %vm1494, %v1450, %v1214
      %v1548 = vsel %vm1494, %v1451, %v1216
      %v1549 = vsel %vm1494, %v1452, %v1218
      %v1550 = vsel %vm1494, %v1453, %v1220
      %v1551 = vsel %vm1494, %v1454, %v1222
      %v1552 = vsel %vm1494, %v1455, %v1224
      %v1553 = vsel %vm1494, %v1456, %v1226
      %v1554 = vsel %vm1494, %v1457, %v1228
      %v1555 = vsel %vm1494, %v1458, %v1230
      %v1556 = vsel %vm1494, %v1459, %v1232
      %v1557 = vsel %vm1494, %v1460, %v1234
      %v1558 = vsel %vm1494, %v1461, %v1236
      %v1559 = vsel %vm1494, %v1462, %v1238
      %v1560 = vsel %vm1494, %v1463, %v1240
      %v1561 = vsel %vm1494, %v1464, %v1242
      %v1562 = vsel %vm1494, %v1465, %v1244
      %v1563 = vsel %vm1494, %v1466, %v1246
      %v1564 = vsel %vm1494, %v1467, %v1248
      %v1565 = vsel %vm1494, %v1468, %v1250
      %v1566 = vsel %vm1494, %v1469, %v1252
      %v1567 = vsel %vm1494, %v1470, %v1254
      %v1568 = vsel %vm1494, %v1471, %v1256
      %v1569 = vsel %vm1494, %v1472, %v1258
      %v1570 = vsel %vm1494, %v1473, %v1260
      %v1571 = vsel %vm1494, %v1474, %v1262
      %v1572 = vsel %vm1494, %v1475, %v1264
      %v1573 = vsel %vm1494, %v1476, %v1266
      %v1574 = vsel %vm1494, %v1477, %v1268
      %v1575 = vsel %vm1494, %v1478, %v1270
      %v1576 = vsel %vm1494, %v1479, %v1272
      %v1577 = vsel %vm1494, %v1480, %v1274
      %v1578 = vsel %vm1494, %v1481, %v1276
      %v1579 = vsel %vm1494, %v1482, %v1278
      %v1580 = vsel %vm1494, %v1483, %v1280
      %v1581 = vsel %vm1494, %v1484, %v1282
      %v1582 = vsel %vm1494, %v1485, %v1284
      %v1583 = vsel %vm1494, %v1486, %v1286
      %v1584 = vsel %vm1494, %v1487, %v1288
      %v1585 = vsel %vm1494, %v1488, %v1290
      %v1586 = vsel %vm1494, %v1489, %v1292
      %v1587 = vsel %vm1494, %v1490, %v1294
      %v1588 = vsel %vm1494, %v1491, %v1296
      %v1589 = vsel %vm1494, %v1492, %v1298
      %v1590 = vsel %vm1494, %v1493, %v1300
      %v1591 = vld [vmem:[%s1] sm:$0xff]
      %v1592 = vld [vmem:[%s1 + $0x8] sm:$0xff]
      %v1593 = vld [vmem:[%s1 + $0x10] sm:$0xf]
      %v1594 = vld [vmem:[%s1 + $0x18] sm:$0xf]
      %v1595 = vld [vmem:[%s2] sm:$0x3]
      %v1597 = vperm.slane %v1595, 0
      %v1598 = vperm.slane %v1595, 1
      %vm1601 = vcmask 97280
      %v1603 = vsel %vm1601, %v1495, 0
      %v1606 = vsel %vm1601, %v1496, 0
      %v1609 = vsel %vm1601, %v1497, 0
      %v1612 = vsel %vm1601, %v1498, 0
      %v1615 = vsel %vm1601, %v1499, 0
      %v1618 = vsel %vm1601, %v1500, 0
      %v1621 = vsel %vm1601, %v1501, 0
      %v1624 = vsel %vm1601, %v1502, 0
      %v1627 = vsel %vm1601, %v1503, 0
      %v1630 = vsel %vm1601, %v1504, 0
      %v1633 = vsel %vm1601, %v1505, 0
      %v1636 = vsel %vm1601, %v1506, 0
      %v1639 = vsel %vm1601, %v1507, 0
      %v1642 = vsel %vm1601, %v1508, 0
      %v1645 = vsel %vm1601, %v1509, 0
      %v1648 = vsel %vm1601, %v1510, 0
      %v1651 = vsel %vm1601, %v1511, 0
      %v1654 = vsel %vm1601, %v1512, 0
      %v1657 = vsel %vm1601, %v1513, 0
      %v1660 = vsel %vm1601, %v1514, 0
      %v1663 = vsel %vm1601, %v1515, 0
      %v1666 = vsel %vm1601, %v1516, 0
      %v1669 = vsel %vm1601, %v1517, 0
      %v1672 = vsel %vm1601, %v1518, 0
      %v1675 = vsel %vm1601, %v1519, 0
      %v1678 = vsel %vm1601, %v1520, 0
      %v1681 = vsel %vm1601, %v1521, 0
      %v1684 = vsel %vm1601, %v1522, 0
      %v1687 = vsel %vm1601, %v1523, 0
      %v1690 = vsel %vm1601, %v1524, 0
      %v1693 = vsel %vm1601, %v1525, 0
      %v1696 = vsel %vm1601, %v1526, 0
      %v1699 = vsel %vm1601, %v1527, 0
      %v1702 = vsel %vm1601, %v1528, 0
      %v1705 = vsel %vm1601, %v1529, 0
      %v1708 = vsel %vm1601, %v1530, 0
      %v1711 = vsel %vm1601, %v1531, 0
      %v1714 = vsel %vm1601, %v1532, 0
      %v1717 = vsel %vm1601, %v1533, 0
      %v1720 = vsel %vm1601, %v1534, 0
      %v1723 = vsel %vm1601, %v1535, 0
      %v1726 = vsel %vm1601, %v1536, 0
      %v1729 = vsel %vm1601, %v1537, 0
      %v1732 = vsel %vm1601, %v1538, 0
      %v1735 = vsel %vm1601, %v1539, 0
      %v1738 = vsel %vm1601, %v1540, 0
      %v1741 = vsel %vm1601, %v1541, 0
      %v1744 = vsel %vm1601, %v1542, 0
      %v1747 = vsel %vm1601, %v1543, 0
      %v1750 = vsel %vm1601, %v1544, 0
      %v1753 = vsel %vm1601, %v1545, 0
      %v1756 = vsel %vm1601, %v1546, 0
      %v1759 = vsel %vm1601, %v1547, 0
      %v1762 = vsel %vm1601, %v1548, 0
      %v1765 = vsel %vm1601, %v1549, 0
      %v1768 = vsel %vm1601, %v1550, 0
      %v1771 = vsel %vm1601, %v1551, 0
      %v1774 = vsel %vm1601, %v1552, 0
      %v1777 = vsel %vm1601, %v1553, 0
      %v1780 = vsel %vm1601, %v1554, 0
      %v1783 = vsel %vm1601, %v1555, 0
      %v1786 = vsel %vm1601, %v1556, 0
      %v1789 = vsel %vm1601, %v1557, 0
      %v1792 = vsel %vm1601, %v1558, 0
      %v1795 = vsel %vm1601, %v1559, 0
      %v1798 = vsel %vm1601, %v1560, 0
      %v1801 = vsel %vm1601, %v1561, 0
      %v1804 = vsel %vm1601, %v1562, 0
      %v1807 = vsel %vm1601, %v1563, 0
      %v1810 = vsel %vm1601, %v1564, 0
      %v1813 = vsel %vm1601, %v1565, 0
      %v1816 = vsel %vm1601, %v1566, 0
      %v1819 = vsel %vm1601, %v1567, 0
      %v1822 = vsel %vm1601, %v1568, 0
      %v1825 = vsel %vm1601, %v1569, 0
      %v1828 = vsel %vm1601, %v1570, 0
      %v1831 = vsel %vm1601, %v1571, 0
      %v1834 = vsel %vm1601, %v1572, 0
      %v1837 = vsel %vm1601, %v1573, 0
      %v1840 = vsel %vm1601, %v1574, 0
      %v1843 = vsel %vm1601, %v1575, 0
      %v1846 = vsel %vm1601, %v1576, 0
      %v1849 = vsel %vm1601, %v1577, 0
      %v1852 = vsel %vm1601, %v1578, 0
      %v1855 = vsel %vm1601, %v1579, 0
      %v1858 = vsel %vm1601, %v1580, 0
      %v1861 = vsel %vm1601, %v1581, 0
      %v1864 = vsel %vm1601, %v1582, 0
      %v1867 = vsel %vm1601, %v1583, 0
      %v1870 = vsel %vm1601, %v1584, 0
      %v1873 = vsel %vm1601, %v1585, 0
      %v1876 = vsel %vm1601, %v1586, 0
      %v1879 = vsel %vm1601, %v1587, 0
      %v1882 = vsel %vm1601, %v1588, 0
      %v1885 = vsel %vm1601, %v1589, 0
      %v1888 = vsel %vm1601, %v1590, 0
      %vm1890 = vcmask 1043456
      %v1892 = vsel %vm1890, %v1593, 0
      %v1895 = vsel %vm1890, %v1594, 0
      %1897 = vmatpush.msra.mxu0 0.0
      %1898 = vmatpush.msra.mxu0 0.0
      %1899 = vmatpush.msra.mxu0 0.0
      %1900 = vmatpush.msra.mxu0 0.0
      %1901 = vmatpush.msra.mxu0 0.0
      %1902 = vmatpush.msra.mxu0 0.0
      %1903 = vmatpush.msra.mxu0 0.0
      %1904 = vmatpush.msra.mxu0 0.0
      %1905 = vmatpush.msra.mxu0 0.0
      %1906 = vmatpush.msra.mxu0 0.0
      %1907 = vmatpush.msra.mxu0 0.0
      %1908 = vmatpush.msra.mxu0 0.0
      %1909 = vmatpush.msra.mxu0 0.0
      %1910 = vmatpush.msra.mxu0 0.0
      %1911 = vmatpush.msra.mxu0 %v1892
      %1912 = vmatpush.msra.mxu0 %v1591
      %1913 = vmatmul.f32.gmra.mxu0 %v1603
      %v1914 = vpop.f32.mrf.mxu0
      %v1915 = vadd.f32 %v1597, %v1914
      %1916 = vmatmul.f32.gmra.mxu0 %v1606
      %v1917 = vpop.f32.mrf.mxu0
      %v1918 = vadd.f32 %v1597, %v1917
      %1919 = vmatmul.f32.gmra.mxu0 %v1609
      %v1920 = vpop.f32.mrf.mxu0
      %v1921 = vadd.f32 %v1597, %v1920
      %1922 = vmatmul.f32.gmra.mxu0 %v1612
      %v1923 = vpop.f32.mrf.mxu0
      %v1924 = vadd.f32 %v1597, %v1923
      %1925 = vmatmul.f32.gmra.mxu0 %v1615
      %v1926 = vpop.f32.mrf.mxu0
      %v1927 = vadd.f32 %v1597, %v1926
      %1928 = vmatmul.f32.gmra.mxu0 %v1618
      %v1929 = vpop.f32.mrf.mxu0
      %v1930 = vadd.f32 %v1597, %v1929
      %1931 = vmatmul.f32.gmra.mxu0 %v1621
      %v1932 = vpop.f32.mrf.mxu0
      %v1933 = vadd.f32 %v1597, %v1932
      %1934 = vmatmul.f32.gmra.mxu0 %v1624
      %v1935 = vpop.f32.mrf.mxu0
      %v1936 = vadd.f32 %v1597, %v1935
      %1937 = vmatmul.f32.gmra.mxu0 %v1627
      %v1938 = vpop.f32.mrf.mxu0
      %v1939 = vadd.f32 %v1597, %v1938
      %1940 = vmatmul.f32.gmra.mxu0 %v1630
      %v1941 = vpop.f32.mrf.mxu0
      %v1942 = vadd.f32 %v1597, %v1941
      %1943 = vmatmul.f32.gmra.mxu0 %v1633
      %v1944 = vpop.f32.mrf.mxu0
      %v1945 = vadd.f32 %v1597, %v1944
      %1946 = vmatmul.f32.gmra.mxu0 %v1636
      %v1947 = vpop.f32.mrf.mxu0
      %v1948 = vadd.f32 %v1597, %v1947
      %1949 = vmatmul.f32.gmra.mxu0 %v1639
      %v1950 = vpop.f32.mrf.mxu0
      %v1951 = vadd.f32 %v1597, %v1950
      %1952 = vmatmul.f32.gmra.mxu0 %v1642
      %v1953 = vpop.f32.mrf.mxu0
      %v1954 = vadd.f32 %v1597, %v1953
      %1955 = vmatmul.f32.gmra.mxu0 %v1645
      %v1956 = vpop.f32.mrf.mxu0
      %v1957 = vadd.f32 %v1597, %v1956
      %1958 = vmatmul.f32.gmra.mxu0 %v1648
      %v1959 = vpop.f32.mrf.mxu0
      %v1960 = vadd.f32 %v1597, %v1959
      %1961 = vmatmul.f32.gmra.mxu0 %v1651
      %v1962 = vpop.f32.mrf.mxu0
      %v1963 = vadd.f32 %v1597, %v1962
      %1964 = vmatmul.f32.gmra.mxu0 %v1654
      %v1965 = vpop.f32.mrf.mxu0
      %v1966 = vadd.f32 %v1597, %v1965
      %1967 = vmatmul.f32.gmra.mxu0 %v1657
      %v1968 = vpop.f32.mrf.mxu0
      %v1969 = vadd.f32 %v1597, %v1968
      %1970 = vmatmul.f32.gmra.mxu0 %v1660
      %v1971 = vpop.f32.mrf.mxu0
      %v1972 = vadd.f32 %v1597, %v1971
      %1973 = vmatmul.f32.gmra.mxu0 %v1663
      %v1974 = vpop.f32.mrf.mxu0
      %v1975 = vadd.f32 %v1597, %v1974
      %1976 = vmatmul.f32.gmra.mxu0 %v1666
      %v1977 = vpop.f32.mrf.mxu0
      %v1978 = vadd.f32 %v1597, %v1977
      %1979 = vmatmul.f32.gmra.mxu0 %v1669
      %v1980 = vpop.f32.mrf.mxu0
      %v1981 = vadd.f32 %v1597, %v1980
      %1982 = vmatmul.f32.gmra.mxu0 %v1672
      %v1983 = vpop.f32.mrf.mxu0
      %v1984 = vadd.f32 %v1597, %v1983
      %1985 = vmatmul.f32.gmra.mxu0 %v1675
      %v1986 = vpop.f32.mrf.mxu0
      %v1987 = vadd.f32 %v1597, %v1986
      %1988 = vmatmul.f32.gmra.mxu0 %v1678
      %v1989 = vpop.f32.mrf.mxu0
      %v1990 = vadd.f32 %v1597, %v1989
      %1991 = vmatmul.f32.gmra.mxu0 %v1681
      %v1992 = vpop.f32.mrf.mxu0
      %v1993 = vadd.f32 %v1597, %v1992
      %1994 = vmatmul.f32.gmra.mxu0 %v1684
      %v1995 = vpop.f32.mrf.mxu0
      %v1996 = vadd.f32 %v1597, %v1995
      %1997 = vmatmul.f32.gmra.mxu0 %v1687
      %v1998 = vpop.f32.mrf.mxu0
      %v1999 = vadd.f32 %v1597, %v1998
      %2000 = vmatmul.f32.gmra.mxu0 %v1690
      %v2001 = vpop.f32.mrf.mxu0
      %v2002 = vadd.f32 %v1597, %v2001
      %2003 = vmatmul.f32.gmra.mxu0 %v1693
      %v2004 = vpop.f32.mrf.mxu0
      %v2005 = vadd.f32 %v1597, %v2004
      %2006 = vmatmul.f32.gmra.mxu0 %v1696
      %v2007 = vpop.f32.mrf.mxu0
      %v2008 = vadd.f32 %v1597, %v2007
      %2009 = vmatmul.f32.gmra.mxu0 %v1699
      %v2010 = vpop.f32.mrf.mxu0
      %v2011 = vadd.f32 %v1597, %v2010
      %2012 = vmatmul.f32.gmra.mxu0 %v1702
      %v2013 = vpop.f32.mrf.mxu0
      %v2014 = vadd.f32 %v1597, %v2013
      %2015 = vmatmul.f32.gmra.mxu0 %v1705
      %v2016 = vpop.f32.mrf.mxu0
      %v2017 = vadd.f32 %v1597, %v2016
      %2018 = vmatmul.f32.gmra.mxu0 %v1708
      %v2019 = vpop.f32.mrf.mxu0
      %v2020 = vadd.f32 %v1597, %v2019
      %2021 = vmatmul.f32.gmra.mxu0 %v1711
      %v2022 = vpop.f32.mrf.mxu0
      %v2023 = vadd.f32 %v1597, %v2022
      %2024 = vmatmul.f32.gmra.mxu0 %v1714
      %v2025 = vpop.f32.mrf.mxu0
      %v2026 = vadd.f32 %v1597, %v2025
      %2027 = vmatmul.f32.gmra.mxu0 %v1717
      %v2028 = vpop.f32.mrf.mxu0
      %v2029 = vadd.f32 %v1597, %v2028
      %2030 = vmatmul.f32.gmra.mxu0 %v1720
      %v2031 = vpop.f32.mrf.mxu0
      %v2032 = vadd.f32 %v1597, %v2031
      %2033 = vmatmul.f32.gmra.mxu0 %v1723
      %v2034 = vpop.f32.mrf.mxu0
      %v2035 = vadd.f32 %v1597, %v2034
      %2036 = vmatmul.f32.gmra.mxu0 %v1726
      %v2037 = vpop.f32.mrf.mxu0
      %v2038 = vadd.f32 %v1597, %v2037
      %2039 = vmatmul.f32.gmra.mxu0 %v1729
      %v2040 = vpop.f32.mrf.mxu0
      %v2041 = vadd.f32 %v1597, %v2040
      %2042 = vmatmul.f32.gmra.mxu0 %v1732
      %v2043 = vpop.f32.mrf.mxu0
      %v2044 = vadd.f32 %v1597, %v2043
      %2045 = vmatmul.f32.gmra.mxu0 %v1735
      %v2046 = vpop.f32.mrf.mxu0
      %v2047 = vadd.f32 %v1597, %v2046
      %2048 = vmatmul.f32.gmra.mxu0 %v1738
      %v2049 = vpop.f32.mrf.mxu0
      %v2050 = vadd.f32 %v1597, %v2049
      %2051 = vmatmul.f32.gmra.mxu0 %v1741
      %v2052 = vpop.f32.mrf.mxu0
      %v2053 = vadd.f32 %v1597, %v2052
      %2054 = vmatmul.f32.gmra.mxu0 %v1744
      %v2055 = vpop.f32.mrf.mxu0
      %v2056 = vadd.f32 %v1597, %v2055
      %2057 = vmatmul.f32.gmra.mxu0 %v1747
      %v2058 = vpop.f32.mrf.mxu0
      %v2059 = vadd.f32 %v1597, %v2058
      %2060 = vmatmul.f32.gmra.mxu0 %v1750
      %v2061 = vpop.f32.mrf.mxu0
      %v2062 = vadd.f32 %v1597, %v2061
      %2063 = vmatmul.f32.gmra.mxu0 %v1753
      %v2064 = vpop.f32.mrf.mxu0
      %v2065 = vadd.f32 %v1597, %v2064
      %2066 = vmatmul.f32.gmra.mxu0 %v1756
      %v2067 = vpop.f32.mrf.mxu0
      %v2068 = vadd.f32 %v1597, %v2067
      %2069 = vmatmul.f32.gmra.mxu0 %v1759
      %v2070 = vpop.f32.mrf.mxu0
      %v2071 = vadd.f32 %v1597, %v2070
      %2072 = vmatmul.f32.gmra.mxu0 %v1762
      %v2073 = vpop.f32.mrf.mxu0
      %v2074 = vadd.f32 %v1597, %v2073
      %2075 = vmatmul.f32.gmra.mxu0 %v1765
      %v2076 = vpop.f32.mrf.mxu0
      %v2077 = vadd.f32 %v1597, %v2076
      %2078 = vmatmul.f32.gmra.mxu0 %v1768
      %v2079 = vpop.f32.mrf.mxu0
      %v2080 = vadd.f32 %v1597, %v2079
      %2081 = vmatmul.f32.gmra.mxu0 %v1771
      %v2082 = vpop.f32.mrf.mxu0
      %v2083 = vadd.f32 %v1597, %v2082
      %2084 = vmatmul.f32.gmra.mxu0 %v1774
      %v2085 = vpop.f32.mrf.mxu0
      %v2086 = vadd.f32 %v1597, %v2085
      %2087 = vmatmul.f32.gmra.mxu0 %v1777
      %v2088 = vpop.f32.mrf.mxu0
      %v2089 = vadd.f32 %v1597, %v2088
      %2090 = vmatmul.f32.gmra.mxu0 %v1780
      %v2091 = vpop.f32.mrf.mxu0
      %v2092 = vadd.f32 %v1597, %v2091
      %2093 = vmatmul.f32.gmra.mxu0 %v1783
      %v2094 = vpop.f32.mrf.mxu0
      %v2095 = vadd.f32 %v1597, %v2094
      %2096 = vmatmul.f32.gmra.mxu0 %v1786
      %v2097 = vpop.f32.mrf.mxu0
      %v2098 = vadd.f32 %v1597, %v2097
      %2099 = vmatmul.f32.gmra.mxu0 %v1789
      %v2100 = vpop.f32.mrf.mxu0
      %v2101 = vadd.f32 %v1597, %v2100
      %2102 = vmatmul.f32.gmra.mxu0 %v1792
      %v2103 = vpop.f32.mrf.mxu0
      %v2104 = vadd.f32 %v1597, %v2103
      %2105 = vmatmul.f32.gmra.mxu0 %v1795
      %v2106 = vpop.f32.mrf.mxu0
      %v2107 = vadd.f32 %v1597, %v2106
      %2108 = vmatmul.f32.gmra.mxu0 %v1798
      %v2109 = vpop.f32.mrf.mxu0
      %v2110 = vadd.f32 %v1597, %v2109
      %2111 = vmatmul.f32.gmra.mxu0 %v1801
      %v2112 = vpop.f32.mrf.mxu0
      %v2113 = vadd.f32 %v1597, %v2112
      %2114 = vmatmul.f32.gmra.mxu0 %v1804
      %v2115 = vpop.f32.mrf.mxu0
      %v2116 = vadd.f32 %v1597, %v2115
      %2117 = vmatmul.f32.gmra.mxu0 %v1807
      %v2118 = vpop.f32.mrf.mxu0
      %v2119 = vadd.f32 %v1597, %v2118
      %2120 = vmatmul.f32.gmra.mxu0 %v1810
      %v2121 = vpop.f32.mrf.mxu0
      %v2122 = vadd.f32 %v1597, %v2121
      %2123 = vmatmul.f32.gmra.mxu0 %v1813
      %v2124 = vpop.f32.mrf.mxu0
      %v2125 = vadd.f32 %v1597, %v2124
      %2126 = vmatmul.f32.gmra.mxu0 %v1816
      %v2127 = vpop.f32.mrf.mxu0
      %v2128 = vadd.f32 %v1597, %v2127
      %2129 = vmatmul.f32.gmra.mxu0 %v1819
      %v2130 = vpop.f32.mrf.mxu0
      %v2131 = vadd.f32 %v1597, %v2130
      %2132 = vmatmul.f32.gmra.mxu0 %v1822
      %v2133 = vpop.f32.mrf.mxu0
      %v2134 = vadd.f32 %v1597, %v2133
      %2135 = vmatmul.f32.gmra.mxu0 %v1825
      %v2136 = vpop.f32.mrf.mxu0
      %v2137 = vadd.f32 %v1597, %v2136
      %2138 = vmatmul.f32.gmra.mxu0 %v1828
      %v2139 = vpop.f32.mrf.mxu0
      %v2140 = vadd.f32 %v1597, %v2139
      %2141 = vmatmul.f32.gmra.mxu0 %v1831
      %v2142 = vpop.f32.mrf.mxu0
      %v2143 = vadd.f32 %v1597, %v2142
      %2144 = vmatmul.f32.gmra.mxu0 %v1834
      %v2145 = vpop.f32.mrf.mxu0
      %v2146 = vadd.f32 %v1597, %v2145
      %2147 = vmatmul.f32.gmra.mxu0 %v1837
      %v2148 = vpop.f32.mrf.mxu0
      %v2149 = vadd.f32 %v1597, %v2148
      %2150 = vmatmul.f32.gmra.mxu0 %v1840
      %v2151 = vpop.f32.mrf.mxu0
      %v2152 = vadd.f32 %v1597, %v2151
      %2153 = vmatmul.f32.gmra.mxu0 %v1843
      %v2154 = vpop.f32.mrf.mxu0
      %v2155 = vadd.f32 %v1597, %v2154
      %2156 = vmatmul.f32.gmra.mxu0 %v1846
      %v2157 = vpop.f32.mrf.mxu0
      %v2158 = vadd.f32 %v1597, %v2157
      %2159 = vmatmul.f32.gmra.mxu0 %v1849
      %v2160 = vpop.f32.mrf.mxu0
      %v2161 = vadd.f32 %v1597, %v2160
      %2162 = vmatmul.f32.gmra.mxu0 %v1852
      %v2163 = vpop.f32.mrf.mxu0
      %v2164 = vadd.f32 %v1597, %v2163
      %2165 = vmatmul.f32.gmra.mxu0 %v1855
      %v2166 = vpop.f32.mrf.mxu0
      %v2167 = vadd.f32 %v1597, %v2166
      %2168 = vmatmul.f32.gmra.mxu0 %v1858
      %v2169 = vpop.f32.mrf.mxu0
      %v2170 = vadd.f32 %v1597, %v2169
      %2171 = vmatmul.f32.gmra.mxu0 %v1861
      %v2172 = vpop.f32.mrf.mxu0
      %v2173 = vadd.f32 %v1597, %v2172
      %2174 = vmatmul.f32.gmra.mxu0 %v1864
      %v2175 = vpop.f32.mrf.mxu0
      %v2176 = vadd.f32 %v1597, %v2175
      %2177 = vmatmul.f32.gmra.mxu0 %v1867
      %v2178 = vpop.f32.mrf.mxu0
      %v2179 = vadd.f32 %v1597, %v2178
      %2180 = vmatmul.f32.gmra.mxu0 %v1870
      %v2181 = vpop.f32.mrf.mxu0
      %v2182 = vadd.f32 %v1597, %v2181
      %2183 = vmatmul.f32.gmra.mxu0 %v1873
      %v2184 = vpop.f32.mrf.mxu0
      %v2185 = vadd.f32 %v1597, %v2184
      %2186 = vmatmul.f32.gmra.mxu0 %v1876
      %v2187 = vpop.f32.mrf.mxu0
      %v2188 = vadd.f32 %v1597, %v2187
      %2189 = vmatmul.f32.gmra.mxu0 %v1879
      %v2190 = vpop.f32.mrf.mxu0
      %v2191 = vadd.f32 %v1597, %v2190
      %2192 = vmatmul.f32.gmra.mxu0 %v1882
      %v2193 = vpop.f32.mrf.mxu0
      %v2194 = vadd.f32 %v1597, %v2193
      %2195 = vmatmul.f32.gmra.mxu0 %v1885
      %v2196 = vpop.f32.mrf.mxu0
      %v2197 = vadd.f32 %v1597, %v2196
      %2198 = vmatmul.f32.gmra.mxu0 %v1888
      %v2199 = vpop.f32.mrf.mxu0
      %v2200 = vadd.f32 %v1597, %v2199
      %2201 = vdwg.mxu0
      %2202 = vmatpush.msra.mxu0 0.0
      %2203 = vmatpush.msra.mxu0 0.0
      %2204 = vmatpush.msra.mxu0 0.0
      %2205 = vmatpush.msra.mxu0 0.0
      %2206 = vmatpush.msra.mxu0 0.0
      %2207 = vmatpush.msra.mxu0 0.0
      %2208 = vmatpush.msra.mxu0 0.0
      %2209 = vmatpush.msra.mxu0 0.0
      %2210 = vmatpush.msra.mxu0 0.0
      %2211 = vmatpush.msra.mxu0 0.0
      %2212 = vmatpush.msra.mxu0 0.0
      %2213 = vmatpush.msra.mxu0 0.0
      %2214 = vmatpush.msra.mxu0 0.0
      %2215 = vmatpush.msra.mxu0 0.0
      %2216 = vmatpush.msra.mxu0 %v1895
      %2217 = vmatpush.msra.mxu0 %v1592
      %2218 = vmatmul.f32.gmra.mxu0 %v1603
      %v2219 = vpop.f32.mrf.mxu0
      %v2220 = vadd.f32 %v1598, %v2219
      %2221 = vmatmul.f32.gmra.mxu0 %v1606
      %v2222 = vpop.f32.mrf.mxu0
      %v2223 = vadd.f32 %v1598, %v2222
      %2224 = vmatmul.f32.gmra.mxu0 %v1609
      %v2225 = vpop.f32.mrf.mxu0
      %v2226 = vadd.f32 %v1598, %v2225
      %2227 = vmatmul.f32.gmra.mxu0 %v1612
      %v2228 = vpop.f32.mrf.mxu0
      %v2229 = vadd.f32 %v1598, %v2228
      %2230 = vmatmul.f32.gmra.mxu0 %v1615
      %v2231 = vpop.f32.mrf.mxu0
      %v2232 = vadd.f32 %v1598, %v2231
      %2233 = vmatmul.f32.gmra.mxu0 %v1618
      %v2234 = vpop.f32.mrf.mxu0
      %v2235 = vadd.f32 %v1598, %v2234
      %2236 = vmatmul.f32.gmra.mxu0 %v1621
      %v2237 = vpop.f32.mrf.mxu0
      %v2238 = vadd.f32 %v1598, %v2237
      %2239 = vmatmul.f32.gmra.mxu0 %v1624
      %v2240 = vpop.f32.mrf.mxu0
      %v2241 = vadd.f32 %v1598, %v2240
      %2242 = vmatmul.f32.gmra.mxu0 %v1627
      %v2243 = vpop.f32.mrf.mxu0
      %v2244 = vadd.f32 %v1598, %v2243
      %2245 = vmatmul.f32.gmra.mxu0 %v1630
      %v2246 = vpop.f32.mrf.mxu0
      %v2247 = vadd.f32 %v1598, %v2246
      %2248 = vmatmul.f32.gmra.mxu0 %v1633
      %v2249 = vpop.f32.mrf.mxu0
      %v2250 = vadd.f32 %v1598, %v2249
      %2251 = vmatmul.f32.gmra.mxu0 %v1636
      %v2252 = vpop.f32.mrf.mxu0
      %v2253 = vadd.f32 %v1598, %v2252
      %2254 = vmatmul.f32.gmra.mxu0 %v1639
      %v2255 = vpop.f32.mrf.mxu0
      %v2256 = vadd.f32 %v1598, %v2255
      %2257 = vmatmul.f32.gmra.mxu0 %v1642
      %v2258 = vpop.f32.mrf.mxu0
      %v2259 = vadd.f32 %v1598, %v2258
      %2260 = vmatmul.f32.gmra.mxu0 %v1645
      %v2261 = vpop.f32.mrf.mxu0
      %v2262 = vadd.f32 %v1598, %v2261
      %2263 = vmatmul.f32.gmra.mxu0 %v1648
      %v2264 = vpop.f32.mrf.mxu0
      %v2265 = vadd.f32 %v1598, %v2264
      %2266 = vmatmul.f32.gmra.mxu0 %v1651
      %v2267 = vpop.f32.mrf.mxu0
      %v2268 = vadd.f32 %v1598, %v2267
      %2269 = vmatmul.f32.gmra.mxu0 %v1654
      %v2270 = vpop.f32.mrf.mxu0
      %v2271 = vadd.f32 %v1598, %v2270
      %2272 = vmatmul.f32.gmra.mxu0 %v1657
      %v2273 = vpop.f32.mrf.mxu0
      %v2274 = vadd.f32 %v1598, %v2273
      %2275 = vmatmul.f32.gmra.mxu0 %v1660
      %v2276 = vpop.f32.mrf.mxu0
      %v2277 = vadd.f32 %v1598, %v2276
      %2278 = vmatmul.f32.gmra.mxu0 %v1663
      %v2279 = vpop.f32.mrf.mxu0
      %v2280 = vadd.f32 %v1598, %v2279
      %2281 = vmatmul.f32.gmra.mxu0 %v1666
      %v2282 = vpop.f32.mrf.mxu0
      %v2283 = vadd.f32 %v1598, %v2282
      %2284 = vmatmul.f32.gmra.mxu0 %v1669
      %v2285 = vpop.f32.mrf.mxu0
      %v2286 = vadd.f32 %v1598, %v2285
      %2287 = vmatmul.f32.gmra.mxu0 %v1672
      %v2288 = vpop.f32.mrf.mxu0
      %v2289 = vadd.f32 %v1598, %v2288
      %2290 = vmatmul.f32.gmra.mxu0 %v1675
      %v2291 = vpop.f32.mrf.mxu0
      %v2292 = vadd.f32 %v1598, %v2291
      %2293 = vmatmul.f32.gmra.mxu0 %v1678
      %v2294 = vpop.f32.mrf.mxu0
      %v2295 = vadd.f32 %v1598, %v2294
      %2296 = vmatmul.f32.gmra.mxu0 %v1681
      %v2297 = vpop.f32.mrf.mxu0
      %v2298 = vadd.f32 %v1598, %v2297
      %2299 = vmatmul.f32.gmra.mxu0 %v1684
      %v2300 = vpop.f32.mrf.mxu0
      %v2301 = vadd.f32 %v1598, %v2300
      %2302 = vmatmul.f32.gmra.mxu0 %v1687
      %v2303 = vpop.f32.mrf.mxu0
      %v2304 = vadd.f32 %v1598, %v2303
      %2305 = vmatmul.f32.gmra.mxu0 %v1690
      %v2306 = vpop.f32.mrf.mxu0
      %v2307 = vadd.f32 %v1598, %v2306
      %2308 = vmatmul.f32.gmra.mxu0 %v1693
      %v2309 = vpop.f32.mrf.mxu0
      %v2310 = vadd.f32 %v1598, %v2309
      %2311 = vmatmul.f32.gmra.mxu0 %v1696
      %v2312 = vpop.f32.mrf.mxu0
      %v2313 = vadd.f32 %v1598, %v2312
      %2314 = vmatmul.f32.gmra.mxu0 %v1699
      %v2315 = vpop.f32.mrf.mxu0
      %v2316 = vadd.f32 %v1598, %v2315
      %2317 = vmatmul.f32.gmra.mxu0 %v1702
      %v2318 = vpop.f32.mrf.mxu0
      %v2319 = vadd.f32 %v1598, %v2318
      %2320 = vmatmul.f32.gmra.mxu0 %v1705
      %v2321 = vpop.f32.mrf.mxu0
      %v2322 = vadd.f32 %v1598, %v2321
      %2323 = vmatmul.f32.gmra.mxu0 %v1708
      %v2324 = vpop.f32.mrf.mxu0
      %v2325 = vadd.f32 %v1598, %v2324
      %2326 = vmatmul.f32.gmra.mxu0 %v1711
      %v2327 = vpop.f32.mrf.mxu0
      %v2328 = vadd.f32 %v1598, %v2327
      %2329 = vmatmul.f32.gmra.mxu0 %v1714
      %v2330 = vpop.f32.mrf.mxu0
      %v2331 = vadd.f32 %v1598, %v2330
      %2332 = vmatmul.f32.gmra.mxu0 %v1717
      %v2333 = vpop.f32.mrf.mxu0
      %v2334 = vadd.f32 %v1598, %v2333
      %2335 = vmatmul.f32.gmra.mxu0 %v1720
      %v2336 = vpop.f32.mrf.mxu0
      %v2337 = vadd.f32 %v1598, %v2336
      %2338 = vmatmul.f32.gmra.mxu0 %v1723
      %v2339 = vpop.f32.mrf.mxu0
      %v2340 = vadd.f32 %v1598, %v2339
      %2341 = vmatmul.f32.gmra.mxu0 %v1726
      %v2342 = vpop.f32.mrf.mxu0
      %v2343 = vadd.f32 %v1598, %v2342
      %2344 = vmatmul.f32.gmra.mxu0 %v1729
      %v2345 = vpop.f32.mrf.mxu0
      %v2346 = vadd.f32 %v1598, %v2345
      %2347 = vmatmul.f32.gmra.mxu0 %v1732
      %v2348 = vpop.f32.mrf.mxu0
      %v2349 = vadd.f32 %v1598, %v2348
      %2350 = vmatmul.f32.gmra.mxu0 %v1735
      %v2351 = vpop.f32.mrf.mxu0
      %v2352 = vadd.f32 %v1598, %v2351
      %2353 = vmatmul.f32.gmra.mxu0 %v1738
      %v2354 = vpop.f32.mrf.mxu0
      %v2355 = vadd.f32 %v1598, %v2354
      %2356 = vmatmul.f32.gmra.mxu0 %v1741
      %v2357 = vpop.f32.mrf.mxu0
      %v2358 = vadd.f32 %v1598, %v2357
      %2359 = vmatmul.f32.gmra.mxu0 %v1744
      %v2360 = vpop.f32.mrf.mxu0
      %v2361 = vadd.f32 %v1598, %v2360
      %2362 = vmatmul.f32.gmra.mxu0 %v1747
      %v2363 = vpop.f32.mrf.mxu0
      %v2364 = vadd.f32 %v1598, %v2363
      %2365 = vmatmul.f32.gmra.mxu0 %v1750
      %v2366 = vpop.f32.mrf.mxu0
      %v2367 = vadd.f32 %v1598, %v2366
      %2368 = vmatmul.f32.gmra.mxu0 %v1753
      %v2369 = vpop.f32.mrf.mxu0
      %v2370 = vadd.f32 %v1598, %v2369
      %2371 = vmatmul.f32.gmra.mxu0 %v1756
      %v2372 = vpop.f32.mrf.mxu0
      %v2373 = vadd.f32 %v1598, %v2372
      %2374 = vmatmul.f32.gmra.mxu0 %v1759
      %v2375 = vpop.f32.mrf.mxu0
      %v2376 = vadd.f32 %v1598, %v2375
      %2377 = vmatmul.f32.gmra.mxu0 %v1762
      %v2378 = vpop.f32.mrf.mxu0
      %v2379 = vadd.f32 %v1598, %v2378
      %2380 = vmatmul.f32.gmra.mxu0 %v1765
      %v2381 = vpop.f32.mrf.mxu0
      %v2382 = vadd.f32 %v1598, %v2381
      %2383 = vmatmul.f32.gmra.mxu0 %v1768
      %v2384 = vpop.f32.mrf.mxu0
      %v2385 = vadd.f32 %v1598, %v2384
      %2386 = vmatmul.f32.gmra.mxu0 %v1771
      %v2387 = vpop.f32.mrf.mxu0
      %v2388 = vadd.f32 %v1598, %v2387
      %2389 = vmatmul.f32.gmra.mxu0 %v1774
      %v2390 = vpop.f32.mrf.mxu0
      %v2391 = vadd.f32 %v1598, %v2390
      %2392 = vmatmul.f32.gmra.mxu0 %v1777
      %v2393 = vpop.f32.mrf.mxu0
      %v2394 = vadd.f32 %v1598, %v2393
      %2395 = vmatmul.f32.gmra.mxu0 %v1780
      %v2396 = vpop.f32.mrf.mxu0
      %v2397 = vadd.f32 %v1598, %v2396
      %2398 = vmatmul.f32.gmra.mxu0 %v1783
      %v2399 = vpop.f32.mrf.mxu0
      %v2400 = vadd.f32 %v1598, %v2399
      %2401 = vmatmul.f32.gmra.mxu0 %v1786
      %v2402 = vpop.f32.mrf.mxu0
      %v2403 = vadd.f32 %v1598, %v2402
      %2404 = vmatmul.f32.gmra.mxu0 %v1789
      %v2405 = vpop.f32.mrf.mxu0
      %v2406 = vadd.f32 %v1598, %v2405
      %2407 = vmatmul.f32.gmra.mxu0 %v1792
      %v2408 = vpop.f32.mrf.mxu0
      %v2409 = vadd.f32 %v1598, %v2408
      %2410 = vmatmul.f32.gmra.mxu0 %v1795
      %v2411 = vpop.f32.mrf.mxu0
      %v2412 = vadd.f32 %v1598, %v2411
      %2413 = vmatmul.f32.gmra.mxu0 %v1798
      %v2414 = vpop.f32.mrf.mxu0
      %v2415 = vadd.f32 %v1598, %v2414
      %2416 = vmatmul.f32.gmra.mxu0 %v1801
      %v2417 = vpop.f32.mrf.mxu0
      %v2418 = vadd.f32 %v1598, %v2417
      %2419 = vmatmul.f32.gmra.mxu0 %v1804
      %v2420 = vpop.f32.mrf.mxu0
      %v2421 = vadd.f32 %v1598, %v2420
      %2422 = vmatmul.f32.gmra.mxu0 %v1807
      %v2423 = vpop.f32.mrf.mxu0
      %v2424 = vadd.f32 %v1598, %v2423
      %2425 = vmatmul.f32.gmra.mxu0 %v1810
      %v2426 = vpop.f32.mrf.mxu0
      %v2427 = vadd.f32 %v1598, %v2426
      %2428 = vmatmul.f32.gmra.mxu0 %v1813
      %v2429 = vpop.f32.mrf.mxu0
      %v2430 = vadd.f32 %v1598, %v2429
      %2431 = vmatmul.f32.gmra.mxu0 %v1816
      %v2432 = vpop.f32.mrf.mxu0
      %v2433 = vadd.f32 %v1598, %v2432
      %2434 = vmatmul.f32.gmra.mxu0 %v1819
      %v2435 = vpop.f32.mrf.mxu0
      %v2436 = vadd.f32 %v1598, %v2435
      %2437 = vmatmul.f32.gmra.mxu0 %v1822
      %v2438 = vpop.f32.mrf.mxu0
      %v2439 = vadd.f32 %v1598, %v2438
      %2440 = vmatmul.f32.gmra.mxu0 %v1825
      %v2441 = vpop.f32.mrf.mxu0
      %v2442 = vadd.f32 %v1598, %v2441
      %2443 = vmatmul.f32.gmra.mxu0 %v1828
      %v2444 = vpop.f32.mrf.mxu0
      %v2445 = vadd.f32 %v1598, %v2444
      %2446 = vmatmul.f32.gmra.mxu0 %v1831
      %v2447 = vpop.f32.mrf.mxu0
      %v2448 = vadd.f32 %v1598, %v2447
      %2449 = vmatmul.f32.gmra.mxu0 %v1834
      %v2450 = vpop.f32.mrf.mxu0
      %v2451 = vadd.f32 %v1598, %v2450
      %2452 = vmatmul.f32.gmra.mxu0 %v1837
      %v2453 = vpop.f32.mrf.mxu0
      %v2454 = vadd.f32 %v1598, %v2453
      %2455 = vmatmul.f32.gmra.mxu0 %v1840
      %v2456 = vpop.f32.mrf.mxu0
      %v2457 = vadd.f32 %v1598, %v2456
      %2458 = vmatmul.f32.gmra.mxu0 %v1843
      %v2459 = vpop.f32.mrf.mxu0
      %v2460 = vadd.f32 %v1598, %v2459
      %2461 = vmatmul.f32.gmra.mxu0 %v1846
      %v2462 = vpop.f32.mrf.mxu0
      %v2463 = vadd.f32 %v1598, %v2462
      %2464 = vmatmul.f32.gmra.mxu0 %v1849
      %v2465 = vpop.f32.mrf.mxu0
      %v2466 = vadd.f32 %v1598, %v2465
      %2467 = vmatmul.f32.gmra.mxu0 %v1852
      %v2468 = vpop.f32.mrf.mxu0
      %v2469 = vadd.f32 %v1598, %v2468
      %2470 = vmatmul.f32.gmra.mxu0 %v1855
      %v2471 = vpop.f32.mrf.mxu0
      %v2472 = vadd.f32 %v1598, %v2471
      %2473 = vmatmul.f32.gmra.mxu0 %v1858
      %v2474 = vpop.f32.mrf.mxu0
      %v2475 = vadd.f32 %v1598, %v2474
      %2476 = vmatmul.f32.gmra.mxu0 %v1861
      %v2477 = vpop.f32.mrf.mxu0
      %v2478 = vadd.f32 %v1598, %v2477
      %2479 = vmatmul.f32.gmra.mxu0 %v1864
      %v2480 = vpop.f32.mrf.mxu0
      %v2481 = vadd.f32 %v1598, %v2480
      %2482 = vmatmul.f32.gmra.mxu0 %v1867
      %v2483 = vpop.f32.mrf.mxu0
      %v2484 = vadd.f32 %v1598, %v2483
      %2485 = vmatmul.f32.gmra.mxu0 %v1870
      %v2486 = vpop.f32.mrf.mxu0
      %v2487 = vadd.f32 %v1598, %v2486
      %2488 = vmatmul.f32.gmra.mxu0 %v1873
      %v2489 = vpop.f32.mrf.mxu0
      %v2490 = vadd.f32 %v1598, %v2489
      %2491 = vmatmul.f32.gmra.mxu0 %v1876
      %v2492 = vpop.f32.mrf.mxu0
      %v2493 = vadd.f32 %v1598, %v2492
      %2494 = vmatmul.f32.gmra.mxu0 %v1879
      %v2495 = vpop.f32.mrf.mxu0
      %v2496 = vadd.f32 %v1598, %v2495
      %2497 = vmatmul.f32.gmra.mxu0 %v1882
      %v2498 = vpop.f32.mrf.mxu0
      %v2499 = vadd.f32 %v1598, %v2498
      %2500 = vmatmul.f32.gmra.mxu0 %v1885
      %v2501 = vpop.f32.mrf.mxu0
      %v2502 = vadd.f32 %v1598, %v2501
      %2503 = vmatmul.f32.gmra.mxu0 %v1888
      %v2504 = vpop.f32.mrf.mxu0
      %v2505 = vadd.f32 %v1598, %v2504
      %2506 = vdwg.mxu0
      %v2507 = vxor.u32 %v1915, 2147483648
      %v2508 = vxor.u32 %v1918, 2147483648
      %v2509 = vxor.u32 %v1921, 2147483648
      %v2510 = vxor.u32 %v1924, 2147483648
      %v2511 = vxor.u32 %v1927, 2147483648
      %v2512 = vxor.u32 %v1930, 2147483648
      %v2513 = vxor.u32 %v1933, 2147483648
      %v2514 = vxor.u32 %v1936, 2147483648
      %v2515 = vxor.u32 %v1939, 2147483648
      %v2516 = vxor.u32 %v1942, 2147483648
      %v2517 = vxor.u32 %v1945, 2147483648
      %v2518 = vxor.u32 %v1948, 2147483648
      %v2519 = vxor.u32 %v1951, 2147483648
      %v2520 = vxor.u32 %v1954, 2147483648
      %v2521 = vxor.u32 %v1957, 2147483648
      %v2522 = vxor.u32 %v1960, 2147483648
      %v2523 = vxor.u32 %v1963, 2147483648
      %v2524 = vxor.u32 %v1966, 2147483648
      %v2525 = vxor.u32 %v1969, 2147483648
      %v2526 = vxor.u32 %v1972, 2147483648
      %v2527 = vxor.u32 %v1975, 2147483648
      %v2528 = vxor.u32 %v1978, 2147483648
      %v2529 = vxor.u32 %v1981, 2147483648
      %v2530 = vxor.u32 %v1984, 2147483648
      %v2531 = vxor.u32 %v1987, 2147483648
      %v2532 = vxor.u32 %v1990, 2147483648
      %v2533 = vxor.u32 %v1993, 2147483648
      %v2534 = vxor.u32 %v1996, 2147483648
      %v2535 = vxor.u32 %v1999, 2147483648
      %v2536 = vxor.u32 %v2002, 2147483648
      %v2537 = vxor.u32 %v2005, 2147483648
      %v2538 = vxor.u32 %v2008, 2147483648
      %v2539 = vxor.u32 %v2011, 2147483648
      %v2540 = vxor.u32 %v2014, 2147483648
      %v2541 = vxor.u32 %v2017, 2147483648
      %v2542 = vxor.u32 %v2020, 2147483648
      %v2543 = vxor.u32 %v2023, 2147483648
      %v2544 = vxor.u32 %v2026, 2147483648
      %v2545 = vxor.u32 %v2029, 2147483648
      %v2546 = vxor.u32 %v2032, 2147483648
      %v2547 = vxor.u32 %v2035, 2147483648
      %v2548 = vxor.u32 %v2038, 2147483648
      %v2549 = vxor.u32 %v2041, 2147483648
      %v2550 = vxor.u32 %v2044, 2147483648
      %v2551 = vxor.u32 %v2047, 2147483648
      %v2552 = vxor.u32 %v2050, 2147483648
      %v2553 = vxor.u32 %v2053, 2147483648
      %v2554 = vxor.u32 %v2056, 2147483648
      %v2555 = vxor.u32 %v2059, 2147483648
      %v2556 = vxor.u32 %v2062, 2147483648
      %v2557 = vxor.u32 %v2065, 2147483648
      %v2558 = vxor.u32 %v2068, 2147483648
      %v2559 = vxor.u32 %v2071, 2147483648
      %v2560 = vxor.u32 %v2074, 2147483648
      %v2561 = vxor.u32 %v2077, 2147483648
      %v2562 = vxor.u32 %v2080, 2147483648
      %v2563 = vxor.u32 %v2083, 2147483648
      %v2564 = vxor.u32 %v2086, 2147483648
      %v2565 = vxor.u32 %v2089, 2147483648
      %v2566 = vxor.u32 %v2092, 2147483648
      %v2567 = vxor.u32 %v2095, 2147483648
      %v2568 = vxor.u32 %v2098, 2147483648
      %v2569 = vxor.u32 %v2101, 2147483648
      %v2570 = vxor.u32 %v2104, 2147483648
      %v2571 = vxor.u32 %v2107, 2147483648
      %v2572 = vxor.u32 %v2110, 2147483648
      %v2573 = vxor.u32 %v2113, 2147483648
      %v2574 = vxor.u32 %v2116, 2147483648
      %v2575 = vxor.u32 %v2119, 2147483648
      %v2576 = vxor.u32 %v2122, 2147483648
      %v2577 = vxor.u32 %v2125, 2147483648
      %v2578 = vxor.u32 %v2128, 2147483648
      %v2579 = vxor.u32 %v2131, 2147483648
      %v2580 = vxor.u32 %v2134, 2147483648
      %v2581 = vxor.u32 %v2137, 2147483648
      %v2582 = vxor.u32 %v2140, 2147483648
      %v2583 = vxor.u32 %v2143, 2147483648
      %v2584 = vxor.u32 %v2146, 2147483648
      %v2585 = vxor.u32 %v2149, 2147483648
      %v2586 = vxor.u32 %v2152, 2147483648
      %v2587 = vxor.u32 %v2155, 2147483648
      %v2588 = vxor.u32 %v2158, 2147483648
      %v2589 = vxor.u32 %v2161, 2147483648
      %v2590 = vxor.u32 %v2164, 2147483648
      %v2591 = vxor.u32 %v2167, 2147483648
      %v2592 = vxor.u32 %v2170, 2147483648
      %v2593 = vxor.u32 %v2173, 2147483648
      %v2594 = vxor.u32 %v2176, 2147483648
      %v2595 = vxor.u32 %v2179, 2147483648
      %v2596 = vxor.u32 %v2182, 2147483648
      %v2597 = vxor.u32 %v2185, 2147483648
      %v2598 = vxor.u32 %v2188, 2147483648
      %v2599 = vxor.u32 %v2191, 2147483648
      %v2600 = vxor.u32 %v2194, 2147483648
      %v2601 = vxor.u32 %v2197, 2147483648
      %v2602 = vxor.u32 %v2200, 2147483648
      %v2603 = vmul.f32 %v2507, 1.442695
      %v2604 = vpow.pop %v2603
      %v2605 = vmul.f32 %v2508, 1.442695
      %v2606 = vpow.pop %v2605
      %v2607 = vmul.f32 %v2509, 1.442695
      %v2608 = vpow.pop %v2607
      %v2609 = vmul.f32 %v2510, 1.442695
      %v2610 = vpow.pop %v2609
      %v2611 = vmul.f32 %v2511, 1.442695
      %v2612 = vpow.pop %v2611
      %v2613 = vmul.f32 %v2512, 1.442695
      %v2614 = vpow.pop %v2613
      %v2615 = vmul.f32 %v2513, 1.442695
      %v2616 = vpow.pop %v2615
      %v2617 = vmul.f32 %v2514, 1.442695
      %v2618 = vpow.pop %v2617
      %v2619 = vmul.f32 %v2515, 1.442695
      %v2620 = vpow.pop %v2619
      %v2621 = vmul.f32 %v2516, 1.442695
      %v2622 = vpow.pop %v2621
      %v2623 = vmul.f32 %v2517, 1.442695
      %v2624 = vpow.pop %v2623
      %v2625 = vmul.f32 %v2518, 1.442695
      %v2626 = vpow.pop %v2625
      %v2627 = vmul.f32 %v2519, 1.442695
      %v2628 = vpow.pop %v2627
      %v2629 = vmul.f32 %v2520, 1.442695
      %v2630 = vpow.pop %v2629
      %v2631 = vmul.f32 %v2521, 1.442695
      %v2632 = vpow.pop %v2631
      %v2633 = vmul.f32 %v2522, 1.442695
      %v2634 = vpow.pop %v2633
      %v2635 = vmul.f32 %v2523, 1.442695
      %v2636 = vpow.pop %v2635
      %v2637 = vmul.f32 %v2524, 1.442695
      %v2638 = vpow.pop %v2637
      %v2639 = vmul.f32 %v2525, 1.442695
      %v2640 = vpow.pop %v2639
      %v2641 = vmul.f32 %v2526, 1.442695
      %v2642 = vpow.pop %v2641
      %v2643 = vmul.f32 %v2527, 1.442695
      %v2644 = vpow.pop %v2643
      %v2645 = vmul.f32 %v2528, 1.442695
      %v2646 = vpow.pop %v2645
      %v2647 = vmul.f32 %v2529, 1.442695
      %v2648 = vpow.pop %v2647
      %v2649 = vmul.f32 %v2530, 1.442695
      %v2650 = vpow.pop %v2649
      %v2651 = vmul.f32 %v2531, 1.442695
      %v2652 = vpow.pop %v2651
      %v2653 = vmul.f32 %v2532, 1.442695
      %v2654 = vpow.pop %v2653
      %v2655 = vmul.f32 %v2533, 1.442695
      %v2656 = vpow.pop %v2655
      %v2657 = vmul.f32 %v2534, 1.442695
      %v2658 = vpow.pop %v2657
      %v2659 = vmul.f32 %v2535, 1.442695
      %v2660 = vpow.pop %v2659
      %v2661 = vmul.f32 %v2536, 1.442695
      %v2662 = vpow.pop %v2661
      %v2663 = vmul.f32 %v2537, 1.442695
      %v2664 = vpow.pop %v2663
      %v2665 = vmul.f32 %v2538, 1.442695
      %v2666 = vpow.pop %v2665
      %v2667 = vmul.f32 %v2539, 1.442695
      %v2668 = vpow.pop %v2667
      %v2669 = vmul.f32 %v2540, 1.442695
      %v2670 = vpow.pop %v2669
      %v2671 = vmul.f32 %v2541, 1.442695
      %v2672 = vpow.pop %v2671
      %v2673 = vmul.f32 %v2542, 1.442695
      %v2674 = vpow.pop %v2673
      %v2675 = vmul.f32 %v2543, 1.442695
      %v2676 = vpow.pop %v2675
      %v2677 = vmul.f32 %v2544, 1.442695
      %v2678 = vpow.pop %v2677
      %v2679 = vmul.f32 %v2545, 1.442695
      %v2680 = vpow.pop %v2679
      %v2681 = vmul.f32 %v2546, 1.442695
      %v2682 = vpow.pop %v2681
      %v2683 = vmul.f32 %v2547, 1.442695
      %v2684 = vpow.pop %v2683
      %v2685 = vmul.f32 %v2548, 1.442695
      %v2686 = vpow.pop %v2685
      %v2687 = vmul.f32 %v2549, 1.442695
      %v2688 = vpow.pop %v2687
      %v2689 = vmul.f32 %v2550, 1.442695
      %v2690 = vpow.pop %v2689
      %v2691 = vmul.f32 %v2551, 1.442695
      %v2692 = vpow.pop %v2691
      %v2693 = vmul.f32 %v2552, 1.442695
      %v2694 = vpow.pop %v2693
      %v2695 = vmul.f32 %v2553, 1.442695
      %v2696 = vpow.pop %v2695
      %v2697 = vmul.f32 %v2554, 1.442695
      %v2698 = vpow.pop %v2697
      %v2699 = vmul.f32 %v2555, 1.442695
      %v2700 = vpow.pop %v2699
      %v2701 = vmul.f32 %v2556, 1.442695
      %v2702 = vpow.pop %v2701
      %v2703 = vmul.f32 %v2557, 1.442695
      %v2704 = vpow.pop %v2703
      %v2705 = vmul.f32 %v2558, 1.442695
      %v2706 = vpow.pop %v2705
      %v2707 = vmul.f32 %v2559, 1.442695
      %v2708 = vpow.pop %v2707
      %v2709 = vmul.f32 %v2560, 1.442695
      %v2710 = vpow.pop %v2709
      %v2711 = vmul.f32 %v2561, 1.442695
      %v2712 = vpow.pop %v2711
      %v2713 = vmul.f32 %v2562, 1.442695
      %v2714 = vpow.pop %v2713
      %v2715 = vmul.f32 %v2563, 1.442695
      %v2716 = vpow.pop %v2715
      %v2717 = vmul.f32 %v2564, 1.442695
      %v2718 = vpow.pop %v2717
      %v2719 = vmul.f32 %v2565, 1.442695
      %v2720 = vpow.pop %v2719
      %v2721 = vmul.f32 %v2566, 1.442695
      %v2722 = vpow.pop %v2721
      %v2723 = vmul.f32 %v2567, 1.442695
      %v2724 = vpow.pop %v2723
      %v2725 = vmul.f32 %v2568, 1.442695
      %v2726 = vpow.pop %v2725
      %v2727 = vmul.f32 %v2569, 1.442695
      %v2728 = vpow.pop %v2727
      %v2729 = vmul.f32 %v2570, 1.442695
      %v2730 = vpow.pop %v2729
      %v2731 = vmul.f32 %v2571, 1.442695
      %v2732 = vpow.pop %v2731
      %v2733 = vmul.f32 %v2572, 1.442695
      %v2734 = vpow.pop %v2733
      %v2735 = vmul.f32 %v2573, 1.442695
      %v2736 = vpow.pop %v2735
      %v2737 = vmul.f32 %v2574, 1.442695
      %v2738 = vpow.pop %v2737
      %v2739 = vmul.f32 %v2575, 1.442695
      %v2740 = vpow.pop %v2739
      %v2741 = vmul.f32 %v2576, 1.442695
      %v2742 = vpow.pop %v2741
      %v2743 = vmul.f32 %v2577, 1.442695
      %v2744 = vpow.pop %v2743
      %v2745 = vmul.f32 %v2578, 1.442695
      %v2746 = vpow.pop %v2745
      %v2747 = vmul.f32 %v2579, 1.442695
      %v2748 = vpow.pop %v2747
      %v2749 = vmul.f32 %v2580, 1.442695
      %v2750 = vpow.pop %v2749
      %v2751 = vmul.f32 %v2581, 1.442695
      %v2752 = vpow.pop %v2751
      %v2753 = vmul.f32 %v2582, 1.442695
      %v2754 = vpow.pop %v2753
      %v2755 = vmul.f32 %v2583, 1.442695
      %v2756 = vpow.pop %v2755
      %v2757 = vmul.f32 %v2584, 1.442695
      %v2758 = vpow.pop %v2757
      %v2759 = vmul.f32 %v2585, 1.442695
      %v2760 = vpow.pop %v2759
      %v2761 = vmul.f32 %v2586, 1.442695
      %v2762 = vpow.pop %v2761
      %v2763 = vmul.f32 %v2587, 1.442695
      %v2764 = vpow.pop %v2763
      %v2765 = vmul.f32 %v2588, 1.442695
      %v2766 = vpow.pop %v2765
      %v2767 = vmul.f32 %v2589, 1.442695
      %v2768 = vpow.pop %v2767
      %v2769 = vmul.f32 %v2590, 1.442695
      %v2770 = vpow.pop %v2769
      %v2771 = vmul.f32 %v2591, 1.442695
      %v2772 = vpow.pop %v2771
      %v2773 = vmul.f32 %v2592, 1.442695
      %v2774 = vpow.pop %v2773
      %v2775 = vmul.f32 %v2593, 1.442695
      %v2776 = vpow.pop %v2775
      %v2777 = vmul.f32 %v2594, 1.442695
      %v2778 = vpow.pop %v2777
      %v2779 = vmul.f32 %v2595, 1.442695
      %v2780 = vpow.pop %v2779
      %v2781 = vmul.f32 %v2596, 1.442695
      %v2782 = vpow.pop %v2781
      %v2783 = vmul.f32 %v2597, 1.442695
      %v2784 = vpow.pop %v2783
      %v2785 = vmul.f32 %v2598, 1.442695
      %v2786 = vpow.pop %v2785
      %v2787 = vmul.f32 %v2599, 1.442695
      %v2788 = vpow.pop %v2787
      %v2789 = vmul.f32 %v2600, 1.442695
      %v2790 = vpow.pop %v2789
      %v2791 = vmul.f32 %v2601, 1.442695
      %v2792 = vpow.pop %v2791
      %v2793 = vmul.f32 %v2602, 1.442695
      %v2794 = vpow.pop %v2793
      %v2795 = vadd.f32 %v2604, 1.0
      %v2796 = vadd.f32 %v2606, 1.0
      %v2797 = vadd.f32 %v2608, 1.0
      %v2798 = vadd.f32 %v2610, 1.0
      %v2799 = vadd.f32 %v2612, 1.0
      %v2800 = vadd.f32 %v2614, 1.0
      %v2801 = vadd.f32 %v2616, 1.0
      %v2802 = vadd.f32 %v2618, 1.0
      %v2803 = vadd.f32 %v2620, 1.0
      %v2804 = vadd.f32 %v2622, 1.0
      %v2805 = vadd.f32 %v2624, 1.0
      %v2806 = vadd.f32 %v2626, 1.0
      %v2807 = vadd.f32 %v2628, 1.0
      %v2808 = vadd.f32 %v2630, 1.0
      %v2809 = vadd.f32 %v2632, 1.0
      %v2810 = vadd.f32 %v2634, 1.0
      %v2811 = vadd.f32 %v2636, 1.0
      %v2812 = vadd.f32 %v2638, 1.0
      %v2813 = vadd.f32 %v2640, 1.0
      %v2814 = vadd.f32 %v2642, 1.0
      %v2815 = vadd.f32 %v2644, 1.0
      %v2816 = vadd.f32 %v2646, 1.0
      %v2817 = vadd.f32 %v2648, 1.0
      %v2818 = vadd.f32 %v2650, 1.0
      %v2819 = vadd.f32 %v2652, 1.0
      %v2820 = vadd.f32 %v2654, 1.0
      %v2821 = vadd.f32 %v2656, 1.0
      %v2822 = vadd.f32 %v2658, 1.0
      %v2823 = vadd.f32 %v2660, 1.0
      %v2824 = vadd.f32 %v2662, 1.0
      %v2825 = vadd.f32 %v2664, 1.0
      %v2826 = vadd.f32 %v2666, 1.0
      %v2827 = vadd.f32 %v2668, 1.0
      %v2828 = vadd.f32 %v2670, 1.0
      %v2829 = vadd.f32 %v2672, 1.0
      %v2830 = vadd.f32 %v2674, 1.0
      %v2831 = vadd.f32 %v2676, 1.0
      %v2832 = vadd.f32 %v2678, 1.0
      %v2833 = vadd.f32 %v2680, 1.0
      %v2834 = vadd.f32 %v2682, 1.0
      %v2835 = vadd.f32 %v2684, 1.0
      %v2836 = vadd.f32 %v2686, 1.0
      %v2837 = vadd.f32 %v2688, 1.0
      %v2838 = vadd.f32 %v2690, 1.0
      %v2839 = vadd.f32 %v2692, 1.0
      %v2840 = vadd.f32 %v2694, 1.0
      %v2841 = vadd.f32 %v2696, 1.0
      %v2842 = vadd.f32 %v2698, 1.0
      %v2843 = vadd.f32 %v2700, 1.0
      %v2844 = vadd.f32 %v2702, 1.0
      %v2845 = vadd.f32 %v2704, 1.0
      %v2846 = vadd.f32 %v2706, 1.0
      %v2847 = vadd.f32 %v2708, 1.0
      %v2848 = vadd.f32 %v2710, 1.0
      %v2849 = vadd.f32 %v2712, 1.0
      %v2850 = vadd.f32 %v2714, 1.0
      %v2851 = vadd.f32 %v2716, 1.0
      %v2852 = vadd.f32 %v2718, 1.0
      %v2853 = vadd.f32 %v2720, 1.0
      %v2854 = vadd.f32 %v2722, 1.0
      %v2855 = vadd.f32 %v2724, 1.0
      %v2856 = vadd.f32 %v2726, 1.0
      %v2857 = vadd.f32 %v2728, 1.0
      %v2858 = vadd.f32 %v2730, 1.0
      %v2859 = vadd.f32 %v2732, 1.0
      %v2860 = vadd.f32 %v2734, 1.0
      %v2861 = vadd.f32 %v2736, 1.0
      %v2862 = vadd.f32 %v2738, 1.0
      %v2863 = vadd.f32 %v2740, 1.0
      %v2864 = vadd.f32 %v2742, 1.0
      %v2865 = vadd.f32 %v2744, 1.0
      %v2866 = vadd.f32 %v2746, 1.0
      %v2867 = vadd.f32 %v2748, 1.0
      %v2868 = vadd.f32 %v2750, 1.0
      %v2869 = vadd.f32 %v2752, 1.0
      %v2870 = vadd.f32 %v2754, 1.0
      %v2871 = vadd.f32 %v2756, 1.0
      %v2872 = vadd.f32 %v2758, 1.0
      %v2873 = vadd.f32 %v2760, 1.0
      %v2874 = vadd.f32 %v2762, 1.0
      %v2875 = vadd.f32 %v2764, 1.0
      %v2876 = vadd.f32 %v2766, 1.0
      %v2877 = vadd.f32 %v2768, 1.0
      %v2878 = vadd.f32 %v2770, 1.0
      %v2879 = vadd.f32 %v2772, 1.0
      %v2880 = vadd.f32 %v2774, 1.0
      %v2881 = vadd.f32 %v2776, 1.0
      %v2882 = vadd.f32 %v2778, 1.0
      %v2883 = vadd.f32 %v2780, 1.0
      %v2884 = vadd.f32 %v2782, 1.0
      %v2885 = vadd.f32 %v2784, 1.0
      %v2886 = vadd.f32 %v2786, 1.0
      %v2887 = vadd.f32 %v2788, 1.0
      %v2888 = vadd.f32 %v2790, 1.0
      %v2889 = vadd.f32 %v2792, 1.0
      %v2890 = vadd.f32 %v2794, 1.0
      %v2891 = vrcp.pop %v2795
      %v2892 = vmul.f32 %v2795, %v2891
      %v2893 = vsub.f32 1.0, %v2892
      %v2894 = vmul.f32 %v2891, %v2893
      %v2895 = vadd.f32 %v2891, %v2894
      %vm2896 = vweird.f32 %v2795
      %vm2897 = vweird.f32 %v2891
      %vm2898 = vmor %vm2896, %vm2897
      %v2899 = vsel %vm2898, %v2891, %v2895
      %v2900 = vand.u32 2147483647, %v2795
      %vm2901 = vcmp.eq.f32.partialorder %v2900, 8.507059e+37
      %v2902 = vand.u32 %v2795, 2147483648
      %v2903 = vor.u32 1.1754944e-38, %v2902
      %v2904 = vsel %vm2901, %v2903, %v2899
      %v2905 = vmul.f32 1.0, %v2904
      %v2906 = vrcp.pop %v2796
      %v2907 = vmul.f32 %v2796, %v2906
      %v2908 = vsub.f32 1.0, %v2907
      %v2909 = vmul.f32 %v2906, %v2908
      %v2910 = vadd.f32 %v2906, %v2909
      %vm2911 = vweird.f32 %v2796
      %vm2912 = vweird.f32 %v2906
      %vm2913 = vmor %vm2911, %vm2912
      %v2914 = vsel %vm2913, %v2906, %v2910
      %v2915 = vand.u32 2147483647, %v2796
      %vm2916 = vcmp.eq.f32.partialorder %v2915, 8.507059e+37
      %v2917 = vand.u32 %v2796, 2147483648
      %v2918 = vor.u32 1.1754944e-38, %v2917
      %v2919 = vsel %vm2916, %v2918, %v2914
      %v2920 = vmul.f32 1.0, %v2919
      %v2921 = vrcp.pop %v2797
      %v2922 = vmul.f32 %v2797, %v2921
      %v2923 = vsub.f32 1.0, %v2922
      %v2924 = vmul.f32 %v2921, %v2923
      %v2925 = vadd.f32 %v2921, %v2924
      %vm2926 = vweird.f32 %v2797
      %vm2927 = vweird.f32 %v2921
      %vm2928 = vmor %vm2926, %vm2927
      %v2929 = vsel %vm2928, %v2921, %v2925
      %v2930 = vand.u32 2147483647, %v2797
      %vm2931 = vcmp.eq.f32.partialorder %v2930, 8.507059e+37
      %v2932 = vand.u32 %v2797, 2147483648
      %v2933 = vor.u32 1.1754944e-38, %v2932
      %v2934 = vsel %vm2931, %v2933, %v2929
      %v2935 = vmul.f32 1.0, %v2934
      %v2936 = vrcp.pop %v2798
      %v2937 = vmul.f32 %v2798, %v2936
      %v2938 = vsub.f32 1.0, %v2937
      %v2939 = vmul.f32 %v2936, %v2938
      %v2940 = vadd.f32 %v2936, %v2939
      %vm2941 = vweird.f32 %v2798
      %vm2942 = vweird.f32 %v2936
      %vm2943 = vmor %vm2941, %vm2942
      %v2944 = vsel %vm2943, %v2936, %v2940
      %v2945 = vand.u32 2147483647, %v2798
      %vm2946 = vcmp.eq.f32.partialorder %v2945, 8.507059e+37
      %v2947 = vand.u32 %v2798, 2147483648
      %v2948 = vor.u32 1.1754944e-38, %v2947
      %v2949 = vsel %vm2946, %v2948, %v2944
      %v2950 = vmul.f32 1.0, %v2949
      %v2951 = vrcp.pop %v2799
      %v2952 = vmul.f32 %v2799, %v2951
      %v2953 = vsub.f32 1.0, %v2952
      %v2954 = vmul.f32 %v2951, %v2953
      %v2955 = vadd.f32 %v2951, %v2954
      %vm2956 = vweird.f32 %v2799
      %vm2957 = vweird.f32 %v2951
      %vm2958 = vmor %vm2956, %vm2957
      %v2959 = vsel %vm2958, %v2951, %v2955
      %v2960 = vand.u32 2147483647, %v2799
      %vm2961 = vcmp.eq.f32.partialorder %v2960, 8.507059e+37
      %v2962 = vand.u32 %v2799, 2147483648
      %v2963 = vor.u32 1.1754944e-38, %v2962
      %v2964 = vsel %vm2961, %v2963, %v2959
      %v2965 = vmul.f32 1.0, %v2964
      %v2966 = vrcp.pop %v2800
      %v2967 = vmul.f32 %v2800, %v2966
      %v2968 = vsub.f32 1.0, %v2967
      %v2969 = vmul.f32 %v2966, %v2968
      %v2970 = vadd.f32 %v2966, %v2969
      %vm2971 = vweird.f32 %v2800
      %vm2972 = vweird.f32 %v2966
      %vm2973 = vmor %vm2971, %vm2972
      %v2974 = vsel %vm2973, %v2966, %v2970
      %v2975 = vand.u32 2147483647, %v2800
      %vm2976 = vcmp.eq.f32.partialorder %v2975, 8.507059e+37
      %v2977 = vand.u32 %v2800, 2147483648
      %v2978 = vor.u32 1.1754944e-38, %v2977
      %v2979 = vsel %vm2976, %v2978, %v2974
      %v2980 = vmul.f32 1.0, %v2979
      %v2981 = vrcp.pop %v2801
      %v2982 = vmul.f32 %v2801, %v2981
      %v2983 = vsub.f32 1.0, %v2982
      %v2984 = vmul.f32 %v2981, %v2983
      %v2985 = vadd.f32 %v2981, %v2984
      %vm2986 = vweird.f32 %v2801
      %vm2987 = vweird.f32 %v2981
      %vm2988 = vmor %vm2986, %vm2987
      %v2989 = vsel %vm2988, %v2981, %v2985
      %v2990 = vand.u32 2147483647, %v2801
      %vm2991 = vcmp.eq.f32.partialorder %v2990, 8.507059e+37
      %v2992 = vand.u32 %v2801, 2147483648
      %v2993 = vor.u32 1.1754944e-38, %v2992
      %v2994 = vsel %vm2991, %v2993, %v2989
      %v2995 = vmul.f32 1.0, %v2994
      %v2996 = vrcp.pop %v2802
      %v2997 = vmul.f32 %v2802, %v2996
      %v2998 = vsub.f32 1.0, %v2997
      %v2999 = vmul.f32 %v2996, %v2998
      %v3000 = vadd.f32 %v2996, %v2999
      %vm3001 = vweird.f32 %v2802
      %vm3002 = vweird.f32 %v2996
      %vm3003 = vmor %vm3001, %vm3002
      %v3004 = vsel %vm3003, %v2996, %v3000
      %v3005 = vand.u32 2147483647, %v2802
      %vm3006 = vcmp.eq.f32.partialorder %v3005, 8.507059e+37
      %v3007 = vand.u32 %v2802, 2147483648
      %v3008 = vor.u32 1.1754944e-38, %v3007
      %v3009 = vsel %vm3006, %v3008, %v3004
      %v3010 = vmul.f32 1.0, %v3009
      %v3011 = vrcp.pop %v2803
      %v3012 = vmul.f32 %v2803, %v3011
      %v3013 = vsub.f32 1.0, %v3012
      %v3014 = vmul.f32 %v3011, %v3013
      %v3015 = vadd.f32 %v3011, %v3014
      %vm3016 = vweird.f32 %v2803
      %vm3017 = vweird.f32 %v3011
      %vm3018 = vmor %vm3016, %vm3017
      %v3019 = vsel %vm3018, %v3011, %v3015
      %v3020 = vand.u32 2147483647, %v2803
      %vm3021 = vcmp.eq.f32.partialorder %v3020, 8.507059e+37
      %v3022 = vand.u32 %v2803, 2147483648
      %v3023 = vor.u32 1.1754944e-38, %v3022
      %v3024 = vsel %vm3021, %v3023, %v3019
      %v3025 = vmul.f32 1.0, %v3024
      %v3026 = vrcp.pop %v2804
      %v3027 = vmul.f32 %v2804, %v3026
      %v3028 = vsub.f32 1.0, %v3027
      %v3029 = vmul.f32 %v3026, %v3028
      %v3030 = vadd.f32 %v3026, %v3029
      %vm3031 = vweird.f32 %v2804
      %vm3032 = vweird.f32 %v3026
      %vm3033 = vmor %vm3031, %vm3032
      %v3034 = vsel %vm3033, %v3026, %v3030
      %v3035 = vand.u32 2147483647, %v2804
      %vm3036 = vcmp.eq.f32.partialorder %v3035, 8.507059e+37
      %v3037 = vand.u32 %v2804, 2147483648
      %v3038 = vor.u32 1.1754944e-38, %v3037
      %v3039 = vsel %vm3036, %v3038, %v3034
      %v3040 = vmul.f32 1.0, %v3039
      %v3041 = vrcp.pop %v2805
      %v3042 = vmul.f32 %v2805, %v3041
      %v3043 = vsub.f32 1.0, %v3042
      %v3044 = vmul.f32 %v3041, %v3043
      %v3045 = vadd.f32 %v3041, %v3044
      %vm3046 = vweird.f32 %v2805
      %vm3047 = vweird.f32 %v3041
      %vm3048 = vmor %vm3046, %vm3047
      %v3049 = vsel %vm3048, %v3041, %v3045
      %v3050 = vand.u32 2147483647, %v2805
      %vm3051 = vcmp.eq.f32.partialorder %v3050, 8.507059e+37
      %v3052 = vand.u32 %v2805, 2147483648
      %v3053 = vor.u32 1.1754944e-38, %v3052
      %v3054 = vsel %vm3051, %v3053, %v3049
      %v3055 = vmul.f32 1.0, %v3054
      %v3056 = vrcp.pop %v2806
      %v3057 = vmul.f32 %v2806, %v3056
      %v3058 = vsub.f32 1.0, %v3057
      %v3059 = vmul.f32 %v3056, %v3058
      %v3060 = vadd.f32 %v3056, %v3059
      %vm3061 = vweird.f32 %v2806
      %vm3062 = vweird.f32 %v3056
      %vm3063 = vmor %vm3061, %vm3062
      %v3064 = vsel %vm3063, %v3056, %v3060
      %v3065 = vand.u32 2147483647, %v2806
      %vm3066 = vcmp.eq.f32.partialorder %v3065, 8.507059e+37
      %v3067 = vand.u32 %v2806, 2147483648
      %v3068 = vor.u32 1.1754944e-38, %v3067
      %v3069 = vsel %vm3066, %v3068, %v3064
      %v3070 = vmul.f32 1.0, %v3069
      %v3071 = vrcp.pop %v2807
      %v3072 = vmul.f32 %v2807, %v3071
      %v3073 = vsub.f32 1.0, %v3072
      %v3074 = vmul.f32 %v3071, %v3073
      %v3075 = vadd.f32 %v3071, %v3074
      %vm3076 = vweird.f32 %v2807
      %vm3077 = vweird.f32 %v3071
      %vm3078 = vmor %vm3076, %vm3077
      %v3079 = vsel %vm3078, %v3071, %v3075
      %v3080 = vand.u32 2147483647, %v2807
      %vm3081 = vcmp.eq.f32.partialorder %v3080, 8.507059e+37
      %v3082 = vand.u32 %v2807, 2147483648
      %v3083 = vor.u32 1.1754944e-38, %v3082
      %v3084 = vsel %vm3081, %v3083, %v3079
      %v3085 = vmul.f32 1.0, %v3084
      %v3086 = vrcp.pop %v2808
      %v3087 = vmul.f32 %v2808, %v3086
      %v3088 = vsub.f32 1.0, %v3087
      %v3089 = vmul.f32 %v3086, %v3088
      %v3090 = vadd.f32 %v3086, %v3089
      %vm3091 = vweird.f32 %v2808
      %vm3092 = vweird.f32 %v3086
      %vm3093 = vmor %vm3091, %vm3092
      %v3094 = vsel %vm3093, %v3086, %v3090
      %v3095 = vand.u32 2147483647, %v2808
      %vm3096 = vcmp.eq.f32.partialorder %v3095, 8.507059e+37
      %v3097 = vand.u32 %v2808, 2147483648
      %v3098 = vor.u32 1.1754944e-38, %v3097
      %v3099 = vsel %vm3096, %v3098, %v3094
      %v3100 = vmul.f32 1.0, %v3099
      %v3101 = vrcp.pop %v2809
      %v3102 = vmul.f32 %v2809, %v3101
      %v3103 = vsub.f32 1.0, %v3102
      %v3104 = vmul.f32 %v3101, %v3103
      %v3105 = vadd.f32 %v3101, %v3104
      %vm3106 = vweird.f32 %v2809
      %vm3107 = vweird.f32 %v3101
      %vm3108 = vmor %vm3106, %vm3107
      %v3109 = vsel %vm3108, %v3101, %v3105
      %v3110 = vand.u32 2147483647, %v2809
      %vm3111 = vcmp.eq.f32.partialorder %v3110, 8.507059e+37
      %v3112 = vand.u32 %v2809, 2147483648
      %v3113 = vor.u32 1.1754944e-38, %v3112
      %v3114 = vsel %vm3111, %v3113, %v3109
      %v3115 = vmul.f32 1.0, %v3114
      %v3116 = vrcp.pop %v2810
      %v3117 = vmul.f32 %v2810, %v3116
      %v3118 = vsub.f32 1.0, %v3117
      %v3119 = vmul.f32 %v3116, %v3118
      %v3120 = vadd.f32 %v3116, %v3119
      %vm3121 = vweird.f32 %v2810
      %vm3122 = vweird.f32 %v3116
      %vm3123 = vmor %vm3121, %vm3122
      %v3124 = vsel %vm3123, %v3116, %v3120
      %v3125 = vand.u32 2147483647, %v2810
      %vm3126 = vcmp.eq.f32.partialorder %v3125, 8.507059e+37
      %v3127 = vand.u32 %v2810, 2147483648
      %v3128 = vor.u32 1.1754944e-38, %v3127
      %v3129 = vsel %vm3126, %v3128, %v3124
      %v3130 = vmul.f32 1.0, %v3129
      %v3131 = vrcp.pop %v2811
      %v3132 = vmul.f32 %v2811, %v3131
      %v3133 = vsub.f32 1.0, %v3132
      %v3134 = vmul.f32 %v3131, %v3133
      %v3135 = vadd.f32 %v3131, %v3134
      %vm3136 = vweird.f32 %v2811
      %vm3137 = vweird.f32 %v3131
      %vm3138 = vmor %vm3136, %vm3137
      %v3139 = vsel %vm3138, %v3131, %v3135
      %v3140 = vand.u32 2147483647, %v2811
      %vm3141 = vcmp.eq.f32.partialorder %v3140, 8.507059e+37
      %v3142 = vand.u32 %v2811, 2147483648
      %v3143 = vor.u32 1.1754944e-38, %v3142
      %v3144 = vsel %vm3141, %v3143, %v3139
      %v3145 = vmul.f32 1.0, %v3144
      %v3146 = vrcp.pop %v2812
      %v3147 = vmul.f32 %v2812, %v3146
      %v3148 = vsub.f32 1.0, %v3147
      %v3149 = vmul.f32 %v3146, %v3148
      %v3150 = vadd.f32 %v3146, %v3149
      %vm3151 = vweird.f32 %v2812
      %vm3152 = vweird.f32 %v3146
      %vm3153 = vmor %vm3151, %vm3152
      %v3154 = vsel %vm3153, %v3146, %v3150
      %v3155 = vand.u32 2147483647, %v2812
      %vm3156 = vcmp.eq.f32.partialorder %v3155, 8.507059e+37
      %v3157 = vand.u32 %v2812, 2147483648
      %v3158 = vor.u32 1.1754944e-38, %v3157
      %v3159 = vsel %vm3156, %v3158, %v3154
      %v3160 = vmul.f32 1.0, %v3159
      %v3161 = vrcp.pop %v2813
      %v3162 = vmul.f32 %v2813, %v3161
      %v3163 = vsub.f32 1.0, %v3162
      %v3164 = vmul.f32 %v3161, %v3163
      %v3165 = vadd.f32 %v3161, %v3164
      %vm3166 = vweird.f32 %v2813
      %vm3167 = vweird.f32 %v3161
      %vm3168 = vmor %vm3166, %vm3167
      %v3169 = vsel %vm3168, %v3161, %v3165
      %v3170 = vand.u32 2147483647, %v2813
      %vm3171 = vcmp.eq.f32.partialorder %v3170, 8.507059e+37
      %v3172 = vand.u32 %v2813, 2147483648
      %v3173 = vor.u32 1.1754944e-38, %v3172
      %v3174 = vsel %vm3171, %v3173, %v3169
      %v3175 = vmul.f32 1.0, %v3174
      %v3176 = vrcp.pop %v2814
      %v3177 = vmul.f32 %v2814, %v3176
      %v3178 = vsub.f32 1.0, %v3177
      %v3179 = vmul.f32 %v3176, %v3178
      %v3180 = vadd.f32 %v3176, %v3179
      %vm3181 = vweird.f32 %v2814
      %vm3182 = vweird.f32 %v3176
      %vm3183 = vmor %vm3181, %vm3182
      %v3184 = vsel %vm3183, %v3176, %v3180
      %v3185 = vand.u32 2147483647, %v2814
      %vm3186 = vcmp.eq.f32.partialorder %v3185, 8.507059e+37
      %v3187 = vand.u32 %v2814, 2147483648
      %v3188 = vor.u32 1.1754944e-38, %v3187
      %v3189 = vsel %vm3186, %v3188, %v3184
      %v3190 = vmul.f32 1.0, %v3189
      %v3191 = vrcp.pop %v2815
      %v3192 = vmul.f32 %v2815, %v3191
      %v3193 = vsub.f32 1.0, %v3192
      %v3194 = vmul.f32 %v3191, %v3193
      %v3195 = vadd.f32 %v3191, %v3194
      %vm3196 = vweird.f32 %v2815
      %vm3197 = vweird.f32 %v3191
      %vm3198 = vmor %vm3196, %vm3197
      %v3199 = vsel %vm3198, %v3191, %v3195
      %v3200 = vand.u32 2147483647, %v2815
      %vm3201 = vcmp.eq.f32.partialorder %v3200, 8.507059e+37
      %v3202 = vand.u32 %v2815, 2147483648
      %v3203 = vor.u32 1.1754944e-38, %v3202
      %v3204 = vsel %vm3201, %v3203, %v3199
      %v3205 = vmul.f32 1.0, %v3204
      %v3206 = vrcp.pop %v2816
      %v3207 = vmul.f32 %v2816, %v3206
      %v3208 = vsub.f32 1.0, %v3207
      %v3209 = vmul.f32 %v3206, %v3208
      %v3210 = vadd.f32 %v3206, %v3209
      %vm3211 = vweird.f32 %v2816
      %vm3212 = vweird.f32 %v3206
      %vm3213 = vmor %vm3211, %vm3212
      %v3214 = vsel %vm3213, %v3206, %v3210
      %v3215 = vand.u32 2147483647, %v2816
      %vm3216 = vcmp.eq.f32.partialorder %v3215, 8.507059e+37
      %v3217 = vand.u32 %v2816, 2147483648
      %v3218 = vor.u32 1.1754944e-38, %v3217
      %v3219 = vsel %vm3216, %v3218, %v3214
      %v3220 = vmul.f32 1.0, %v3219
      %v3221 = vrcp.pop %v2817
      %v3222 = vmul.f32 %v2817, %v3221
      %v3223 = vsub.f32 1.0, %v3222
      %v3224 = vmul.f32 %v3221, %v3223
      %v3225 = vadd.f32 %v3221, %v3224
      %vm3226 = vweird.f32 %v2817
      %vm3227 = vweird.f32 %v3221
      %vm3228 = vmor %vm3226, %vm3227
      %v3229 = vsel %vm3228, %v3221, %v3225
      %v3230 = vand.u32 2147483647, %v2817
      %vm3231 = vcmp.eq.f32.partialorder %v3230, 8.507059e+37
      %v3232 = vand.u32 %v2817, 2147483648
      %v3233 = vor.u32 1.1754944e-38, %v3232
      %v3234 = vsel %vm3231, %v3233, %v3229
      %v3235 = vmul.f32 1.0, %v3234
      %v3236 = vrcp.pop %v2818
      %v3237 = vmul.f32 %v2818, %v3236
      %v3238 = vsub.f32 1.0, %v3237
      %v3239 = vmul.f32 %v3236, %v3238
      %v3240 = vadd.f32 %v3236, %v3239
      %vm3241 = vweird.f32 %v2818
      %vm3242 = vweird.f32 %v3236
      %vm3243 = vmor %vm3241, %vm3242
      %v3244 = vsel %vm3243, %v3236, %v3240
      %v3245 = vand.u32 2147483647, %v2818
      %vm3246 = vcmp.eq.f32.partialorder %v3245, 8.507059e+37
      %v3247 = vand.u32 %v2818, 2147483648
      %v3248 = vor.u32 1.1754944e-38, %v3247
      %v3249 = vsel %vm3246, %v3248, %v3244
      %v3250 = vmul.f32 1.0, %v3249
      %v3251 = vrcp.pop %v2819
      %v3252 = vmul.f32 %v2819, %v3251
      %v3253 = vsub.f32 1.0, %v3252
      %v3254 = vmul.f32 %v3251, %v3253
      %v3255 = vadd.f32 %v3251, %v3254
      %vm3256 = vweird.f32 %v2819
      %vm3257 = vweird.f32 %v3251
      %vm3258 = vmor %vm3256, %vm3257
      %v3259 = vsel %vm3258, %v3251, %v3255
      %v3260 = vand.u32 2147483647, %v2819
      %vm3261 = vcmp.eq.f32.partialorder %v3260, 8.507059e+37
      %v3262 = vand.u32 %v2819, 2147483648
      %v3263 = vor.u32 1.1754944e-38, %v3262
      %v3264 = vsel %vm3261, %v3263, %v3259
      %v3265 = vmul.f32 1.0, %v3264
      %v3266 = vrcp.pop %v2820
      %v3267 = vmul.f32 %v2820, %v3266
      %v3268 = vsub.f32 1.0, %v3267
      %v3269 = vmul.f32 %v3266, %v3268
      %v3270 = vadd.f32 %v3266, %v3269
      %vm3271 = vweird.f32 %v2820
      %vm3272 = vweird.f32 %v3266
      %vm3273 = vmor %vm3271, %vm3272
      %v3274 = vsel %vm3273, %v3266, %v3270
      %v3275 = vand.u32 2147483647, %v2820
      %vm3276 = vcmp.eq.f32.partialorder %v3275, 8.507059e+37
      %v3277 = vand.u32 %v2820, 2147483648
      %v3278 = vor.u32 1.1754944e-38, %v3277
      %v3279 = vsel %vm3276, %v3278, %v3274
      %v3280 = vmul.f32 1.0, %v3279
      %v3281 = vrcp.pop %v2821
      %v3282 = vmul.f32 %v2821, %v3281
      %v3283 = vsub.f32 1.0, %v3282
      %v3284 = vmul.f32 %v3281, %v3283
      %v3285 = vadd.f32 %v3281, %v3284
      %vm3286 = vweird.f32 %v2821
      %vm3287 = vweird.f32 %v3281
      %vm3288 = vmor %vm3286, %vm3287
      %v3289 = vsel %vm3288, %v3281, %v3285
      %v3290 = vand.u32 2147483647, %v2821
      %vm3291 = vcmp.eq.f32.partialorder %v3290, 8.507059e+37
      %v3292 = vand.u32 %v2821, 2147483648
      %v3293 = vor.u32 1.1754944e-38, %v3292
      %v3294 = vsel %vm3291, %v3293, %v3289
      %v3295 = vmul.f32 1.0, %v3294
      %v3296 = vrcp.pop %v2822
      %v3297 = vmul.f32 %v2822, %v3296
      %v3298 = vsub.f32 1.0, %v3297
      %v3299 = vmul.f32 %v3296, %v3298
      %v3300 = vadd.f32 %v3296, %v3299
      %vm3301 = vweird.f32 %v2822
      %vm3302 = vweird.f32 %v3296
      %vm3303 = vmor %vm3301, %vm3302
      %v3304 = vsel %vm3303, %v3296, %v3300
      %v3305 = vand.u32 2147483647, %v2822
      %vm3306 = vcmp.eq.f32.partialorder %v3305, 8.507059e+37
      %v3307 = vand.u32 %v2822, 2147483648
      %v3308 = vor.u32 1.1754944e-38, %v3307
      %v3309 = vsel %vm3306, %v3308, %v3304
      %v3310 = vmul.f32 1.0, %v3309
      %v3311 = vrcp.pop %v2823
      %v3312 = vmul.f32 %v2823, %v3311
      %v3313 = vsub.f32 1.0, %v3312
      %v3314 = vmul.f32 %v3311, %v3313
      %v3315 = vadd.f32 %v3311, %v3314
      %vm3316 = vweird.f32 %v2823
      %vm3317 = vweird.f32 %v3311
      %vm3318 = vmor %vm3316, %vm3317
      %v3319 = vsel %vm3318, %v3311, %v3315
      %v3320 = vand.u32 2147483647, %v2823
      %vm3321 = vcmp.eq.f32.partialorder %v3320, 8.507059e+37
      %v3322 = vand.u32 %v2823, 2147483648
      %v3323 = vor.u32 1.1754944e-38, %v3322
      %v3324 = vsel %vm3321, %v3323, %v3319
      %v3325 = vmul.f32 1.0, %v3324
      %v3326 = vrcp.pop %v2824
      %v3327 = vmul.f32 %v2824, %v3326
      %v3328 = vsub.f32 1.0, %v3327
      %v3329 = vmul.f32 %v3326, %v3328
      %v3330 = vadd.f32 %v3326, %v3329
      %vm3331 = vweird.f32 %v2824
      %vm3332 = vweird.f32 %v3326
      %vm3333 = vmor %vm3331, %vm3332
      %v3334 = vsel %vm3333, %v3326, %v3330
      %v3335 = vand.u32 2147483647, %v2824
      %vm3336 = vcmp.eq.f32.partialorder %v3335, 8.507059e+37
      %v3337 = vand.u32 %v2824, 2147483648
      %v3338 = vor.u32 1.1754944e-38, %v3337
      %v3339 = vsel %vm3336, %v3338, %v3334
      %v3340 = vmul.f32 1.0, %v3339
      %v3341 = vrcp.pop %v2825
      %v3342 = vmul.f32 %v2825, %v3341
      %v3343 = vsub.f32 1.0, %v3342
      %v3344 = vmul.f32 %v3341, %v3343
      %v3345 = vadd.f32 %v3341, %v3344
      %vm3346 = vweird.f32 %v2825
      %vm3347 = vweird.f32 %v3341
      %vm3348 = vmor %vm3346, %vm3347
      %v3349 = vsel %vm3348, %v3341, %v3345
      %v3350 = vand.u32 2147483647, %v2825
      %vm3351 = vcmp.eq.f32.partialorder %v3350, 8.507059e+37
      %v3352 = vand.u32 %v2825, 2147483648
      %v3353 = vor.u32 1.1754944e-38, %v3352
      %v3354 = vsel %vm3351, %v3353, %v3349
      %v3355 = vmul.f32 1.0, %v3354
      %v3356 = vrcp.pop %v2826
      %v3357 = vmul.f32 %v2826, %v3356
      %v3358 = vsub.f32 1.0, %v3357
      %v3359 = vmul.f32 %v3356, %v3358
      %v3360 = vadd.f32 %v3356, %v3359
      %vm3361 = vweird.f32 %v2826
      %vm3362 = vweird.f32 %v3356
      %vm3363 = vmor %vm3361, %vm3362
      %v3364 = vsel %vm3363, %v3356, %v3360
      %v3365 = vand.u32 2147483647, %v2826
      %vm3366 = vcmp.eq.f32.partialorder %v3365, 8.507059e+37
      %v3367 = vand.u32 %v2826, 2147483648
      %v3368 = vor.u32 1.1754944e-38, %v3367
      %v3369 = vsel %vm3366, %v3368, %v3364
      %v3370 = vmul.f32 1.0, %v3369
      %v3371 = vrcp.pop %v2827
      %v3372 = vmul.f32 %v2827, %v3371
      %v3373 = vsub.f32 1.0, %v3372
      %v3374 = vmul.f32 %v3371, %v3373
      %v3375 = vadd.f32 %v3371, %v3374
      %vm3376 = vweird.f32 %v2827
      %vm3377 = vweird.f32 %v3371
      %vm3378 = vmor %vm3376, %vm3377
      %v3379 = vsel %vm3378, %v3371, %v3375
      %v3380 = vand.u32 2147483647, %v2827
      %vm3381 = vcmp.eq.f32.partialorder %v3380, 8.507059e+37
      %v3382 = vand.u32 %v2827, 2147483648
      %v3383 = vor.u32 1.1754944e-38, %v3382
      %v3384 = vsel %vm3381, %v3383, %v3379
      %v3385 = vmul.f32 1.0, %v3384
      %v3386 = vrcp.pop %v2828
      %v3387 = vmul.f32 %v2828, %v3386
      %v3388 = vsub.f32 1.0, %v3387
      %v3389 = vmul.f32 %v3386, %v3388
      %v3390 = vadd.f32 %v3386, %v3389
      %vm3391 = vweird.f32 %v2828
      %vm3392 = vweird.f32 %v3386
      %vm3393 = vmor %vm3391, %vm3392
      %v3394 = vsel %vm3393, %v3386, %v3390
      %v3395 = vand.u32 2147483647, %v2828
      %vm3396 = vcmp.eq.f32.partialorder %v3395, 8.507059e+37
      %v3397 = vand.u32 %v2828, 2147483648
      %v3398 = vor.u32 1.1754944e-38, %v3397
      %v3399 = vsel %vm3396, %v3398, %v3394
      %v3400 = vmul.f32 1.0, %v3399
      %v3401 = vrcp.pop %v2829
      %v3402 = vmul.f32 %v2829, %v3401
      %v3403 = vsub.f32 1.0, %v3402
      %v3404 = vmul.f32 %v3401, %v3403
      %v3405 = vadd.f32 %v3401, %v3404
      %vm3406 = vweird.f32 %v2829
      %vm3407 = vweird.f32 %v3401
      %vm3408 = vmor %vm3406, %vm3407
      %v3409 = vsel %vm3408, %v3401, %v3405
      %v3410 = vand.u32 2147483647, %v2829
      %vm3411 = vcmp.eq.f32.partialorder %v3410, 8.507059e+37
      %v3412 = vand.u32 %v2829, 2147483648
      %v3413 = vor.u32 1.1754944e-38, %v3412
      %v3414 = vsel %vm3411, %v3413, %v3409
      %v3415 = vmul.f32 1.0, %v3414
      %v3416 = vrcp.pop %v2830
      %v3417 = vmul.f32 %v2830, %v3416
      %v3418 = vsub.f32 1.0, %v3417
      %v3419 = vmul.f32 %v3416, %v3418
      %v3420 = vadd.f32 %v3416, %v3419
      %vm3421 = vweird.f32 %v2830
      %vm3422 = vweird.f32 %v3416
      %vm3423 = vmor %vm3421, %vm3422
      %v3424 = vsel %vm3423, %v3416, %v3420
      %v3425 = vand.u32 2147483647, %v2830
      %vm3426 = vcmp.eq.f32.partialorder %v3425, 8.507059e+37
      %v3427 = vand.u32 %v2830, 2147483648
      %v3428 = vor.u32 1.1754944e-38, %v3427
      %v3429 = vsel %vm3426, %v3428, %v3424
      %v3430 = vmul.f32 1.0, %v3429
      %v3431 = vrcp.pop %v2831
      %v3432 = vmul.f32 %v2831, %v3431
      %v3433 = vsub.f32 1.0, %v3432
      %v3434 = vmul.f32 %v3431, %v3433
      %v3435 = vadd.f32 %v3431, %v3434
      %vm3436 = vweird.f32 %v2831
      %vm3437 = vweird.f32 %v3431
      %vm3438 = vmor %vm3436, %vm3437
      %v3439 = vsel %vm3438, %v3431, %v3435
      %v3440 = vand.u32 2147483647, %v2831
      %vm3441 = vcmp.eq.f32.partialorder %v3440, 8.507059e+37
      %v3442 = vand.u32 %v2831, 2147483648
      %v3443 = vor.u32 1.1754944e-38, %v3442
      %v3444 = vsel %vm3441, %v3443, %v3439
      %v3445 = vmul.f32 1.0, %v3444
      %v3446 = vrcp.pop %v2832
      %v3447 = vmul.f32 %v2832, %v3446
      %v3448 = vsub.f32 1.0, %v3447
      %v3449 = vmul.f32 %v3446, %v3448
      %v3450 = vadd.f32 %v3446, %v3449
      %vm3451 = vweird.f32 %v2832
      %vm3452 = vweird.f32 %v3446
      %vm3453 = vmor %vm3451, %vm3452
      %v3454 = vsel %vm3453, %v3446, %v3450
      %v3455 = vand.u32 2147483647, %v2832
      %vm3456 = vcmp.eq.f32.partialorder %v3455, 8.507059e+37
      %v3457 = vand.u32 %v2832, 2147483648
      %v3458 = vor.u32 1.1754944e-38, %v3457
      %v3459 = vsel %vm3456, %v3458, %v3454
      %v3460 = vmul.f32 1.0, %v3459
      %v3461 = vrcp.pop %v2833
      %v3462 = vmul.f32 %v2833, %v3461
      %v3463 = vsub.f32 1.0, %v3462
      %v3464 = vmul.f32 %v3461, %v3463
      %v3465 = vadd.f32 %v3461, %v3464
      %vm3466 = vweird.f32 %v2833
      %vm3467 = vweird.f32 %v3461
      %vm3468 = vmor %vm3466, %vm3467
      %v3469 = vsel %vm3468, %v3461, %v3465
      %v3470 = vand.u32 2147483647, %v2833
      %vm3471 = vcmp.eq.f32.partialorder %v3470, 8.507059e+37
      %v3472 = vand.u32 %v2833, 2147483648
      %v3473 = vor.u32 1.1754944e-38, %v3472
      %v3474 = vsel %vm3471, %v3473, %v3469
      %v3475 = vmul.f32 1.0, %v3474
      %v3476 = vrcp.pop %v2834
      %v3477 = vmul.f32 %v2834, %v3476
      %v3478 = vsub.f32 1.0, %v3477
      %v3479 = vmul.f32 %v3476, %v3478
      %v3480 = vadd.f32 %v3476, %v3479
      %vm3481 = vweird.f32 %v2834
      %vm3482 = vweird.f32 %v3476
      %vm3483 = vmor %vm3481, %vm3482
      %v3484 = vsel %vm3483, %v3476, %v3480
      %v3485 = vand.u32 2147483647, %v2834
      %vm3486 = vcmp.eq.f32.partialorder %v3485, 8.507059e+37
      %v3487 = vand.u32 %v2834, 2147483648
      %v3488 = vor.u32 1.1754944e-38, %v3487
      %v3489 = vsel %vm3486, %v3488, %v3484
      %v3490 = vmul.f32 1.0, %v3489
      %v3491 = vrcp.pop %v2835
      %v3492 = vmul.f32 %v2835, %v3491
      %v3493 = vsub.f32 1.0, %v3492
      %v3494 = vmul.f32 %v3491, %v3493
      %v3495 = vadd.f32 %v3491, %v3494
      %vm3496 = vweird.f32 %v2835
      %vm3497 = vweird.f32 %v3491
      %vm3498 = vmor %vm3496, %vm3497
      %v3499 = vsel %vm3498, %v3491, %v3495
      %v3500 = vand.u32 2147483647, %v2835
      %vm3501 = vcmp.eq.f32.partialorder %v3500, 8.507059e+37
      %v3502 = vand.u32 %v2835, 2147483648
      %v3503 = vor.u32 1.1754944e-38, %v3502
      %v3504 = vsel %vm3501, %v3503, %v3499
      %v3505 = vmul.f32 1.0, %v3504
      %v3506 = vrcp.pop %v2836
      %v3507 = vmul.f32 %v2836, %v3506
      %v3508 = vsub.f32 1.0, %v3507
      %v3509 = vmul.f32 %v3506, %v3508
      %v3510 = vadd.f32 %v3506, %v3509
      %vm3511 = vweird.f32 %v2836
      %vm3512 = vweird.f32 %v3506
      %vm3513 = vmor %vm3511, %vm3512
      %v3514 = vsel %vm3513, %v3506, %v3510
      %v3515 = vand.u32 2147483647, %v2836
      %vm3516 = vcmp.eq.f32.partialorder %v3515, 8.507059e+37
      %v3517 = vand.u32 %v2836, 2147483648
      %v3518 = vor.u32 1.1754944e-38, %v3517
      %v3519 = vsel %vm3516, %v3518, %v3514
      %v3520 = vmul.f32 1.0, %v3519
      %v3521 = vrcp.pop %v2837
      %v3522 = vmul.f32 %v2837, %v3521
      %v3523 = vsub.f32 1.0, %v3522
      %v3524 = vmul.f32 %v3521, %v3523
      %v3525 = vadd.f32 %v3521, %v3524
      %vm3526 = vweird.f32 %v2837
      %vm3527 = vweird.f32 %v3521
      %vm3528 = vmor %vm3526, %vm3527
      %v3529 = vsel %vm3528, %v3521, %v3525
      %v3530 = vand.u32 2147483647, %v2837
      %vm3531 = vcmp.eq.f32.partialorder %v3530, 8.507059e+37
      %v3532 = vand.u32 %v2837, 2147483648
      %v3533 = vor.u32 1.1754944e-38, %v3532
      %v3534 = vsel %vm3531, %v3533, %v3529
      %v3535 = vmul.f32 1.0, %v3534
      %v3536 = vrcp.pop %v2838
      %v3537 = vmul.f32 %v2838, %v3536
      %v3538 = vsub.f32 1.0, %v3537
      %v3539 = vmul.f32 %v3536, %v3538
      %v3540 = vadd.f32 %v3536, %v3539
      %vm3541 = vweird.f32 %v2838
      %vm3542 = vweird.f32 %v3536
      %vm3543 = vmor %vm3541, %vm3542
      %v3544 = vsel %vm3543, %v3536, %v3540
      %v3545 = vand.u32 2147483647, %v2838
      %vm3546 = vcmp.eq.f32.partialorder %v3545, 8.507059e+37
      %v3547 = vand.u32 %v2838, 2147483648
      %v3548 = vor.u32 1.1754944e-38, %v3547
      %v3549 = vsel %vm3546, %v3548, %v3544
      %v3550 = vmul.f32 1.0, %v3549
      %v3551 = vrcp.pop %v2839
      %v3552 = vmul.f32 %v2839, %v3551
      %v3553 = vsub.f32 1.0, %v3552
      %v3554 = vmul.f32 %v3551, %v3553
      %v3555 = vadd.f32 %v3551, %v3554
      %vm3556 = vweird.f32 %v2839
      %vm3557 = vweird.f32 %v3551
      %vm3558 = vmor %vm3556, %vm3557
      %v3559 = vsel %vm3558, %v3551, %v3555
      %v3560 = vand.u32 2147483647, %v2839
      %vm3561 = vcmp.eq.f32.partialorder %v3560, 8.507059e+37
      %v3562 = vand.u32 %v2839, 2147483648
      %v3563 = vor.u32 1.1754944e-38, %v3562
      %v3564 = vsel %vm3561, %v3563, %v3559
      %v3565 = vmul.f32 1.0, %v3564
      %v3566 = vrcp.pop %v2840
      %v3567 = vmul.f32 %v2840, %v3566
      %v3568 = vsub.f32 1.0, %v3567
      %v3569 = vmul.f32 %v3566, %v3568
      %v3570 = vadd.f32 %v3566, %v3569
      %vm3571 = vweird.f32 %v2840
      %vm3572 = vweird.f32 %v3566
      %vm3573 = vmor %vm3571, %vm3572
      %v3574 = vsel %vm3573, %v3566, %v3570
      %v3575 = vand.u32 2147483647, %v2840
      %vm3576 = vcmp.eq.f32.partialorder %v3575, 8.507059e+37
      %v3577 = vand.u32 %v2840, 2147483648
      %v3578 = vor.u32 1.1754944e-38, %v3577
      %v3579 = vsel %vm3576, %v3578, %v3574
      %v3580 = vmul.f32 1.0, %v3579
      %v3581 = vrcp.pop %v2841
      %v3582 = vmul.f32 %v2841, %v3581
      %v3583 = vsub.f32 1.0, %v3582
      %v3584 = vmul.f32 %v3581, %v3583
      %v3585 = vadd.f32 %v3581, %v3584
      %vm3586 = vweird.f32 %v2841
      %vm3587 = vweird.f32 %v3581
      %vm3588 = vmor %vm3586, %vm3587
      %v3589 = vsel %vm3588, %v3581, %v3585
      %v3590 = vand.u32 2147483647, %v2841
      %vm3591 = vcmp.eq.f32.partialorder %v3590, 8.507059e+37
      %v3592 = vand.u32 %v2841, 2147483648
      %v3593 = vor.u32 1.1754944e-38, %v3592
      %v3594 = vsel %vm3591, %v3593, %v3589
      %v3595 = vmul.f32 1.0, %v3594
      %v3596 = vrcp.pop %v2842
      %v3597 = vmul.f32 %v2842, %v3596
      %v3598 = vsub.f32 1.0, %v3597
      %v3599 = vmul.f32 %v3596, %v3598
      %v3600 = vadd.f32 %v3596, %v3599
      %vm3601 = vweird.f32 %v2842
      %vm3602 = vweird.f32 %v3596
      %vm3603 = vmor %vm3601, %vm3602
      %v3604 = vsel %vm3603, %v3596, %v3600
      %v3605 = vand.u32 2147483647, %v2842
      %vm3606 = vcmp.eq.f32.partialorder %v3605, 8.507059e+37
      %v3607 = vand.u32 %v2842, 2147483648
      %v3608 = vor.u32 1.1754944e-38, %v3607
      %v3609 = vsel %vm3606, %v3608, %v3604
      %v3610 = vmul.f32 1.0, %v3609
      %v3611 = vrcp.pop %v2843
      %v3612 = vmul.f32 %v2843, %v3611
      %v3613 = vsub.f32 1.0, %v3612
      %v3614 = vmul.f32 %v3611, %v3613
      %v3615 = vadd.f32 %v3611, %v3614
      %vm3616 = vweird.f32 %v2843
      %vm3617 = vweird.f32 %v3611
      %vm3618 = vmor %vm3616, %vm3617
      %v3619 = vsel %vm3618, %v3611, %v3615
      %v3620 = vand.u32 2147483647, %v2843
      %vm3621 = vcmp.eq.f32.partialorder %v3620, 8.507059e+37
      %v3622 = vand.u32 %v2843, 2147483648
      %v3623 = vor.u32 1.1754944e-38, %v3622
      %v3624 = vsel %vm3621, %v3623, %v3619
      %v3625 = vmul.f32 1.0, %v3624
      %v3626 = vrcp.pop %v2844
      %v3627 = vmul.f32 %v2844, %v3626
      %v3628 = vsub.f32 1.0, %v3627
      %v3629 = vmul.f32 %v3626, %v3628
      %v3630 = vadd.f32 %v3626, %v3629
      %vm3631 = vweird.f32 %v2844
      %vm3632 = vweird.f32 %v3626
      %vm3633 = vmor %vm3631, %vm3632
      %v3634 = vsel %vm3633, %v3626, %v3630
      %v3635 = vand.u32 2147483647, %v2844
      %vm3636 = vcmp.eq.f32.partialorder %v3635, 8.507059e+37
      %v3637 = vand.u32 %v2844, 2147483648
      %v3638 = vor.u32 1.1754944e-38, %v3637
      %v3639 = vsel %vm3636, %v3638, %v3634
      %v3640 = vmul.f32 1.0, %v3639
      %v3641 = vrcp.pop %v2845
      %v3642 = vmul.f32 %v2845, %v3641
      %v3643 = vsub.f32 1.0, %v3642
      %v3644 = vmul.f32 %v3641, %v3643
      %v3645 = vadd.f32 %v3641, %v3644
      %vm3646 = vweird.f32 %v2845
      %vm3647 = vweird.f32 %v3641
      %vm3648 = vmor %vm3646, %vm3647
      %v3649 = vsel %vm3648, %v3641, %v3645
      %v3650 = vand.u32 2147483647, %v2845
      %vm3651 = vcmp.eq.f32.partialorder %v3650, 8.507059e+37
      %v3652 = vand.u32 %v2845, 2147483648
      %v3653 = vor.u32 1.1754944e-38, %v3652
      %v3654 = vsel %vm3651, %v3653, %v3649
      %v3655 = vmul.f32 1.0, %v3654
      %v3656 = vrcp.pop %v2846
      %v3657 = vmul.f32 %v2846, %v3656
      %v3658 = vsub.f32 1.0, %v3657
      %v3659 = vmul.f32 %v3656, %v3658
      %v3660 = vadd.f32 %v3656, %v3659
      %vm3661 = vweird.f32 %v2846
      %vm3662 = vweird.f32 %v3656
      %vm3663 = vmor %vm3661, %vm3662
      %v3664 = vsel %vm3663, %v3656, %v3660
      %v3665 = vand.u32 2147483647, %v2846
      %vm3666 = vcmp.eq.f32.partialorder %v3665, 8.507059e+37
      %v3667 = vand.u32 %v2846, 2147483648
      %v3668 = vor.u32 1.1754944e-38, %v3667
      %v3669 = vsel %vm3666, %v3668, %v3664
      %v3670 = vmul.f32 1.0, %v3669
      %v3671 = vrcp.pop %v2847
      %v3672 = vmul.f32 %v2847, %v3671
      %v3673 = vsub.f32 1.0, %v3672
      %v3674 = vmul.f32 %v3671, %v3673
      %v3675 = vadd.f32 %v3671, %v3674
      %vm3676 = vweird.f32 %v2847
      %vm3677 = vweird.f32 %v3671
      %vm3678 = vmor %vm3676, %vm3677
      %v3679 = vsel %vm3678, %v3671, %v3675
      %v3680 = vand.u32 2147483647, %v2847
      %vm3681 = vcmp.eq.f32.partialorder %v3680, 8.507059e+37
      %v3682 = vand.u32 %v2847, 2147483648
      %v3683 = vor.u32 1.1754944e-38, %v3682
      %v3684 = vsel %vm3681, %v3683, %v3679
      %v3685 = vmul.f32 1.0, %v3684
      %v3686 = vrcp.pop %v2848
      %v3687 = vmul.f32 %v2848, %v3686
      %v3688 = vsub.f32 1.0, %v3687
      %v3689 = vmul.f32 %v3686, %v3688
      %v3690 = vadd.f32 %v3686, %v3689
      %vm3691 = vweird.f32 %v2848
      %vm3692 = vweird.f32 %v3686
      %vm3693 = vmor %vm3691, %vm3692
      %v3694 = vsel %vm3693, %v3686, %v3690
      %v3695 = vand.u32 2147483647, %v2848
      %vm3696 = vcmp.eq.f32.partialorder %v3695, 8.507059e+37
      %v3697 = vand.u32 %v2848, 2147483648
      %v3698 = vor.u32 1.1754944e-38, %v3697
      %v3699 = vsel %vm3696, %v3698, %v3694
      %v3700 = vmul.f32 1.0, %v3699
      %v3701 = vrcp.pop %v2849
      %v3702 = vmul.f32 %v2849, %v3701
      %v3703 = vsub.f32 1.0, %v3702
      %v3704 = vmul.f32 %v3701, %v3703
      %v3705 = vadd.f32 %v3701, %v3704
      %vm3706 = vweird.f32 %v2849
      %vm3707 = vweird.f32 %v3701
      %vm3708 = vmor %vm3706, %vm3707
      %v3709 = vsel %vm3708, %v3701, %v3705
      %v3710 = vand.u32 2147483647, %v2849
      %vm3711 = vcmp.eq.f32.partialorder %v3710, 8.507059e+37
      %v3712 = vand.u32 %v2849, 2147483648
      %v3713 = vor.u32 1.1754944e-38, %v3712
      %v3714 = vsel %vm3711, %v3713, %v3709
      %v3715 = vmul.f32 1.0, %v3714
      %v3716 = vrcp.pop %v2850
      %v3717 = vmul.f32 %v2850, %v3716
      %v3718 = vsub.f32 1.0, %v3717
      %v3719 = vmul.f32 %v3716, %v3718
      %v3720 = vadd.f32 %v3716, %v3719
      %vm3721 = vweird.f32 %v2850
      %vm3722 = vweird.f32 %v3716
      %vm3723 = vmor %vm3721, %vm3722
      %v3724 = vsel %vm3723, %v3716, %v3720
      %v3725 = vand.u32 2147483647, %v2850
      %vm3726 = vcmp.eq.f32.partialorder %v3725, 8.507059e+37
      %v3727 = vand.u32 %v2850, 2147483648
      %v3728 = vor.u32 1.1754944e-38, %v3727
      %v3729 = vsel %vm3726, %v3728, %v3724
      %v3730 = vmul.f32 1.0, %v3729
      %v3731 = vrcp.pop %v2851
      %v3732 = vmul.f32 %v2851, %v3731
      %v3733 = vsub.f32 1.0, %v3732
      %v3734 = vmul.f32 %v3731, %v3733
      %v3735 = vadd.f32 %v3731, %v3734
      %vm3736 = vweird.f32 %v2851
      %vm3737 = vweird.f32 %v3731
      %vm3738 = vmor %vm3736, %vm3737
      %v3739 = vsel %vm3738, %v3731, %v3735
      %v3740 = vand.u32 2147483647, %v2851
      %vm3741 = vcmp.eq.f32.partialorder %v3740, 8.507059e+37
      %v3742 = vand.u32 %v2851, 2147483648
      %v3743 = vor.u32 1.1754944e-38, %v3742
      %v3744 = vsel %vm3741, %v3743, %v3739
      %v3745 = vmul.f32 1.0, %v3744
      %v3746 = vrcp.pop %v2852
      %v3747 = vmul.f32 %v2852, %v3746
      %v3748 = vsub.f32 1.0, %v3747
      %v3749 = vmul.f32 %v3746, %v3748
      %v3750 = vadd.f32 %v3746, %v3749
      %vm3751 = vweird.f32 %v2852
      %vm3752 = vweird.f32 %v3746
      %vm3753 = vmor %vm3751, %vm3752
      %v3754 = vsel %vm3753, %v3746, %v3750
      %v3755 = vand.u32 2147483647, %v2852
      %vm3756 = vcmp.eq.f32.partialorder %v3755, 8.507059e+37
      %v3757 = vand.u32 %v2852, 2147483648
      %v3758 = vor.u32 1.1754944e-38, %v3757
      %v3759 = vsel %vm3756, %v3758, %v3754
      %v3760 = vmul.f32 1.0, %v3759
      %v3761 = vrcp.pop %v2853
      %v3762 = vmul.f32 %v2853, %v3761
      %v3763 = vsub.f32 1.0, %v3762
      %v3764 = vmul.f32 %v3761, %v3763
      %v3765 = vadd.f32 %v3761, %v3764
      %vm3766 = vweird.f32 %v2853
      %vm3767 = vweird.f32 %v3761
      %vm3768 = vmor %vm3766, %vm3767
      %v3769 = vsel %vm3768, %v3761, %v3765
      %v3770 = vand.u32 2147483647, %v2853
      %vm3771 = vcmp.eq.f32.partialorder %v3770, 8.507059e+37
      %v3772 = vand.u32 %v2853, 2147483648
      %v3773 = vor.u32 1.1754944e-38, %v3772
      %v3774 = vsel %vm3771, %v3773, %v3769
      %v3775 = vmul.f32 1.0, %v3774
      %v3776 = vrcp.pop %v2854
      %v3777 = vmul.f32 %v2854, %v3776
      %v3778 = vsub.f32 1.0, %v3777
      %v3779 = vmul.f32 %v3776, %v3778
      %v3780 = vadd.f32 %v3776, %v3779
      %vm3781 = vweird.f32 %v2854
      %vm3782 = vweird.f32 %v3776
      %vm3783 = vmor %vm3781, %vm3782
      %v3784 = vsel %vm3783, %v3776, %v3780
      %v3785 = vand.u32 2147483647, %v2854
      %vm3786 = vcmp.eq.f32.partialorder %v3785, 8.507059e+37
      %v3787 = vand.u32 %v2854, 2147483648
      %v3788 = vor.u32 1.1754944e-38, %v3787
      %v3789 = vsel %vm3786, %v3788, %v3784
      %v3790 = vmul.f32 1.0, %v3789
      %v3791 = vrcp.pop %v2855
      %v3792 = vmul.f32 %v2855, %v3791
      %v3793 = vsub.f32 1.0, %v3792
      %v3794 = vmul.f32 %v3791, %v3793
      %v3795 = vadd.f32 %v3791, %v3794
      %vm3796 = vweird.f32 %v2855
      %vm3797 = vweird.f32 %v3791
      %vm3798 = vmor %vm3796, %vm3797
      %v3799 = vsel %vm3798, %v3791, %v3795
      %v3800 = vand.u32 2147483647, %v2855
      %vm3801 = vcmp.eq.f32.partialorder %v3800, 8.507059e+37
      %v3802 = vand.u32 %v2855, 2147483648
      %v3803 = vor.u32 1.1754944e-38, %v3802
      %v3804 = vsel %vm3801, %v3803, %v3799
      %v3805 = vmul.f32 1.0, %v3804
      %v3806 = vrcp.pop %v2856
      %v3807 = vmul.f32 %v2856, %v3806
      %v3808 = vsub.f32 1.0, %v3807
      %v3809 = vmul.f32 %v3806, %v3808
      %v3810 = vadd.f32 %v3806, %v3809
      %vm3811 = vweird.f32 %v2856
      %vm3812 = vweird.f32 %v3806
      %vm3813 = vmor %vm3811, %vm3812
      %v3814 = vsel %vm3813, %v3806, %v3810
      %v3815 = vand.u32 2147483647, %v2856
      %vm3816 = vcmp.eq.f32.partialorder %v3815, 8.507059e+37
      %v3817 = vand.u32 %v2856, 2147483648
      %v3818 = vor.u32 1.1754944e-38, %v3817
      %v3819 = vsel %vm3816, %v3818, %v3814
      %v3820 = vmul.f32 1.0, %v3819
      %v3821 = vrcp.pop %v2857
      %v3822 = vmul.f32 %v2857, %v3821
      %v3823 = vsub.f32 1.0, %v3822
      %v3824 = vmul.f32 %v3821, %v3823
      %v3825 = vadd.f32 %v3821, %v3824
      %vm3826 = vweird.f32 %v2857
      %vm3827 = vweird.f32 %v3821
      %vm3828 = vmor %vm3826, %vm3827
      %v3829 = vsel %vm3828, %v3821, %v3825
      %v3830 = vand.u32 2147483647, %v2857
      %vm3831 = vcmp.eq.f32.partialorder %v3830, 8.507059e+37
      %v3832 = vand.u32 %v2857, 2147483648
      %v3833 = vor.u32 1.1754944e-38, %v3832
      %v3834 = vsel %vm3831, %v3833, %v3829
      %v3835 = vmul.f32 1.0, %v3834
      %v3836 = vrcp.pop %v2858
      %v3837 = vmul.f32 %v2858, %v3836
      %v3838 = vsub.f32 1.0, %v3837
      %v3839 = vmul.f32 %v3836, %v3838
      %v3840 = vadd.f32 %v3836, %v3839
      %vm3841 = vweird.f32 %v2858
      %vm3842 = vweird.f32 %v3836
      %vm3843 = vmor %vm3841, %vm3842
      %v3844 = vsel %vm3843, %v3836, %v3840
      %v3845 = vand.u32 2147483647, %v2858
      %vm3846 = vcmp.eq.f32.partialorder %v3845, 8.507059e+37
      %v3847 = vand.u32 %v2858, 2147483648
      %v3848 = vor.u32 1.1754944e-38, %v3847
      %v3849 = vsel %vm3846, %v3848, %v3844
      %v3850 = vmul.f32 1.0, %v3849
      %v3851 = vrcp.pop %v2859
      %v3852 = vmul.f32 %v2859, %v3851
      %v3853 = vsub.f32 1.0, %v3852
      %v3854 = vmul.f32 %v3851, %v3853
      %v3855 = vadd.f32 %v3851, %v3854
      %vm3856 = vweird.f32 %v2859
      %vm3857 = vweird.f32 %v3851
      %vm3858 = vmor %vm3856, %vm3857
      %v3859 = vsel %vm3858, %v3851, %v3855
      %v3860 = vand.u32 2147483647, %v2859
      %vm3861 = vcmp.eq.f32.partialorder %v3860, 8.507059e+37
      %v3862 = vand.u32 %v2859, 2147483648
      %v3863 = vor.u32 1.1754944e-38, %v3862
      %v3864 = vsel %vm3861, %v3863, %v3859
      %v3865 = vmul.f32 1.0, %v3864
      %v3866 = vrcp.pop %v2860
      %v3867 = vmul.f32 %v2860, %v3866
      %v3868 = vsub.f32 1.0, %v3867
      %v3869 = vmul.f32 %v3866, %v3868
      %v3870 = vadd.f32 %v3866, %v3869
      %vm3871 = vweird.f32 %v2860
      %vm3872 = vweird.f32 %v3866
      %vm3873 = vmor %vm3871, %vm3872
      %v3874 = vsel %vm3873, %v3866, %v3870
      %v3875 = vand.u32 2147483647, %v2860
      %vm3876 = vcmp.eq.f32.partialorder %v3875, 8.507059e+37
      %v3877 = vand.u32 %v2860, 2147483648
      %v3878 = vor.u32 1.1754944e-38, %v3877
      %v3879 = vsel %vm3876, %v3878, %v3874
      %v3880 = vmul.f32 1.0, %v3879
      %v3881 = vrcp.pop %v2861
      %v3882 = vmul.f32 %v2861, %v3881
      %v3883 = vsub.f32 1.0, %v3882
      %v3884 = vmul.f32 %v3881, %v3883
      %v3885 = vadd.f32 %v3881, %v3884
      %vm3886 = vweird.f32 %v2861
      %vm3887 = vweird.f32 %v3881
      %vm3888 = vmor %vm3886, %vm3887
      %v3889 = vsel %vm3888, %v3881, %v3885
      %v3890 = vand.u32 2147483647, %v2861
      %vm3891 = vcmp.eq.f32.partialorder %v3890, 8.507059e+37
      %v3892 = vand.u32 %v2861, 2147483648
      %v3893 = vor.u32 1.1754944e-38, %v3892
      %v3894 = vsel %vm3891, %v3893, %v3889
      %v3895 = vmul.f32 1.0, %v3894
      %v3896 = vrcp.pop %v2862
      %v3897 = vmul.f32 %v2862, %v3896
      %v3898 = vsub.f32 1.0, %v3897
      %v3899 = vmul.f32 %v3896, %v3898
      %v3900 = vadd.f32 %v3896, %v3899
      %vm3901 = vweird.f32 %v2862
      %vm3902 = vweird.f32 %v3896
      %vm3903 = vmor %vm3901, %vm3902
      %v3904 = vsel %vm3903, %v3896, %v3900
      %v3905 = vand.u32 2147483647, %v2862
      %vm3906 = vcmp.eq.f32.partialorder %v3905, 8.507059e+37
      %v3907 = vand.u32 %v2862, 2147483648
      %v3908 = vor.u32 1.1754944e-38, %v3907
      %v3909 = vsel %vm3906, %v3908, %v3904
      %v3910 = vmul.f32 1.0, %v3909
      %v3911 = vrcp.pop %v2863
      %v3912 = vmul.f32 %v2863, %v3911
      %v3913 = vsub.f32 1.0, %v3912
      %v3914 = vmul.f32 %v3911, %v3913
      %v3915 = vadd.f32 %v3911, %v3914
      %vm3916 = vweird.f32 %v2863
      %vm3917 = vweird.f32 %v3911
      %vm3918 = vmor %vm3916, %vm3917
      %v3919 = vsel %vm3918, %v3911, %v3915
      %v3920 = vand.u32 2147483647, %v2863
      %vm3921 = vcmp.eq.f32.partialorder %v3920, 8.507059e+37
      %v3922 = vand.u32 %v2863, 2147483648
      %v3923 = vor.u32 1.1754944e-38, %v3922
      %v3924 = vsel %vm3921, %v3923, %v3919
      %v3925 = vmul.f32 1.0, %v3924
      %v3926 = vrcp.pop %v2864
      %v3927 = vmul.f32 %v2864, %v3926
      %v3928 = vsub.f32 1.0, %v3927
      %v3929 = vmul.f32 %v3926, %v3928
      %v3930 = vadd.f32 %v3926, %v3929
      %vm3931 = vweird.f32 %v2864
      %vm3932 = vweird.f32 %v3926
      %vm3933 = vmor %vm3931, %vm3932
      %v3934 = vsel %vm3933, %v3926, %v3930
      %v3935 = vand.u32 2147483647, %v2864
      %vm3936 = vcmp.eq.f32.partialorder %v3935, 8.507059e+37
      %v3937 = vand.u32 %v2864, 2147483648
      %v3938 = vor.u32 1.1754944e-38, %v3937
      %v3939 = vsel %vm3936, %v3938, %v3934
      %v3940 = vmul.f32 1.0, %v3939
      %v3941 = vrcp.pop %v2865
      %v3942 = vmul.f32 %v2865, %v3941
      %v3943 = vsub.f32 1.0, %v3942
      %v3944 = vmul.f32 %v3941, %v3943
      %v3945 = vadd.f32 %v3941, %v3944
      %vm3946 = vweird.f32 %v2865
      %vm3947 = vweird.f32 %v3941
      %vm3948 = vmor %vm3946, %vm3947
      %v3949 = vsel %vm3948, %v3941, %v3945
      %v3950 = vand.u32 2147483647, %v2865
      %vm3951 = vcmp.eq.f32.partialorder %v3950, 8.507059e+37
      %v3952 = vand.u32 %v2865, 2147483648
      %v3953 = vor.u32 1.1754944e-38, %v3952
      %v3954 = vsel %vm3951, %v3953, %v3949
      %v3955 = vmul.f32 1.0, %v3954
      %v3956 = vrcp.pop %v2866
      %v3957 = vmul.f32 %v2866, %v3956
      %v3958 = vsub.f32 1.0, %v3957
      %v3959 = vmul.f32 %v3956, %v3958
      %v3960 = vadd.f32 %v3956, %v3959
      %vm3961 = vweird.f32 %v2866
      %vm3962 = vweird.f32 %v3956
      %vm3963 = vmor %vm3961, %vm3962
      %v3964 = vsel %vm3963, %v3956, %v3960
      %v3965 = vand.u32 2147483647, %v2866
      %vm3966 = vcmp.eq.f32.partialorder %v3965, 8.507059e+37
      %v3967 = vand.u32 %v2866, 2147483648
      %v3968 = vor.u32 1.1754944e-38, %v3967
      %v3969 = vsel %vm3966, %v3968, %v3964
      %v3970 = vmul.f32 1.0, %v3969
      %v3971 = vrcp.pop %v2867
      %v3972 = vmul.f32 %v2867, %v3971
      %v3973 = vsub.f32 1.0, %v3972
      %v3974 = vmul.f32 %v3971, %v3973
      %v3975 = vadd.f32 %v3971, %v3974
      %vm3976 = vweird.f32 %v2867
      %vm3977 = vweird.f32 %v3971
      %vm3978 = vmor %vm3976, %vm3977
      %v3979 = vsel %vm3978, %v3971, %v3975
      %v3980 = vand.u32 2147483647, %v2867
      %vm3981 = vcmp.eq.f32.partialorder %v3980, 8.507059e+37
      %v3982 = vand.u32 %v2867, 2147483648
      %v3983 = vor.u32 1.1754944e-38, %v3982
      %v3984 = vsel %vm3981, %v3983, %v3979
      %v3985 = vmul.f32 1.0, %v3984
      %v3986 = vrcp.pop %v2868
      %v3987 = vmul.f32 %v2868, %v3986
      %v3988 = vsub.f32 1.0, %v3987
      %v3989 = vmul.f32 %v3986, %v3988
      %v3990 = vadd.f32 %v3986, %v3989
      %vm3991 = vweird.f32 %v2868
      %vm3992 = vweird.f32 %v3986
      %vm3993 = vmor %vm3991, %vm3992
      %v3994 = vsel %vm3993, %v3986, %v3990
      %v3995 = vand.u32 2147483647, %v2868
      %vm3996 = vcmp.eq.f32.partialorder %v3995, 8.507059e+37
      %v3997 = vand.u32 %v2868, 2147483648
      %v3998 = vor.u32 1.1754944e-38, %v3997
      %v3999 = vsel %vm3996, %v3998, %v3994
      %v4000 = vmul.f32 1.0, %v3999
      %v4001 = vrcp.pop %v2869
      %v4002 = vmul.f32 %v2869, %v4001
      %v4003 = vsub.f32 1.0, %v4002
      %v4004 = vmul.f32 %v4001, %v4003
      %v4005 = vadd.f32 %v4001, %v4004
      %vm4006 = vweird.f32 %v2869
      %vm4007 = vweird.f32 %v4001
      %vm4008 = vmor %vm4006, %vm4007
      %v4009 = vsel %vm4008, %v4001, %v4005
      %v4010 = vand.u32 2147483647, %v2869
      %vm4011 = vcmp.eq.f32.partialorder %v4010, 8.507059e+37
      %v4012 = vand.u32 %v2869, 2147483648
      %v4013 = vor.u32 1.1754944e-38, %v4012
      %v4014 = vsel %vm4011, %v4013, %v4009
      %v4015 = vmul.f32 1.0, %v4014
      %v4016 = vrcp.pop %v2870
      %v4017 = vmul.f32 %v2870, %v4016
      %v4018 = vsub.f32 1.0, %v4017
      %v4019 = vmul.f32 %v4016, %v4018
      %v4020 = vadd.f32 %v4016, %v4019
      %vm4021 = vweird.f32 %v2870
      %vm4022 = vweird.f32 %v4016
      %vm4023 = vmor %vm4021, %vm4022
      %v4024 = vsel %vm4023, %v4016, %v4020
      %v4025 = vand.u32 2147483647, %v2870
      %vm4026 = vcmp.eq.f32.partialorder %v4025, 8.507059e+37
      %v4027 = vand.u32 %v2870, 2147483648
      %v4028 = vor.u32 1.1754944e-38, %v4027
      %v4029 = vsel %vm4026, %v4028, %v4024
      %v4030 = vmul.f32 1.0, %v4029
      %v4031 = vrcp.pop %v2871
      %v4032 = vmul.f32 %v2871, %v4031
      %v4033 = vsub.f32 1.0, %v4032
      %v4034 = vmul.f32 %v4031, %v4033
      %v4035 = vadd.f32 %v4031, %v4034
      %vm4036 = vweird.f32 %v2871
      %vm4037 = vweird.f32 %v4031
      %vm4038 = vmor %vm4036, %vm4037
      %v4039 = vsel %vm4038, %v4031, %v4035
      %v4040 = vand.u32 2147483647, %v2871
      %vm4041 = vcmp.eq.f32.partialorder %v4040, 8.507059e+37
      %v4042 = vand.u32 %v2871, 2147483648
      %v4043 = vor.u32 1.1754944e-38, %v4042
      %v4044 = vsel %vm4041, %v4043, %v4039
      %v4045 = vmul.f32 1.0, %v4044
      %v4046 = vrcp.pop %v2872
      %v4047 = vmul.f32 %v2872, %v4046
      %v4048 = vsub.f32 1.0, %v4047
      %v4049 = vmul.f32 %v4046, %v4048
      %v4050 = vadd.f32 %v4046, %v4049
      %vm4051 = vweird.f32 %v2872
      %vm4052 = vweird.f32 %v4046
      %vm4053 = vmor %vm4051, %vm4052
      %v4054 = vsel %vm4053, %v4046, %v4050
      %v4055 = vand.u32 2147483647, %v2872
      %vm4056 = vcmp.eq.f32.partialorder %v4055, 8.507059e+37
      %v4057 = vand.u32 %v2872, 2147483648
      %v4058 = vor.u32 1.1754944e-38, %v4057
      %v4059 = vsel %vm4056, %v4058, %v4054
      %v4060 = vmul.f32 1.0, %v4059
      %v4061 = vrcp.pop %v2873
      %v4062 = vmul.f32 %v2873, %v4061
      %v4063 = vsub.f32 1.0, %v4062
      %v4064 = vmul.f32 %v4061, %v4063
      %v4065 = vadd.f32 %v4061, %v4064
      %vm4066 = vweird.f32 %v2873
      %vm4067 = vweird.f32 %v4061
      %vm4068 = vmor %vm4066, %vm4067
      %v4069 = vsel %vm4068, %v4061, %v4065
      %v4070 = vand.u32 2147483647, %v2873
      %vm4071 = vcmp.eq.f32.partialorder %v4070, 8.507059e+37
      %v4072 = vand.u32 %v2873, 2147483648
      %v4073 = vor.u32 1.1754944e-38, %v4072
      %v4074 = vsel %vm4071, %v4073, %v4069
      %v4075 = vmul.f32 1.0, %v4074
      %v4076 = vrcp.pop %v2874
      %v4077 = vmul.f32 %v2874, %v4076
      %v4078 = vsub.f32 1.0, %v4077
      %v4079 = vmul.f32 %v4076, %v4078
      %v4080 = vadd.f32 %v4076, %v4079
      %vm4081 = vweird.f32 %v2874
      %vm4082 = vweird.f32 %v4076
      %vm4083 = vmor %vm4081, %vm4082
      %v4084 = vsel %vm4083, %v4076, %v4080
      %v4085 = vand.u32 2147483647, %v2874
      %vm4086 = vcmp.eq.f32.partialorder %v4085, 8.507059e+37
      %v4087 = vand.u32 %v2874, 2147483648
      %v4088 = vor.u32 1.1754944e-38, %v4087
      %v4089 = vsel %vm4086, %v4088, %v4084
      %v4090 = vmul.f32 1.0, %v4089
      %v4091 = vrcp.pop %v2875
      %v4092 = vmul.f32 %v2875, %v4091
      %v4093 = vsub.f32 1.0, %v4092
      %v4094 = vmul.f32 %v4091, %v4093
      %v4095 = vadd.f32 %v4091, %v4094
      %vm4096 = vweird.f32 %v2875
      %vm4097 = vweird.f32 %v4091
      %vm4098 = vmor %vm4096, %vm4097
      %v4099 = vsel %vm4098, %v4091, %v4095
      %v4100 = vand.u32 2147483647, %v2875
      %vm4101 = vcmp.eq.f32.partialorder %v4100, 8.507059e+37
      %v4102 = vand.u32 %v2875, 2147483648
      %v4103 = vor.u32 1.1754944e-38, %v4102
      %v4104 = vsel %vm4101, %v4103, %v4099
      %v4105 = vmul.f32 1.0, %v4104
      %v4106 = vrcp.pop %v2876
      %v4107 = vmul.f32 %v2876, %v4106
      %v4108 = vsub.f32 1.0, %v4107
      %v4109 = vmul.f32 %v4106, %v4108
      %v4110 = vadd.f32 %v4106, %v4109
      %vm4111 = vweird.f32 %v2876
      %vm4112 = vweird.f32 %v4106
      %vm4113 = vmor %vm4111, %vm4112
      %v4114 = vsel %vm4113, %v4106, %v4110
      %v4115 = vand.u32 2147483647, %v2876
      %vm4116 = vcmp.eq.f32.partialorder %v4115, 8.507059e+37
      %v4117 = vand.u32 %v2876, 2147483648
      %v4118 = vor.u32 1.1754944e-38, %v4117
      %v4119 = vsel %vm4116, %v4118, %v4114
      %v4120 = vmul.f32 1.0, %v4119
      %v4121 = vrcp.pop %v2877
      %v4122 = vmul.f32 %v2877, %v4121
      %v4123 = vsub.f32 1.0, %v4122
      %v4124 = vmul.f32 %v4121, %v4123
      %v4125 = vadd.f32 %v4121, %v4124
      %vm4126 = vweird.f32 %v2877
      %vm4127 = vweird.f32 %v4121
      %vm4128 = vmor %vm4126, %vm4127
      %v4129 = vsel %vm4128, %v4121, %v4125
      %v4130 = vand.u32 2147483647, %v2877
      %vm4131 = vcmp.eq.f32.partialorder %v4130, 8.507059e+37
      %v4132 = vand.u32 %v2877, 2147483648
      %v4133 = vor.u32 1.1754944e-38, %v4132
      %v4134 = vsel %vm4131, %v4133, %v4129
      %v4135 = vmul.f32 1.0, %v4134
      %v4136 = vrcp.pop %v2878
      %v4137 = vmul.f32 %v2878, %v4136
      %v4138 = vsub.f32 1.0, %v4137
      %v4139 = vmul.f32 %v4136, %v4138
      %v4140 = vadd.f32 %v4136, %v4139
      %vm4141 = vweird.f32 %v2878
      %vm4142 = vweird.f32 %v4136
      %vm4143 = vmor %vm4141, %vm4142
      %v4144 = vsel %vm4143, %v4136, %v4140
      %v4145 = vand.u32 2147483647, %v2878
      %vm4146 = vcmp.eq.f32.partialorder %v4145, 8.507059e+37
      %v4147 = vand.u32 %v2878, 2147483648
      %v4148 = vor.u32 1.1754944e-38, %v4147
      %v4149 = vsel %vm4146, %v4148, %v4144
      %v4150 = vmul.f32 1.0, %v4149
      %v4151 = vrcp.pop %v2879
      %v4152 = vmul.f32 %v2879, %v4151
      %v4153 = vsub.f32 1.0, %v4152
      %v4154 = vmul.f32 %v4151, %v4153
      %v4155 = vadd.f32 %v4151, %v4154
      %vm4156 = vweird.f32 %v2879
      %vm4157 = vweird.f32 %v4151
      %vm4158 = vmor %vm4156, %vm4157
      %v4159 = vsel %vm4158, %v4151, %v4155
      %v4160 = vand.u32 2147483647, %v2879
      %vm4161 = vcmp.eq.f32.partialorder %v4160, 8.507059e+37
      %v4162 = vand.u32 %v2879, 2147483648
      %v4163 = vor.u32 1.1754944e-38, %v4162
      %v4164 = vsel %vm4161, %v4163, %v4159
      %v4165 = vmul.f32 1.0, %v4164
      %v4166 = vrcp.pop %v2880
      %v4167 = vmul.f32 %v2880, %v4166
      %v4168 = vsub.f32 1.0, %v4167
      %v4169 = vmul.f32 %v4166, %v4168
      %v4170 = vadd.f32 %v4166, %v4169
      %vm4171 = vweird.f32 %v2880
      %vm4172 = vweird.f32 %v4166
      %vm4173 = vmor %vm4171, %vm4172
      %v4174 = vsel %vm4173, %v4166, %v4170
      %v4175 = vand.u32 2147483647, %v2880
      %vm4176 = vcmp.eq.f32.partialorder %v4175, 8.507059e+37
      %v4177 = vand.u32 %v2880, 2147483648
      %v4178 = vor.u32 1.1754944e-38, %v4177
      %v4179 = vsel %vm4176, %v4178, %v4174
      %v4180 = vmul.f32 1.0, %v4179
      %v4181 = vrcp.pop %v2881
      %v4182 = vmul.f32 %v2881, %v4181
      %v4183 = vsub.f32 1.0, %v4182
      %v4184 = vmul.f32 %v4181, %v4183
      %v4185 = vadd.f32 %v4181, %v4184
      %vm4186 = vweird.f32 %v2881
      %vm4187 = vweird.f32 %v4181
      %vm4188 = vmor %vm4186, %vm4187
      %v4189 = vsel %vm4188, %v4181, %v4185
      %v4190 = vand.u32 2147483647, %v2881
      %vm4191 = vcmp.eq.f32.partialorder %v4190, 8.507059e+37
      %v4192 = vand.u32 %v2881, 2147483648
      %v4193 = vor.u32 1.1754944e-38, %v4192
      %v4194 = vsel %vm4191, %v4193, %v4189
      %v4195 = vmul.f32 1.0, %v4194
      %v4196 = vrcp.pop %v2882
      %v4197 = vmul.f32 %v2882, %v4196
      %v4198 = vsub.f32 1.0, %v4197
      %v4199 = vmul.f32 %v4196, %v4198
      %v4200 = vadd.f32 %v4196, %v4199
      %vm4201 = vweird.f32 %v2882
      %vm4202 = vweird.f32 %v4196
      %vm4203 = vmor %vm4201, %vm4202
      %v4204 = vsel %vm4203, %v4196, %v4200
      %v4205 = vand.u32 2147483647, %v2882
      %vm4206 = vcmp.eq.f32.partialorder %v4205, 8.507059e+37
      %v4207 = vand.u32 %v2882, 2147483648
      %v4208 = vor.u32 1.1754944e-38, %v4207
      %v4209 = vsel %vm4206, %v4208, %v4204
      %v4210 = vmul.f32 1.0, %v4209
      %v4211 = vrcp.pop %v2883
      %v4212 = vmul.f32 %v2883, %v4211
      %v4213 = vsub.f32 1.0, %v4212
      %v4214 = vmul.f32 %v4211, %v4213
      %v4215 = vadd.f32 %v4211, %v4214
      %vm4216 = vweird.f32 %v2883
      %vm4217 = vweird.f32 %v4211
      %vm4218 = vmor %vm4216, %vm4217
      %v4219 = vsel %vm4218, %v4211, %v4215
      %v4220 = vand.u32 2147483647, %v2883
      %vm4221 = vcmp.eq.f32.partialorder %v4220, 8.507059e+37
      %v4222 = vand.u32 %v2883, 2147483648
      %v4223 = vor.u32 1.1754944e-38, %v4222
      %v4224 = vsel %vm4221, %v4223, %v4219
      %v4225 = vmul.f32 1.0, %v4224
      %v4226 = vrcp.pop %v2884
      %v4227 = vmul.f32 %v2884, %v4226
      %v4228 = vsub.f32 1.0, %v4227
      %v4229 = vmul.f32 %v4226, %v4228
      %v4230 = vadd.f32 %v4226, %v4229
      %vm4231 = vweird.f32 %v2884
      %vm4232 = vweird.f32 %v4226
      %vm4233 = vmor %vm4231, %vm4232
      %v4234 = vsel %vm4233, %v4226, %v4230
      %v4235 = vand.u32 2147483647, %v2884
      %vm4236 = vcmp.eq.f32.partialorder %v4235, 8.507059e+37
      %v4237 = vand.u32 %v2884, 2147483648
      %v4238 = vor.u32 1.1754944e-38, %v4237
      %v4239 = vsel %vm4236, %v4238, %v4234
      %v4240 = vmul.f32 1.0, %v4239
      %v4241 = vrcp.pop %v2885
      %v4242 = vmul.f32 %v2885, %v4241
      %v4243 = vsub.f32 1.0, %v4242
      %v4244 = vmul.f32 %v4241, %v4243
      %v4245 = vadd.f32 %v4241, %v4244
      %vm4246 = vweird.f32 %v2885
      %vm4247 = vweird.f32 %v4241
      %vm4248 = vmor %vm4246, %vm4247
      %v4249 = vsel %vm4248, %v4241, %v4245
      %v4250 = vand.u32 2147483647, %v2885
      %vm4251 = vcmp.eq.f32.partialorder %v4250, 8.507059e+37
      %v4252 = vand.u32 %v2885, 2147483648
      %v4253 = vor.u32 1.1754944e-38, %v4252
      %v4254 = vsel %vm4251, %v4253, %v4249
      %v4255 = vmul.f32 1.0, %v4254
      %v4256 = vrcp.pop %v2886
      %v4257 = vmul.f32 %v2886, %v4256
      %v4258 = vsub.f32 1.0, %v4257
      %v4259 = vmul.f32 %v4256, %v4258
      %v4260 = vadd.f32 %v4256, %v4259
      %vm4261 = vweird.f32 %v2886
      %vm4262 = vweird.f32 %v4256
      %vm4263 = vmor %vm4261, %vm4262
      %v4264 = vsel %vm4263, %v4256, %v4260
      %v4265 = vand.u32 2147483647, %v2886
      %vm4266 = vcmp.eq.f32.partialorder %v4265, 8.507059e+37
      %v4267 = vand.u32 %v2886, 2147483648
      %v4268 = vor.u32 1.1754944e-38, %v4267
      %v4269 = vsel %vm4266, %v4268, %v4264
      %v4270 = vmul.f32 1.0, %v4269
      %v4271 = vrcp.pop %v2887
      %v4272 = vmul.f32 %v2887, %v4271
      %v4273 = vsub.f32 1.0, %v4272
      %v4274 = vmul.f32 %v4271, %v4273
      %v4275 = vadd.f32 %v4271, %v4274
      %vm4276 = vweird.f32 %v2887
      %vm4277 = vweird.f32 %v4271
      %vm4278 = vmor %vm4276, %vm4277
      %v4279 = vsel %vm4278, %v4271, %v4275
      %v4280 = vand.u32 2147483647, %v2887
      %vm4281 = vcmp.eq.f32.partialorder %v4280, 8.507059e+37
      %v4282 = vand.u32 %v2887, 2147483648
      %v4283 = vor.u32 1.1754944e-38, %v4282
      %v4284 = vsel %vm4281, %v4283, %v4279
      %v4285 = vmul.f32 1.0, %v4284
      %v4286 = vrcp.pop %v2888
      %v4287 = vmul.f32 %v2888, %v4286
      %v4288 = vsub.f32 1.0, %v4287
      %v4289 = vmul.f32 %v4286, %v4288
      %v4290 = vadd.f32 %v4286, %v4289
      %vm4291 = vweird.f32 %v2888
      %vm4292 = vweird.f32 %v4286
      %vm4293 = vmor %vm4291, %vm4292
      %v4294 = vsel %vm4293, %v4286, %v4290
      %v4295 = vand.u32 2147483647, %v2888
      %vm4296 = vcmp.eq.f32.partialorder %v4295, 8.507059e+37
      %v4297 = vand.u32 %v2888, 2147483648
      %v4298 = vor.u32 1.1754944e-38, %v4297
      %v4299 = vsel %vm4296, %v4298, %v4294
      %v4300 = vmul.f32 1.0, %v4299
      %v4301 = vrcp.pop %v2889
      %v4302 = vmul.f32 %v2889, %v4301
      %v4303 = vsub.f32 1.0, %v4302
      %v4304 = vmul.f32 %v4301, %v4303
      %v4305 = vadd.f32 %v4301, %v4304
      %vm4306 = vweird.f32 %v2889
      %vm4307 = vweird.f32 %v4301
      %vm4308 = vmor %vm4306, %vm4307
      %v4309 = vsel %vm4308, %v4301, %v4305
      %v4310 = vand.u32 2147483647, %v2889
      %vm4311 = vcmp.eq.f32.partialorder %v4310, 8.507059e+37
      %v4312 = vand.u32 %v2889, 2147483648
      %v4313 = vor.u32 1.1754944e-38, %v4312
      %v4314 = vsel %vm4311, %v4313, %v4309
      %v4315 = vmul.f32 1.0, %v4314
      %v4316 = vrcp.pop %v2890
      %v4317 = vmul.f32 %v2890, %v4316
      %v4318 = vsub.f32 1.0, %v4317
      %v4319 = vmul.f32 %v4316, %v4318
      %v4320 = vadd.f32 %v4316, %v4319
      %vm4321 = vweird.f32 %v2890
      %vm4322 = vweird.f32 %v4316
      %vm4323 = vmor %vm4321, %vm4322
      %v4324 = vsel %vm4323, %v4316, %v4320
      %v4325 = vand.u32 2147483647, %v2890
      %vm4326 = vcmp.eq.f32.partialorder %v4325, 8.507059e+37
      %v4327 = vand.u32 %v2890, 2147483648
      %v4328 = vor.u32 1.1754944e-38, %v4327
      %v4329 = vsel %vm4326, %v4328, %v4324
      %v4330 = vmul.f32 1.0, %v4329
      %4427 = vrot.lane.b32.xlu0 %v2905, 64
      %v4428 = vpop.permute.xlu0 %4427
      %4429 = vrot.lane.b32.xlu0 %v2920, 64
      %v4430 = vpop.permute.xlu0 %4429
      %4431 = vrot.lane.b32.xlu0 %v2935, 64
      %v4432 = vpop.permute.xlu0 %4431
      %4433 = vrot.lane.b32.xlu0 %v2950, 64
      %v4434 = vpop.permute.xlu0 %4433
      %4435 = vrot.lane.b32.xlu0 %v2965, 64
      %v4436 = vpop.permute.xlu0 %4435
      %4437 = vrot.lane.b32.xlu0 %v2980, 64
      %v4438 = vpop.permute.xlu0 %4437
      %4439 = vrot.lane.b32.xlu0 %v2995, 64
      %v4440 = vpop.permute.xlu0 %4439
      %4441 = vrot.lane.b32.xlu0 %v3010, 64
      %v4442 = vpop.permute.xlu0 %4441
      %4443 = vrot.lane.b32.xlu0 %v3025, 64
      %v4444 = vpop.permute.xlu0 %4443
      %4445 = vrot.lane.b32.xlu0 %v3040, 64
      %v4446 = vpop.permute.xlu0 %4445
      %4447 = vrot.lane.b32.xlu0 %v3055, 64
      %v4448 = vpop.permute.xlu0 %4447
      %4449 = vrot.lane.b32.xlu0 %v3070, 64
      %v4450 = vpop.permute.xlu0 %4449
      %4451 = vrot.lane.b32.xlu0 %v3085, 64
      %v4452 = vpop.permute.xlu0 %4451
      %4453 = vrot.lane.b32.xlu0 %v3100, 64
      %v4454 = vpop.permute.xlu0 %4453
      %4455 = vrot.lane.b32.xlu0 %v3115, 64
      %v4456 = vpop.permute.xlu0 %4455
      %4457 = vrot.lane.b32.xlu0 %v3130, 64
      %v4458 = vpop.permute.xlu0 %4457
      %4459 = vrot.lane.b32.xlu0 %v3145, 64
      %v4460 = vpop.permute.xlu0 %4459
      %4461 = vrot.lane.b32.xlu0 %v3160, 64
      %v4462 = vpop.permute.xlu0 %4461
      %4463 = vrot.lane.b32.xlu0 %v3175, 64
      %v4464 = vpop.permute.xlu0 %4463
      %4465 = vrot.lane.b32.xlu0 %v3190, 64
      %v4466 = vpop.permute.xlu0 %4465
      %4467 = vrot.lane.b32.xlu0 %v3205, 64
      %v4468 = vpop.permute.xlu0 %4467
      %4469 = vrot.lane.b32.xlu0 %v3220, 64
      %v4470 = vpop.permute.xlu0 %4469
      %4471 = vrot.lane.b32.xlu0 %v3235, 64
      %v4472 = vpop.permute.xlu0 %4471
      %4473 = vrot.lane.b32.xlu0 %v3250, 64
      %v4474 = vpop.permute.xlu0 %4473
      %4475 = vrot.lane.b32.xlu0 %v3265, 64
      %v4476 = vpop.permute.xlu0 %4475
      %4477 = vrot.lane.b32.xlu0 %v3280, 64
      %v4478 = vpop.permute.xlu0 %4477
      %4479 = vrot.lane.b32.xlu0 %v3295, 64
      %v4480 = vpop.permute.xlu0 %4479
      %4481 = vrot.lane.b32.xlu0 %v3310, 64
      %v4482 = vpop.permute.xlu0 %4481
      %4483 = vrot.lane.b32.xlu0 %v3325, 64
      %v4484 = vpop.permute.xlu0 %4483
      %4485 = vrot.lane.b32.xlu0 %v3340, 64
      %v4486 = vpop.permute.xlu0 %4485
      %4487 = vrot.lane.b32.xlu0 %v3355, 64
      %v4488 = vpop.permute.xlu0 %4487
      %4489 = vrot.lane.b32.xlu0 %v3370, 64
      %v4490 = vpop.permute.xlu0 %4489
      %4491 = vrot.lane.b32.xlu0 %v3385, 64
      %v4492 = vpop.permute.xlu0 %4491
      %4493 = vrot.lane.b32.xlu0 %v3400, 64
      %v4494 = vpop.permute.xlu0 %4493
      %4495 = vrot.lane.b32.xlu0 %v3415, 64
      %v4496 = vpop.permute.xlu0 %4495
      %4497 = vrot.lane.b32.xlu0 %v3430, 64
      %v4498 = vpop.permute.xlu0 %4497
      %4499 = vrot.lane.b32.xlu0 %v3445, 64
      %v4500 = vpop.permute.xlu0 %4499
      %4501 = vrot.lane.b32.xlu0 %v3460, 64
      %v4502 = vpop.permute.xlu0 %4501
      %4503 = vrot.lane.b32.xlu0 %v3475, 64
      %v4504 = vpop.permute.xlu0 %4503
      %4505 = vrot.lane.b32.xlu0 %v3490, 64
      %v4506 = vpop.permute.xlu0 %4505
      %4507 = vrot.lane.b32.xlu0 %v3505, 64
      %v4508 = vpop.permute.xlu0 %4507
      %4509 = vrot.lane.b32.xlu0 %v3520, 64
      %v4510 = vpop.permute.xlu0 %4509
      %4511 = vrot.lane.b32.xlu0 %v3535, 64
      %v4512 = vpop.permute.xlu0 %4511
      %4513 = vrot.lane.b32.xlu0 %v3550, 64
      %v4514 = vpop.permute.xlu0 %4513
      %4515 = vrot.lane.b32.xlu0 %v3565, 64
      %v4516 = vpop.permute.xlu0 %4515
      %4517 = vrot.lane.b32.xlu0 %v3580, 64
      %v4518 = vpop.permute.xlu0 %4517
      %4519 = vrot.lane.b32.xlu0 %v3595, 64
      %v4520 = vpop.permute.xlu0 %4519
      %4521 = vrot.lane.b32.xlu0 %v3610, 64
      %v4522 = vpop.permute.xlu0 %4521
      %4523 = vrot.lane.b32.xlu0 %v3625, 64
      %v4524 = vpop.permute.xlu0 %4523
      %4525 = vrot.lane.b32.xlu0 %v3640, 64
      %v4526 = vpop.permute.xlu0 %4525
      %4527 = vrot.lane.b32.xlu0 %v3655, 64
      %v4528 = vpop.permute.xlu0 %4527
      %4529 = vrot.lane.b32.xlu0 %v3670, 64
      %v4530 = vpop.permute.xlu0 %4529
      %4531 = vrot.lane.b32.xlu0 %v3685, 64
      %v4532 = vpop.permute.xlu0 %4531
      %4533 = vrot.lane.b32.xlu0 %v3700, 64
      %v4534 = vpop.permute.xlu0 %4533
      %4535 = vrot.lane.b32.xlu0 %v3715, 64
      %v4536 = vpop.permute.xlu0 %4535
      %4537 = vrot.lane.b32.xlu0 %v3730, 64
      %v4538 = vpop.permute.xlu0 %4537
      %4539 = vrot.lane.b32.xlu0 %v3745, 64
      %v4540 = vpop.permute.xlu0 %4539
      %4541 = vrot.lane.b32.xlu0 %v3760, 64
      %v4542 = vpop.permute.xlu0 %4541
      %4543 = vrot.lane.b32.xlu0 %v3775, 64
      %v4544 = vpop.permute.xlu0 %4543
      %4545 = vrot.lane.b32.xlu0 %v3790, 64
      %v4546 = vpop.permute.xlu0 %4545
      %4547 = vrot.lane.b32.xlu0 %v3805, 64
      %v4548 = vpop.permute.xlu0 %4547
      %4549 = vrot.lane.b32.xlu0 %v3820, 64
      %v4550 = vpop.permute.xlu0 %4549
      %4551 = vrot.lane.b32.xlu0 %v3835, 64
      %v4552 = vpop.permute.xlu0 %4551
      %4553 = vrot.lane.b32.xlu0 %v3850, 64
      %v4554 = vpop.permute.xlu0 %4553
      %4555 = vrot.lane.b32.xlu0 %v3865, 64
      %v4556 = vpop.permute.xlu0 %4555
      %4557 = vrot.lane.b32.xlu0 %v3880, 64
      %v4558 = vpop.permute.xlu0 %4557
      %4559 = vrot.lane.b32.xlu0 %v3895, 64
      %v4560 = vpop.permute.xlu0 %4559
      %4561 = vrot.lane.b32.xlu0 %v3910, 64
      %v4562 = vpop.permute.xlu0 %4561
      %4563 = vrot.lane.b32.xlu0 %v3925, 64
      %v4564 = vpop.permute.xlu0 %4563
      %4565 = vrot.lane.b32.xlu0 %v3940, 64
      %v4566 = vpop.permute.xlu0 %4565
      %4567 = vrot.lane.b32.xlu0 %v3955, 64
      %v4568 = vpop.permute.xlu0 %4567
      %4569 = vrot.lane.b32.xlu0 %v3970, 64
      %v4570 = vpop.permute.xlu0 %4569
      %4571 = vrot.lane.b32.xlu0 %v3985, 64
      %v4572 = vpop.permute.xlu0 %4571
      %4573 = vrot.lane.b32.xlu0 %v4000, 64
      %v4574 = vpop.permute.xlu0 %4573
      %4575 = vrot.lane.b32.xlu0 %v4015, 64
      %v4576 = vpop.permute.xlu0 %4575
      %4577 = vrot.lane.b32.xlu0 %v4030, 64
      %v4578 = vpop.permute.xlu0 %4577
      %4579 = vrot.lane.b32.xlu0 %v4045, 64
      %v4580 = vpop.permute.xlu0 %4579
      %4581 = vrot.lane.b32.xlu0 %v4060, 64
      %v4582 = vpop.permute.xlu0 %4581
      %4583 = vrot.lane.b32.xlu0 %v4075, 64
      %v4584 = vpop.permute.xlu0 %4583
      %4585 = vrot.lane.b32.xlu0 %v4090, 64
      %v4586 = vpop.permute.xlu0 %4585
      %4587 = vrot.lane.b32.xlu0 %v4105, 64
      %v4588 = vpop.permute.xlu0 %4587
      %4589 = vrot.lane.b32.xlu0 %v4120, 64
      %v4590 = vpop.permute.xlu0 %4589
      %4591 = vrot.lane.b32.xlu0 %v4135, 64
      %v4592 = vpop.permute.xlu0 %4591
      %4593 = vrot.lane.b32.xlu0 %v4150, 64
      %v4594 = vpop.permute.xlu0 %4593
      %4595 = vrot.lane.b32.xlu0 %v4165, 64
      %v4596 = vpop.permute.xlu0 %4595
      %4597 = vrot.lane.b32.xlu0 %v4180, 64
      %v4598 = vpop.permute.xlu0 %4597
      %4599 = vrot.lane.b32.xlu0 %v4195, 64
      %v4600 = vpop.permute.xlu0 %4599
      %4601 = vrot.lane.b32.xlu0 %v4210, 64
      %v4602 = vpop.permute.xlu0 %4601
      %4603 = vrot.lane.b32.xlu0 %v4225, 64
      %v4604 = vpop.permute.xlu0 %4603
      %4605 = vrot.lane.b32.xlu0 %v4240, 64
      %v4606 = vpop.permute.xlu0 %4605
      %4607 = vrot.lane.b32.xlu0 %v4255, 64
      %v4608 = vpop.permute.xlu0 %4607
      %4609 = vrot.lane.b32.xlu0 %v4270, 64
      %v4610 = vpop.permute.xlu0 %4609
      %4611 = vrot.lane.b32.xlu0 %v4285, 64
      %v4612 = vpop.permute.xlu0 %4611
      %4613 = vrot.lane.b32.xlu0 %v4300, 64
      %v4614 = vpop.permute.xlu0 %4613
      %4615 = vrot.lane.b32.xlu0 %v4315, 64
      %v4616 = vpop.permute.xlu0 %4615
      %4617 = vrot.lane.b32.xlu0 %v4330, 64
      %v4618 = vpop.permute.xlu0 %4617
      %v4715 = vadd.f32 %v1915, %v4428
      %v4716 = vadd.f32 %v1918, %v4430
      %v4717 = vadd.f32 %v1921, %v4432
      %v4718 = vadd.f32 %v1924, %v4434
      %v4719 = vadd.f32 %v1927, %v4436
      %v4720 = vadd.f32 %v1930, %v4438
      %v4721 = vadd.f32 %v1933, %v4440
      %v4722 = vadd.f32 %v1936, %v4442
      %v4723 = vadd.f32 %v1939, %v4444
      %v4724 = vadd.f32 %v1942, %v4446
      %v4725 = vadd.f32 %v1945, %v4448
      %v4726 = vadd.f32 %v1948, %v4450
      %v4727 = vadd.f32 %v1951, %v4452
      %v4728 = vadd.f32 %v1954, %v4454
      %v4729 = vadd.f32 %v1957, %v4456
      %v4730 = vadd.f32 %v1960, %v4458
      %v4731 = vadd.f32 %v1963, %v4460
      %v4732 = vadd.f32 %v1966, %v4462
      %v4733 = vadd.f32 %v1969, %v4464
      %v4734 = vadd.f32 %v1972, %v4466
      %v4735 = vadd.f32 %v1975, %v4468
      %v4736 = vadd.f32 %v1978, %v4470
      %v4737 = vadd.f32 %v1981, %v4472
      %v4738 = vadd.f32 %v1984, %v4474
      %v4739 = vadd.f32 %v1987, %v4476
      %v4740 = vadd.f32 %v1990, %v4478
      %v4741 = vadd.f32 %v1993, %v4480
      %v4742 = vadd.f32 %v1996, %v4482
      %v4743 = vadd.f32 %v1999, %v4484
      %v4744 = vadd.f32 %v2002, %v4486
      %v4745 = vadd.f32 %v2005, %v4488
      %v4746 = vadd.f32 %v2008, %v4490
      %v4747 = vadd.f32 %v2011, %v4492
      %v4748 = vadd.f32 %v2014, %v4494
      %v4749 = vadd.f32 %v2017, %v4496
      %v4750 = vadd.f32 %v2020, %v4498
      %v4751 = vadd.f32 %v2023, %v4500
      %v4752 = vadd.f32 %v2026, %v4502
      %v4753 = vadd.f32 %v2029, %v4504
      %v4754 = vadd.f32 %v2032, %v4506
      %v4755 = vadd.f32 %v2035, %v4508
      %v4756 = vadd.f32 %v2038, %v4510
      %v4757 = vadd.f32 %v2041, %v4512
      %v4758 = vadd.f32 %v2044, %v4514
      %v4759 = vadd.f32 %v2047, %v4516
      %v4760 = vadd.f32 %v2050, %v4518
      %v4761 = vadd.f32 %v2053, %v4520
      %v4762 = vadd.f32 %v2056, %v4522
      %v4763 = vadd.f32 %v2059, %v4524
      %v4764 = vadd.f32 %v2062, %v4526
      %v4765 = vadd.f32 %v2065, %v4528
      %v4766 = vadd.f32 %v2068, %v4530
      %v4767 = vadd.f32 %v2071, %v4532
      %v4768 = vadd.f32 %v2074, %v4534
      %v4769 = vadd.f32 %v2077, %v4536
      %v4770 = vadd.f32 %v2080, %v4538
      %v4771 = vadd.f32 %v2083, %v4540
      %v4772 = vadd.f32 %v2086, %v4542
      %v4773 = vadd.f32 %v2089, %v4544
      %v4774 = vadd.f32 %v2092, %v4546
      %v4775 = vadd.f32 %v2095, %v4548
      %v4776 = vadd.f32 %v2098, %v4550
      %v4777 = vadd.f32 %v2101, %v4552
      %v4778 = vadd.f32 %v2104, %v4554
      %v4779 = vadd.f32 %v2107, %v4556
      %v4780 = vadd.f32 %v2110, %v4558
      %v4781 = vadd.f32 %v2113, %v4560
      %v4782 = vadd.f32 %v2116, %v4562
      %v4783 = vadd.f32 %v2119, %v4564
      %v4784 = vadd.f32 %v2122, %v4566
      %v4785 = vadd.f32 %v2125, %v4568
      %v4786 = vadd.f32 %v2128, %v4570
      %v4787 = vadd.f32 %v2131, %v4572
      %v4788 = vadd.f32 %v2134, %v4574
      %v4789 = vadd.f32 %v2137, %v4576
      %v4790 = vadd.f32 %v2140, %v4578
      %v4791 = vadd.f32 %v2143, %v4580
      %v4792 = vadd.f32 %v2146, %v4582
      %v4793 = vadd.f32 %v2149, %v4584
      %v4794 = vadd.f32 %v2152, %v4586
      %v4795 = vadd.f32 %v2155, %v4588
      %v4796 = vadd.f32 %v2158, %v4590
      %v4797 = vadd.f32 %v2161, %v4592
      %v4798 = vadd.f32 %v2164, %v4594
      %v4799 = vadd.f32 %v2167, %v4596
      %v4800 = vadd.f32 %v2170, %v4598
      %v4801 = vadd.f32 %v2173, %v4600
      %v4802 = vadd.f32 %v2176, %v4602
      %v4803 = vadd.f32 %v2179, %v4604
      %v4804 = vadd.f32 %v2182, %v4606
      %v4805 = vadd.f32 %v2185, %v4608
      %v4806 = vadd.f32 %v2188, %v4610
      %v4807 = vadd.f32 %v2191, %v4612
      %v4808 = vadd.f32 %v2194, %v4614
      %v4809 = vadd.f32 %v2197, %v4616
      %v4810 = vadd.f32 %v2200, %v4618
      %v4811 = vadd.f32 %v4715, %v2220
      %v4812 = vadd.f32 %v4716, %v2223
      %v4813 = vadd.f32 %v4717, %v2226
      %v4814 = vadd.f32 %v4718, %v2229
      %v4815 = vadd.f32 %v4719, %v2232
      %v4816 = vadd.f32 %v4720, %v2235
      %v4817 = vadd.f32 %v4721, %v2238
      %v4818 = vadd.f32 %v4722, %v2241
      %v4819 = vadd.f32 %v4723, %v2244
      %v4820 = vadd.f32 %v4724, %v2247
      %v4821 = vadd.f32 %v4725, %v2250
      %v4822 = vadd.f32 %v4726, %v2253
      %v4823 = vadd.f32 %v4727, %v2256
      %v4824 = vadd.f32 %v4728, %v2259
      %v4825 = vadd.f32 %v4729, %v2262
      %v4826 = vadd.f32 %v4730, %v2265
      %v4827 = vadd.f32 %v4731, %v2268
      %v4828 = vadd.f32 %v4732, %v2271
      %v4829 = vadd.f32 %v4733, %v2274
      %v4830 = vadd.f32 %v4734, %v2277
      %v4831 = vadd.f32 %v4735, %v2280
      %v4832 = vadd.f32 %v4736, %v2283
      %v4833 = vadd.f32 %v4737, %v2286
      %v4834 = vadd.f32 %v4738, %v2289
      %v4835 = vadd.f32 %v4739, %v2292
      %v4836 = vadd.f32 %v4740, %v2295
      %v4837 = vadd.f32 %v4741, %v2298
      %v4838 = vadd.f32 %v4742, %v2301
      %v4839 = vadd.f32 %v4743, %v2304
      %v4840 = vadd.f32 %v4744, %v2307
      %v4841 = vadd.f32 %v4745, %v2310
      %v4842 = vadd.f32 %v4746, %v2313
      %v4843 = vadd.f32 %v4747, %v2316
      %v4844 = vadd.f32 %v4748, %v2319
      %v4845 = vadd.f32 %v4749, %v2322
      %v4846 = vadd.f32 %v4750, %v2325
      %v4847 = vadd.f32 %v4751, %v2328
      %v4848 = vadd.f32 %v4752, %v2331
      %v4849 = vadd.f32 %v4753, %v2334
      %v4850 = vadd.f32 %v4754, %v2337
      %v4851 = vadd.f32 %v4755, %v2340
      %v4852 = vadd.f32 %v4756, %v2343
      %v4853 = vadd.f32 %v4757, %v2346
      %v4854 = vadd.f32 %v4758, %v2349
      %v4855 = vadd.f32 %v4759, %v2352
      %v4856 = vadd.f32 %v4760, %v2355
      %v4857 = vadd.f32 %v4761, %v2358
      %v4858 = vadd.f32 %v4762, %v2361
      %v4859 = vadd.f32 %v4763, %v2364
      %v4860 = vadd.f32 %v4764, %v2367
      %v4861 = vadd.f32 %v4765, %v2370
      %v4862 = vadd.f32 %v4766, %v2373
      %v4863 = vadd.f32 %v4767, %v2376
      %v4864 = vadd.f32 %v4768, %v2379
      %v4865 = vadd.f32 %v4769, %v2382
      %v4866 = vadd.f32 %v4770, %v2385
      %v4867 = vadd.f32 %v4771, %v2388
      %v4868 = vadd.f32 %v4772, %v2391
      %v4869 = vadd.f32 %v4773, %v2394
      %v4870 = vadd.f32 %v4774, %v2397
      %v4871 = vadd.f32 %v4775, %v2400
      %v4872 = vadd.f32 %v4776, %v2403
      %v4873 = vadd.f32 %v4777, %v2406
      %v4874 = vadd.f32 %v4778, %v2409
      %v4875 = vadd.f32 %v4779, %v2412
      %v4876 = vadd.f32 %v4780, %v2415
      %v4877 = vadd.f32 %v4781, %v2418
      %v4878 = vadd.f32 %v4782, %v2421
      %v4879 = vadd.f32 %v4783, %v2424
      %v4880 = vadd.f32 %v4784, %v2427
      %v4881 = vadd.f32 %v4785, %v2430
      %v4882 = vadd.f32 %v4786, %v2433
      %v4883 = vadd.f32 %v4787, %v2436
      %v4884 = vadd.f32 %v4788, %v2439
      %v4885 = vadd.f32 %v4789, %v2442
      %v4886 = vadd.f32 %v4790, %v2445
      %v4887 = vadd.f32 %v4791, %v2448
      %v4888 = vadd.f32 %v4792, %v2451
      %v4889 = vadd.f32 %v4793, %v2454
      %v4890 = vadd.f32 %v4794, %v2457
      %v4891 = vadd.f32 %v4795, %v2460
      %v4892 = vadd.f32 %v4796, %v2463
      %v4893 = vadd.f32 %v4797, %v2466
      %v4894 = vadd.f32 %v4798, %v2469
      %v4895 = vadd.f32 %v4799, %v2472
      %v4896 = vadd.f32 %v4800, %v2475
      %v4897 = vadd.f32 %v4801, %v2478
      %v4898 = vadd.f32 %v4802, %v2481
      %v4899 = vadd.f32 %v4803, %v2484
      %v4900 = vadd.f32 %v4804, %v2487
      %v4901 = vadd.f32 %v4805, %v2490
      %v4902 = vadd.f32 %v4806, %v2493
      %v4903 = vadd.f32 %v4807, %v2496
      %v4904 = vadd.f32 %v4808, %v2499
      %v4905 = vadd.f32 %v4809, %v2502
      %v4906 = vadd.f32 %v4810, %v2505
      %v4907 = vmax.f32 %v4811, 0.0
      %v4908 = vmax.f32 %v4812, 0.0
      %v4909 = vmax.f32 %v4813, 0.0
      %v4910 = vmax.f32 %v4814, 0.0
      %v4911 = vmax.f32 %v4815, 0.0
      %v4912 = vmax.f32 %v4816, 0.0
      %v4913 = vmax.f32 %v4817, 0.0
      %v4914 = vmax.f32 %v4818, 0.0
      %v4915 = vmax.f32 %v4819, 0.0
      %v4916 = vmax.f32 %v4820, 0.0
      %v4917 = vmax.f32 %v4821, 0.0
      %v4918 = vmax.f32 %v4822, 0.0
      %v4919 = vmax.f32 %v4823, 0.0
      %v4920 = vmax.f32 %v4824, 0.0
      %v4921 = vmax.f32 %v4825, 0.0
      %v4922 = vmax.f32 %v4826, 0.0
      %v4923 = vmax.f32 %v4827, 0.0
      %v4924 = vmax.f32 %v4828, 0.0
      %v4925 = vmax.f32 %v4829, 0.0
      %v4926 = vmax.f32 %v4830, 0.0
      %v4927 = vmax.f32 %v4831, 0.0
      %v4928 = vmax.f32 %v4832, 0.0
      %v4929 = vmax.f32 %v4833, 0.0
      %v4930 = vmax.f32 %v4834, 0.0
      %v4931 = vmax.f32 %v4835, 0.0
      %v4932 = vmax.f32 %v4836, 0.0
      %v4933 = vmax.f32 %v4837, 0.0
      %v4934 = vmax.f32 %v4838, 0.0
      %v4935 = vmax.f32 %v4839, 0.0
      %v4936 = vmax.f32 %v4840, 0.0
      %v4937 = vmax.f32 %v4841, 0.0
      %v4938 = vmax.f32 %v4842, 0.0
      %v4939 = vmax.f32 %v4843, 0.0
      %v4940 = vmax.f32 %v4844, 0.0
      %v4941 = vmax.f32 %v4845, 0.0
      %v4942 = vmax.f32 %v4846, 0.0
      %v4943 = vmax.f32 %v4847, 0.0
      %v4944 = vmax.f32 %v4848, 0.0
      %v4945 = vmax.f32 %v4849, 0.0
      %v4946 = vmax.f32 %v4850, 0.0
      %v4947 = vmax.f32 %v4851, 0.0
      %v4948 = vmax.f32 %v4852, 0.0
      %v4949 = vmax.f32 %v4853, 0.0
      %v4950 = vmax.f32 %v4854, 0.0
      %v4951 = vmax.f32 %v4855, 0.0
      %v4952 = vmax.f32 %v4856, 0.0
      %v4953 = vmax.f32 %v4857, 0.0
      %v4954 = vmax.f32 %v4858, 0.0
      %v4955 = vmax.f32 %v4859, 0.0
      %v4956 = vmax.f32 %v4860, 0.0
      %v4957 = vmax.f32 %v4861, 0.0
      %v4958 = vmax.f32 %v4862, 0.0
      %v4959 = vmax.f32 %v4863, 0.0
      %v4960 = vmax.f32 %v4864, 0.0
      %v4961 = vmax.f32 %v4865, 0.0
      %v4962 = vmax.f32 %v4866, 0.0
      %v4963 = vmax.f32 %v4867, 0.0
      %v4964 = vmax.f32 %v4868, 0.0
      %v4965 = vmax.f32 %v4869, 0.0
      %v4966 = vmax.f32 %v4870, 0.0
      %v4967 = vmax.f32 %v4871, 0.0
      %v4968 = vmax.f32 %v4872, 0.0
      %v4969 = vmax.f32 %v4873, 0.0
      %v4970 = vmax.f32 %v4874, 0.0
      %v4971 = vmax.f32 %v4875, 0.0
      %v4972 = vmax.f32 %v4876, 0.0
      %v4973 = vmax.f32 %v4877, 0.0
      %v4974 = vmax.f32 %v4878, 0.0
      %v4975 = vmax.f32 %v4879, 0.0
      %v4976 = vmax.f32 %v4880, 0.0
      %v4977 = vmax.f32 %v4881, 0.0
      %v4978 = vmax.f32 %v4882, 0.0
      %v4979 = vmax.f32 %v4883, 0.0
      %v4980 = vmax.f32 %v4884, 0.0
      %v4981 = vmax.f32 %v4885, 0.0
      %v4982 = vmax.f32 %v4886, 0.0
      %v4983 = vmax.f32 %v4887, 0.0
      %v4984 = vmax.f32 %v4888, 0.0
      %v4985 = vmax.f32 %v4889, 0.0
      %v4986 = vmax.f32 %v4890, 0.0
      %v4987 = vmax.f32 %v4891, 0.0
      %v4988 = vmax.f32 %v4892, 0.0
      %v4989 = vmax.f32 %v4893, 0.0
      %v4990 = vmax.f32 %v4894, 0.0
      %v4991 = vmax.f32 %v4895, 0.0
      %v4992 = vmax.f32 %v4896, 0.0
      %v4993 = vmax.f32 %v4897, 0.0
      %v4994 = vmax.f32 %v4898, 0.0
      %v4995 = vmax.f32 %v4899, 0.0
      %v4996 = vmax.f32 %v4900, 0.0
      %v4997 = vmax.f32 %v4901, 0.0
      %v4998 = vmax.f32 %v4902, 0.0
      %v4999 = vmax.f32 %v4903, 0.0
      %v5000 = vmax.f32 %v4904, 0.0
      %v5001 = vmax.f32 %v4905, 0.0
      %v5002 = vmax.f32 %v4906, 0.0
      %vm5003 = vcmask 523264
      %5004 = vst.msk [vmem:[%s177] sm:$0xff] %vm5003, %v4907
      %5005 = vst.msk [vmem:[%s177 + $0x8] sm:$0xff] %vm5003, %v4908
      %5006 = vst.msk [vmem:[%s177 + $0x10] sm:$0xff] %vm5003, %v4909
      %5007 = vst.msk [vmem:[%s177 + $0x18] sm:$0xff] %vm5003, %v4910
      %5008 = vst.msk [vmem:[%s177 + $0x20] sm:$0xff] %vm5003, %v4911
      %5009 = vst.msk [vmem:[%s177 + $0x28] sm:$0xff] %vm5003, %v4912
      %5010 = vst.msk [vmem:[%s177 + $0x30] sm:$0xff] %vm5003, %v4913
      %5011 = vst.msk [vmem:[%s177 + $0x38] sm:$0xff] %vm5003, %v4914
      %5012 = vst.msk [vmem:[%s177 + $0x40] sm:$0xff] %vm5003, %v4915
      %5013 = vst.msk [vmem:[%s177 + $0x48] sm:$0xff] %vm5003, %v4916
      %5014 = vst.msk [vmem:[%s177 + $0x50] sm:$0xff] %vm5003, %v4917
      %5015 = vst.msk [vmem:[%s177 + $0x58] sm:$0xff] %vm5003, %v4918
      %5016 = vst.msk [vmem:[%s177 + $0x60] sm:$0xff] %vm5003, %v4919
      %5017 = vst.msk [vmem:[%s177 + $0x68] sm:$0xff] %vm5003, %v4920
      %5018 = vst.msk [vmem:[%s177 + $0x70] sm:$0xff] %vm5003, %v4921
      %5019 = vst.msk [vmem:[%s177 + $0x78] sm:$0xff] %vm5003, %v4922
      %5020 = vst.msk [vmem:[%s177 + $0x80] sm:$0xff] %vm5003, %v4923
      %5021 = vst.msk [vmem:[%s177 + $0x88] sm:$0xff] %vm5003, %v4924
      %5022 = vst.msk [vmem:[%s177 + $0x90] sm:$0xff] %vm5003, %v4925
      %5023 = vst.msk [vmem:[%s177 + $0x98] sm:$0xff] %vm5003, %v4926
      %5024 = vst.msk [vmem:[%s177 + $0xa0] sm:$0xff] %vm5003, %v4927
      %5025 = vst.msk [vmem:[%s177 + $0xa8] sm:$0xff] %vm5003, %v4928
      %5026 = vst.msk [vmem:[%s177 + $0xb0] sm:$0xff] %vm5003, %v4929
      %5027 = vst.msk [vmem:[%s177 + $0xb8] sm:$0xff] %vm5003, %v4930
      %5028 = vst.msk [vmem:[%s177 + $0xc0] sm:$0xff] %vm5003, %v4931
      %5029 = vst.msk [vmem:[%s177 + $0xc8] sm:$0xff] %vm5003, %v4932
      %5030 = vst.msk [vmem:[%s177 + $0xd0] sm:$0xff] %vm5003, %v4933
      %5031 = vst.msk [vmem:[%s177 + $0xd8] sm:$0xff] %vm5003, %v4934
      %5032 = vst.msk [vmem:[%s177 + $0xe0] sm:$0xff] %vm5003, %v4935
      %5033 = vst.msk [vmem:[%s177 + $0xe8] sm:$0xff] %vm5003, %v4936
      %5034 = vst.msk [vmem:[%s177 + $0xf0] sm:$0xff] %vm5003, %v4937
      %5035 = vst.msk [vmem:[%s177 + $0xf8] sm:$0xff] %vm5003, %v4938
      %5036 = vst.msk [vmem:[%s177 + $0x100] sm:$0xff] %vm5003, %v4939
      %5037 = vst.msk [vmem:[%s177 + $0x108] sm:$0xff] %vm5003, %v4940
      %5038 = vst.msk [vmem:[%s177 + $0x110] sm:$0xff] %vm5003, %v4941
      %5039 = vst.msk [vmem:[%s177 + $0x118] sm:$0xff] %vm5003, %v4942
      %5040 = vst.msk [vmem:[%s177 + $0x120] sm:$0xff] %vm5003, %v4943
      %5041 = vst.msk [vmem:[%s177 + $0x128] sm:$0xff] %vm5003, %v4944
      %5042 = vst.msk [vmem:[%s177 + $0x130] sm:$0xff] %vm5003, %v4945
      %5043 = vst.msk [vmem:[%s177 + $0x138] sm:$0xff] %vm5003, %v4946
      %5044 = vst.msk [vmem:[%s177 + $0x140] sm:$0xff] %vm5003, %v4947
      %5045 = vst.msk [vmem:[%s177 + $0x148] sm:$0xff] %vm5003, %v4948
      %5046 = vst.msk [vmem:[%s177 + $0x150] sm:$0xff] %vm5003, %v4949
      %5047 = vst.msk [vmem:[%s177 + $0x158] sm:$0xff] %vm5003, %v4950
      %5048 = vst.msk [vmem:[%s177 + $0x160] sm:$0xff] %vm5003, %v4951
      %5049 = vst.msk [vmem:[%s177 + $0x168] sm:$0xff] %vm5003, %v4952
      %5050 = vst.msk [vmem:[%s177 + $0x170] sm:$0xff] %vm5003, %v4953
      %5051 = vst.msk [vmem:[%s177 + $0x178] sm:$0xff] %vm5003, %v4954
      %5052 = vst.msk [vmem:[%s177 + $0x180] sm:$0xff] %vm5003, %v4955
      %5053 = vst.msk [vmem:[%s177 + $0x188] sm:$0xff] %vm5003, %v4956
      %5054 = vst.msk [vmem:[%s177 + $0x190] sm:$0xff] %vm5003, %v4957
      %5055 = vst.msk [vmem:[%s177 + $0x198] sm:$0xff] %vm5003, %v4958
      %5056 = vst.msk [vmem:[%s177 + $0x1a0] sm:$0xff] %vm5003, %v4959
      %5057 = vst.msk [vmem:[%s177 + $0x1a8] sm:$0xff] %vm5003, %v4960
      %5058 = vst.msk [vmem:[%s177 + $0x1b0] sm:$0xff] %vm5003, %v4961
      %5059 = vst.msk [vmem:[%s177 + $0x1b8] sm:$0xff] %vm5003, %v4962
      %5060 = vst.msk [vmem:[%s177 + $0x1c0] sm:$0xff] %vm5003, %v4963
      %5061 = vst.msk [vmem:[%s177 + $0x1c8] sm:$0xff] %vm5003, %v4964
      %5062 = vst.msk [vmem:[%s177 + $0x1d0] sm:$0xff] %vm5003, %v4965
      %5063 = vst.msk [vmem:[%s177 + $0x1d8] sm:$0xff] %vm5003, %v4966
      %5064 = vst.msk [vmem:[%s177 + $0x1e0] sm:$0xff] %vm5003, %v4967
      %5065 = vst.msk [vmem:[%s177 + $0x1e8] sm:$0xff] %vm5003, %v4968
      %5066 = vst.msk [vmem:[%s177 + $0x1f0] sm:$0xff] %vm5003, %v4969
      %5067 = vst.msk [vmem:[%s177 + $0x1f8] sm:$0xff] %vm5003, %v4970
      %5068 = vst.msk [vmem:[%s177 + $0x200] sm:$0xff] %vm5003, %v4971
      %5069 = vst.msk [vmem:[%s177 + $0x208] sm:$0xff] %vm5003, %v4972
      %5070 = vst.msk [vmem:[%s177 + $0x210] sm:$0xff] %vm5003, %v4973
      %5071 = vst.msk [vmem:[%s177 + $0x218] sm:$0xff] %vm5003, %v4974
      %5072 = vst.msk [vmem:[%s177 + $0x220] sm:$0xff] %vm5003, %v4975
      %5073 = vst.msk [vmem:[%s177 + $0x228] sm:$0xff] %vm5003, %v4976
      %5074 = vst.msk [vmem:[%s177 + $0x230] sm:$0xff] %vm5003, %v4977
      %5075 = vst.msk [vmem:[%s177 + $0x238] sm:$0xff] %vm5003, %v4978
      %5076 = vst.msk [vmem:[%s177 + $0x240] sm:$0xff] %vm5003, %v4979
      %5077 = vst.msk [vmem:[%s177 + $0x248] sm:$0xff] %vm5003, %v4980
      %5078 = vst.msk [vmem:[%s177 + $0x250] sm:$0xff] %vm5003, %v4981
      %5079 = vst.msk [vmem:[%s177 + $0x258] sm:$0xff] %vm5003, %v4982
      %5080 = vst.msk [vmem:[%s177 + $0x260] sm:$0xff] %vm5003, %v4983
      %5081 = vst.msk [vmem:[%s177 + $0x268] sm:$0xff] %vm5003, %v4984
      %5082 = vst.msk [vmem:[%s177 + $0x270] sm:$0xff] %vm5003, %v4985
      %5083 = vst.msk [vmem:[%s177 + $0x278] sm:$0xff] %vm5003, %v4986
      %5084 = vst.msk [vmem:[%s177 + $0x280] sm:$0xff] %vm5003, %v4987
      %5085 = vst.msk [vmem:[%s177 + $0x288] sm:$0xff] %vm5003, %v4988
      %5086 = vst.msk [vmem:[%s177 + $0x290] sm:$0xff] %vm5003, %v4989
      %5087 = vst.msk [vmem:[%s177 + $0x298] sm:$0xff] %vm5003, %v4990
      %5088 = vst.msk [vmem:[%s177 + $0x2a0] sm:$0xff] %vm5003, %v4991
      %5089 = vst.msk [vmem:[%s177 + $0x2a8] sm:$0xff] %vm5003, %v4992
      %5090 = vst.msk [vmem:[%s177 + $0x2b0] sm:$0xff] %vm5003, %v4993
      %5091 = vst.msk [vmem:[%s177 + $0x2b8] sm:$0xff] %vm5003, %v4994
      %5092 = vst.msk [vmem:[%s177 + $0x2c0] sm:$0xff] %vm5003, %v4995
      %5093 = vst.msk [vmem:[%s177 + $0x2c8] sm:$0xff] %vm5003, %v4996
      %5094 = vst.msk [vmem:[%s177 + $0x2d0] sm:$0xff] %vm5003, %v4997
      %5095 = vst.msk [vmem:[%s177 + $0x2d8] sm:$0xff] %vm5003, %v4998
      %5096 = vst.msk [vmem:[%s177 + $0x2e0] sm:$0xff] %vm5003, %v4999
      %5097 = vst.msk [vmem:[%s177 + $0x2e8] sm:$0xff] %vm5003, %v5000
      %5098 = vst.msk [vmem:[%s177 + $0x2f0] sm:$0xff] %vm5003, %v5001
      %5099 = vst.msk [vmem:[%s177 + $0x2f8] sm:$0xff] %vm5003, %v5002
      %s5100 = smul.u32 16, %s14
      %p5101 = scmp.lt.s32.totalorder %s5100, 31
      %s5102 = scalar_select %p5101, %s5100, 31
      %s5103 = smul.addr %s5102, 6
      %s5104 = smul.addr %s5103, 8
      %s5105 = scalar_lea.vmem %s3, %s5104
      // Predicated region
      $region33: #{lc_block_forward.2} parent=31 // pred_check
        %p5106 = pneg %p100
      $region34: #{lc_block_forward.2} parent=31 // pred_check_branch
        %5108 = sbr.rel (%p5106) target = $region36
      $region35: #{lc_block_forward.2} parent=31 // pred_region
        %s5109 = smul.u32 16, %s14
      $region36: #{lc_block_forward.2} parent=31 // pred_fallthru
        _
    $region32: #{lc_block_forward.2} parent=5 // pred_fallthru
      _
    %p5110 = scmp.le.s32.totalorder 2, %s9
    // Predicated region
    $region37: #{lc_block_forward.2} parent=5 // pred_check
      %p5111 = pneg %p5110
    $region38: #{lc_block_forward.2} parent=5 // pred_check_branch
      %5113 = sbr.rel (%p5111) target = $region40
    $region39: #{lc_block_forward.2} parent=5 // pred_region
      %s5114 = ssub.s32 %s9, 2
      // Predicated region
      $region41: #{lc_block_forward.2} parent=39 // pred_check
        %p5115 = pneg %p106
      $region42: #{lc_block_forward.2} parent=39 // pred_check_branch
        %5117 = sbr.rel (%p5115) target = $region44
      $region43: #{lc_block_forward.2} parent=39 // pred_region
        %s5118 = smul.u32 16, %s15
        %p5119 = scmp.lt.s32.totalorder %s5118, 31
        %s5120 = scalar_select %p5119, %s5118, 31
        %s5121 = smul.addr %s5120, 6
        %s5122 = smul.addr %s5121, 8
        %s5123 = scalar_lea.vmem %s3, %s5122
      $region44: #{lc_block_forward.2} parent=39 // pred_fallthru
        _
    $region40: #{lc_block_forward.2} parent=5 // pred_fallthru
      _
  $region6: #{lc_block_forward.2} parent=0 // loop_footer
    %s13 = sadd.s32 1, %s9
  $region7: #{lc_block_forward.2} parent=0 // loop_footer_branch
    %8 = sbr.rel target = $region3
  $region8: #{lc_block_forward.2} parent=0 // loop_exit
    _

</llo_original>
